<compile_context>
chip_gen: v7x
topology: tpu7x:2x2x1
jax: 0.10.0
libtpu: 0.0.40
codegen_flags: <defaults>
</compile_context>

<pallas_src>
import functools

import jax
import jax.numpy as jnp
import numpy as np
from jax import lax
from jax.experimental import pallas as pl
from jax.experimental.pallas import tpu as pltpu


def _act(name):
    if name == "relu":
        return jax.nn.relu
    if name == "tanh":
        return jnp.tanh
    raise NotImplementedError(f"actfun {name} not implemented")


def _roundup(x, m):
    return ((x + m - 1) // m) * m


# --------------------------- fused forward kernel -----------------------------
def gamma_fused_kernel(x_ref, wih_ref, whh_ref, bih_ref, bhh_ref,
                       w1_ref, b1_ref, w2_ref, b2_ref, wo_ref, bo_ref,
                       y_ref, gi_ref,
                       *, T, B, H, n_blocks, actfun, residual):
    # x_ref  : [T*B, K_pad] bf16          wih_ref: [K_pad, 3H] bf16
    # whh_ref: [H, 3H] bf16               bih/bhh: [1, 3H] f32
    # w1/w2  : [n_blocks, 2H, 2H] bf16    b1/b2  : [n_blocks, 1, 2H] f32
    # wo     : [2H, OUT_PAD] bf16         bo     : [1, OUT_PAD] f32
    # y_ref  : [B, OUT_PAD] f32 (output)  gi_ref : [T*B, 3H] f32 (scratch)
    act = _act(actfun)

    # (1) Input projection for ALL timesteps as one MXU-friendly matmul.
    gi_ref[...] = (
        jnp.dot(x_ref[...], wih_ref[...], preferred_element_type=jnp.float32)
        + bih_ref[...])

    # (2) GRU recurrence (PyTorch gate order r, z, n).  Weight / bias loads are
    # hoisted; the T=compile-time loop is statically unrolled so the LLO
    # scheduler sees across steps.
    whh = whh_ref[...]                                    # bf16, loaded once
    bhh = jnp.broadcast_to(bhh_ref[...], (B, 3 * H))      # hoisted broadcast
    h = jnp.zeros((B, H), jnp.float32)
    for t in range(T):
        gi = gi_ref[t * B:(t + 1) * B, :]                 # [B, 3H] f32, static
        gh = jnp.dot(h.astype(jnp.bfloat16), whh,
                     preferred_element_type=jnp.float32) + bhh
        r = jax.nn.sigmoid(gi[:, :H] + gh[:, :H])
        z = jax.nn.sigmoid(gi[:, H:2 * H] + gh[:, H:2 * H])
        n = jnp.tanh(gi[:, 2 * H:] + r * gh[:, 2 * H:])
        h = (1.0 - z) * n + z * h

    # (3) Both MLP heads fused: combined state [B, 2H] with block-diagonal
    # weights, so every matmul is N = 2H = 256 wide.
    hc = jnp.concatenate([h, h], axis=1)                  # [B, 2H]
    for i in range(n_blocks):                             # static unroll
        a = act(jnp.dot(hc.astype(jnp.bfloat16), w1_ref[i],
                        preferred_element_type=jnp.float32) + b1_ref[i])
        o = act(jnp.dot(a.astype(jnp.bfloat16), w2_ref[i],
                        preferred_element_type=jnp.float32) + b2_ref[i])
        hc = o + hc if residual else o

    # (4) Lane-dense 128-wide output slab: [pnet out || vnet out || zeros].
    y_ref[...] = (jnp.dot(hc.astype(jnp.bfloat16), wo_ref[...],
                          preferred_element_type=jnp.float32) + bo_ref[...])


# ------------------------------ wrapper ----------------------------------------
def gamma_policy_forward(packed, x_in, config, residual=True):
    """x_in: [T, B, in_dim] f32 -> (mu, logvar, val) if stochastic else (z_prob, val)."""
    T, B, in_dim = x_in.shape
    H = packed["h_dim"]
    n_blocks = packed["n_blocks"]
    k_pad = packed["wih"].shape[0]
    out_pad = packed["wo"].shape[1]

    # Reshape + zero-pad to a lane-aligned K (402 -> 512) host-side; cast bf16.
    x_flat = x_in.reshape(T * B, in_dim)
    x_flat = jnp.pad(x_flat, ((0, 0), (0, k_pad - in_dim))).astype(jnp.bfloat16)

    kern = functools.partial(gamma_fused_kernel, T=T, B=B, H=H,
                             n_blocks=n_blocks, actfun=config["actfun"],
                             residual=residual)
    vmem = pl.BlockSpec(memory_space=pltpu.MemorySpace.VMEM)
    y = pl.pallas_call(
        kern,
        out_shape=jax.ShapeDtypeStruct((B, out_pad), jnp.float32),
        in_specs=[vmem] * 11,
        out_specs=vmem,
        scratch_shapes=[pltpu.VMEM((T * B, 3 * H), jnp.float32)],
    )(x_flat, packed["wih"], packed["whh"], packed["bih"], packed["bhh"],
      packed["w1"], packed["b1"], packed["w2"], packed["b2"],
      packed["wo"], packed["bo"])

    p_out = packed["p_out"]
    z_prob = y[:, :p_out]
    val = y[:, p_out:p_out + 1]
    if config.get("is_stochastic", True):
        z_dim = config["z_dim"]
        return z_prob[:, :z_dim], z_prob[:, z_dim:], val
    return z_prob, val


# ----------------------- parameter init (PyTorch layout) -----------------------
def _in_dim_from_config(config):
    br = config["body_repr"]
    if br in {"ssm2_67_condi_marker", "ssm2_67_condi_marker_l2norm",
              "ssm2_67_condi_marker_height"}:
        return 67 * 3 * 2
    elif br == "ssm2_67_condi_wpath":
        return 67 * 3 + 2
    elif br == "ssm2_67_condi_wpath_height":
        return 67 * 3 + 3
    raise NotImplementedError("other body_repr is not implemented yet.")


def _linear_init(key, fan_in, fan_out):
    bound = 1.0 / np.sqrt(fan_in)
    kw, kb = jax.random.split(key)
    w = jax.random.uniform(kw, (fan_in, fan_out), jnp.float32, -bound, bound)
    b = jax.random.uniform(kb, (1, fan_out), jnp.float32, -bound, bound)
    return w, b


def _init_mlpblock(key, h_dim, out_dim, n_blocks):
    ks = jax.random.split(key, 2 * n_blocks + 1)
    w1s, b1s, w2s, b2s = [], [], [], []
    for i in range(n_blocks):
        w, b = _linear_init(ks[2 * i], h_dim, h_dim)
        w1s.append(w); b1s.append(b)
        w, b = _linear_init(ks[2 * i + 1], h_dim, h_dim)
        w2s.append(w); b2s.append(b)
    wo, bo = _linear_init(ks[-1], h_dim, out_dim)
    return (jnp.stack(w1s), jnp.stack(b1s), jnp.stack(w2s), jnp.stack(b2s),
            wo, bo)


def init_gamma_policy_params(key, config):
    h_dim = config["h_dim"]
    z_dim = config["z_dim"]
    n_blocks = config["n_blocks"]
    is_stochastic = config.get("is_stochastic", True)
    in_dim = _in_dim_from_config(config)

    k_gru, k_p, k_v = jax.random.split(key, 3)
    bound = 1.0 / np.sqrt(h_dim)
    kg = jax.random.split(k_gru, 4)
    gru = (
        jax.random.uniform(kg[0], (in_dim, 3 * h_dim), jnp.float32, -bound, bound),
        jax.random.uniform(kg[1], (h_dim, 3 * h_dim), jnp.float32, -bound, bound),
        jax.random.uniform(kg[2], (1, 3 * h_dim), jnp.float32, -bound, bound),
        jax.random.uniform(kg[3], (1, 3 * h_dim), jnp.float32, -bound, bound),
    )
    pnet_out = z_dim * 2 if is_stochastic else z_dim
    return {
        "gru": gru,
        "pnet": _init_mlpblock(k_p, h_dim, pnet_out, n_blocks),
        "vnet": _init_mlpblock(k_v, h_dim, 1, n_blocks),
    }


# ------------------- pack params for the fused kernel --------------------------
def pack_params(params, config):
    wih, whh, bih, bhh = params["gru"]
    in_dim = wih.shape[0]
    H = whh.shape[0]
    k_pad = _roundup(in_dim, 128)

    def _blockdiag(a, b):
        # a, b: [n, H, H] -> [n, 2H, 2H] (a top-left, b bottom-right, zeros off-diag)
        n, h, _ = a.shape
        z = jnp.zeros((n, h, h), a.dtype)
        top = jnp.concatenate([a, z], axis=2)
        bot = jnp.concatenate([z, b], axis=2)
        return jnp.concatenate([top, bot], axis=1)

    pw1, pb1, pw2, pb2, pwo, pbo = params["pnet"]
    vw1, vb1, vw2, vb2, vwo, vbo = params["vnet"]
    p_out = pwo.shape[1]
    v_out = vwo.shape[1]
    out_pad = _roundup(max(p_out + v_out, 128), 128)

    wo = jnp.zeros((2 * H, out_pad), jnp.float32)
    wo = wo.at[:H, :p_out].set(pwo)
    wo = wo.at[H:, p_out:p_out + v_out].set(vwo)
    bo = jnp.zeros((1, out_pad), jnp.float32)
    bo = bo.at[:, :p_out].set(pbo)
    bo = bo.at[:, p_out:p_out + v_out].set(vbo)

    return {
        "h_dim": H,
        "n_blocks": int(pw1.shape[0]),
        "p_out": int(p_out),
        "wih": jnp.pad(wih, ((0, k_pad - in_dim), (0, 0))).astype(jnp.bfloat16),
        "whh": whh.astype(jnp.bfloat16),
        "bih": bih,
        "bhh": bhh,
        "w1": _blockdiag(pw1, vw1).astype(jnp.bfloat16),
        "b1": jnp.concatenate([pb1, vb1], axis=2),
        "w2": _blockdiag(pw2, vw2).astype(jnp.bfloat16),
        "b2": jnp.concatenate([pb2, vb2], axis=2),
        "wo": wo.astype(jnp.bfloat16),
        "bo": bo,
    }


# ---------------------------- pure-JAX references -------------------------------
def gamma_policy_ref_packed(packed, x_in, config, residual=True):
    """Mirrors the kernel math exactly (bf16 operands, f32 accumulation)."""
    T, B, in_dim = x_in.shape
    H = packed["h_dim"]
    act = _act(config["actfun"])
    k_pad = packed["wih"].shape[0]

    x_flat = jnp.pad(x_in.reshape(T * B, in_dim),
                     ((0, 0), (0, k_pad - in_dim))).astype(jnp.bfloat16)
    gi_all = (jnp.dot(x_flat, packed["wih"],
                      preferred_element_type=jnp.float32) + packed["bih"])
    whh = packed["whh"]
    bhh = packed["bhh"]
    h = jnp.zeros((B, H), jnp.float32)
    for t in range(T):
        gi = gi_all[t * B:(t + 1) * B]
        gh = jnp.dot(h.astype(jnp.bfloat16), whh,
                     preferred_element_type=jnp.float32) + bhh
        r = jax.nn.sigmoid(gi[:, :H] + gh[:, :H])
        z = jax.nn.sigmoid(gi[:, H:2 * H] + gh[:, H:2 * H])
        n = jnp.tanh(gi[:, 2 * H:] + r * gh[:, 2 * H:])
        h = (1.0 - z) * n + z * h

    hc = jnp.concatenate([h, h], axis=1)
    for i in range(packed["n_blocks"]):
        a = act(jnp.dot(hc.astype(jnp.bfloat16), packed["w1"][i],
                        preferred_element_type=jnp.float32) + packed["b1"][i])
        o = act(jnp.dot(a.astype(jnp.bfloat16), packed["w2"][i],
                        preferred_element_type=jnp.float32) + packed["b2"][i])
        hc = o + hc if residual else o
    y = jnp.dot(hc.astype(jnp.bfloat16), packed["wo"],
                preferred_element_type=jnp.float32) + packed["bo"]

    p_out = packed["p_out"]
    z_prob = y[:, :p_out]
    val = y[:, p_out:p_out + 1]
    if config.get("is_stochastic", True):
        z_dim = config["z_dim"]
        return z_prob[:, :z_dim], z_prob[:, z_dim:], val
    return z_prob, val


def gamma_policy_ref_f32(params, x_in, config, residual=True):
    """Original-module semantics in f32 (PyTorch-layout params)."""
    wih, whh, bih, bhh = params["gru"]
    T, B, _ = x_in.shape
    H = whh.shape[0]
    act = _act(config["actfun"])

    def step(h, x_t):
        gi = x_t @ wih + bih
        gh = h @ whh + bhh
        r = jax.nn.sigmoid(gi[:, :H] + gh[:, :H])
        z = jax.nn.sigmoid(gi[:, H:2 * H] + gh[:, H:2 * H])
        n = jnp.tanh(gi[:, 2 * H:] + r * gh[:, 2 * H:])
        return (1.0 - z) * n + z * h, None

    hx, _ = lax.scan(step, jnp.zeros((B, H), jnp.float32), x_in)

    def mlpblock(h, p):
        w1, b1, w2, b2, wo, bo = p
        for i in range(w1.shape[0]):
            r_ = h if residual else 0.0
            a = act(h @ w1[i] + b1[i])
            o = act(a @ w2[i] + b2[i])
            h = o + r_
        return h @ wo + bo

    z_prob = mlpblock(hx, params["pnet"])
    val = mlpblock(hx, params["vnet"])
    if config.get("is_stochastic", True):
        z_dim = config["z_dim"]
        return z_prob[:, :z_dim], z_prob[:, z_dim:], val
    return z_prob, val


# ------------------------------------ main ---------------------------------------
if __name__ == "__main__":
    config = {
        "h_dim": 128,          # 3*h_dim = 384, 2*h_dim = 256: lane-aligned
        "z_dim": 16,
        "n_blocks": 2,
        "n_recur": 1,          # unused in forward (as in the PyTorch module)
        "actfun": "relu",
        "is_stochastic": True,
        "min_logvar": -1,      # NOTE: PyTorch forward never applies these; we match.
        "max_logvar": 3,
        "body_repr": "ssm2_67_condi_marker",   # in_dim = 67*3*2 = 402 -> padded 512
    }
    T, B = 8, 8
    in_dim = _in_dim_from_config(config)

    key = jax.random.PRNGKey(0)
    k_params, k_x = jax.random.split(key)
    params = init_gamma_policy_params(k_params, config)
    packed = pack_params(params, config)
    x_in = jax.random.normal(k_x, (T, B, in_dim), jnp.float32)

    mu, logvar, val = jax.block_until_ready(
        gamma_policy_forward(packed, x_in, config))

    # (a) tight check vs. a pure-JAX reference that mirrors the kernel's
    # bf16-operand / f32-accumulate math exactly.
    mu_p, logvar_p, val_p = jax.block_until_ready(
        gamma_policy_ref_packed(packed, x_in, config))
    np.testing.assert_allclose(np.asarray(mu), np.asarray(mu_p),
                               rtol=2e-3, atol=2e-3)
    np.testing.assert_allclose(np.asarray(logvar), np.asarray(logvar_p),
                               rtol=2e-3, atol=2e-3)
    np.testing.assert_allclose(np.asarray(val), np.asarray(val_p),
                               rtol=2e-3, atol=2e-3)

    # (b) sanity check vs. full-f32 module semantics (loose tolerance because
    # matmul operands are intentionally bf16).
    with jax.default_matmul_precision("float32"):
        mu_r, logvar_r, val_r = jax.block_until_ready(
            gamma_policy_ref_f32(params, x_in, config))
    np.testing.assert_allclose(np.asarray(mu), np.asarray(mu_r),
                               rtol=1e-1, atol=1e-1)
    np.testing.assert_allclose(np.asarray(logvar), np.asarray(logvar_r),
                               rtol=1e-1, atol=1e-1)
    np.testing.assert_allclose(np.asarray(val), np.asarray(val_r),
                               rtol=1e-1, atol=1e-1)

    assert mu.shape == (B, config["z_dim"])
    assert logvar.shape == (B, config["z_dim"])
    assert val.shape == (B, 1)
    print("KERNEL_OK")
</pallas_src>

<mosaic_0001>
module attributes {stable_mosaic.version = 11 : i64} {
  func.func @gamma_fused_kernel(%arg0: memref<64x512xbf16, #tpu.memory_space<vmem>>, %arg1: memref<512x384xbf16, #tpu.memory_space<vmem>>, %arg2: memref<128x384xbf16, #tpu.memory_space<vmem>>, %arg3: memref<1x384xf32, #tpu.memory_space<vmem>>, %arg4: memref<1x384xf32, #tpu.memory_space<vmem>>, %arg5: memref<2x256x256xbf16, #tpu.memory_space<vmem>>, %arg6: memref<2x1x256xf32, #tpu.memory_space<vmem>>, %arg7: memref<2x256x256xbf16, #tpu.memory_space<vmem>>, %arg8: memref<2x1x256xf32, #tpu.memory_space<vmem>>, %arg9: memref<256x128xbf16, #tpu.memory_space<vmem>>, %arg10: memref<1x128xf32, #tpu.memory_space<vmem>>, %arg11: memref<8x128xf32, #tpu.memory_space<vmem>>, %arg12: memref<64x384xf32, #tpu.memory_space<vmem>>) attributes {dimension_semantics = [], scalar_prefetch = 0 : i64, scratch_operands = 1 : i64, tpu.core_type = #tpu.core_type<tc>} {
    %c0 = arith.constant 0 : index
    %c0_0 = arith.constant 0 : index
    %0 = vector.load %arg0[%c0, %c0_0] : memref<64x512xbf16, #tpu.memory_space<vmem>>, vector<64x512xbf16>
    %c0_1 = arith.constant 0 : index
    %c0_2 = arith.constant 0 : index
    %1 = vector.load %arg1[%c0_1, %c0_2] : memref<512x384xbf16, #tpu.memory_space<vmem>>, vector<512x384xbf16>
    %cst = arith.constant dense<0.000000e+00> : vector<64x384xf32>
    %2 = tpu.matmul %0, %1, %cst {dimension_numbers = #tpu.dot_dimension_numbers<[1], [0], [0], [1], [0, 0, 1, 1], [], []>} : vector<64x512xbf16>, vector<512x384xbf16>, vector<64x384xf32> -> vector<64x384xf32>
    %c0_3 = arith.constant 0 : index
    %c0_4 = arith.constant 0 : index
    %3 = vector.load %arg3[%c0_3, %c0_4] : memref<1x384xf32, #tpu.memory_space<vmem>>, vector<1x384xf32>
    %4 = vector.broadcast %3 : vector<1x384xf32> to vector<64x384xf32>
    %5 = arith.addf %2, %4 : vector<64x384xf32>
    %c0_5 = arith.constant 0 : index
    %c0_6 = arith.constant 0 : index
    %6 = vector.load %arg12[%c0_5, %c0_6] : memref<64x384xf32, #tpu.memory_space<vmem>>, vector<64x384xf32>
    tpu.vector_store %arg12[%c0_5, %c0_6], %5 {strides = array<i32>} : memref<64x384xf32, #tpu.memory_space<vmem>>, vector<64x384xf32>,
    %c0_7 = arith.constant 0 : index
    %c0_8 = arith.constant 0 : index
    %7 = vector.load %arg2[%c0_7, %c0_8] : memref<128x384xbf16, #tpu.memory_space<vmem>>, vector<128x384xbf16>
    %c0_9 = arith.constant 0 : index
    %c0_10 = arith.constant 0 : index
    %8 = vector.load %arg4[%c0_9, %c0_10] : memref<1x384xf32, #tpu.memory_space<vmem>>, vector<1x384xf32>
    %9 = vector.shape_cast %8 : vector<1x384xf32> to vector<1x384xf32>
    %10 = vector.broadcast %9 : vector<1x384xf32> to vector<8x384xf32>
    %cst_11 = arith.constant 0.000000e+00 : f32
    %11 = vector.broadcast %cst_11 : f32 to vector<8x128xf32>
    %c0_12 = arith.constant 0 : index
    %c0_13 = arith.constant 0 : index
    %12 = vector.load %arg12[%c0_12, %c0_13] : memref<64x384xf32, #tpu.memory_space<vmem>>, vector<8x384xf32>
    %13 = arith.truncf %11 : vector<8x128xf32> to vector<8x128xbf16>
    %cst_14 = arith.constant dense<0.000000e+00> : vector<8x384xf32>
    %14 = tpu.matmul %13, %7, %cst_14 {dimension_numbers = #tpu.dot_dimension_numbers<[1], [0], [0], [1], [0, 0, 1, 1], [], []>} : vector<8x128xbf16>, vector<128x384xbf16>, vector<8x384xf32> -> vector<8x384xf32>
    %15 = arith.addf %14, %10 : vector<8x384xf32>
    %16 = vector.extract_strided_slice %12 {offsets = [0, 0], sizes = [8, 128], strides = [1, 1]} : vector<8x384xf32> to vector<8x128xf32>
    %17 = vector.extract_strided_slice %15 {offsets = [0, 0], sizes = [8, 128], strides = [1, 1]} : vector<8x384xf32> to vector<8x128xf32>
    %18 = arith.addf %16, %17 : vector<8x128xf32>
    %19 = arith.negf %18 : vector<8x128xf32>
    %20 = math.exp %19 : vector<8x128xf32>
    %cst_15 = arith.constant 1.000000e+00 : f32
    %21 = vector.broadcast %cst_15 : f32 to vector<8x128xf32>
    %22 = arith.addf %21, %20 : vector<8x128xf32>
    %23 = arith.divf %21, %22 : vector<8x128xf32>
    %24 = vector.extract_strided_slice %12 {offsets = [0, 128], sizes = [8, 128], strides = [1, 1]} : vector<8x384xf32> to vector<8x128xf32>
    %25 = vector.extract_strided_slice %15 {offsets = [0, 128], sizes = [8, 128], strides = [1, 1]} : vector<8x384xf32> to vector<8x128xf32>
    %26 = arith.addf %24, %25 : vector<8x128xf32>
    %27 = arith.negf %26 : vector<8x128xf32>
    %28 = math.exp %27 : vector<8x128xf32>
    %cst_16 = arith.constant 1.000000e+00 : f32
    %29 = vector.broadcast %cst_16 : f32 to vector<8x128xf32>
    %30 = arith.addf %29, %28 : vector<8x128xf32>
    %31 = arith.divf %29, %30 : vector<8x128xf32>
    %32 = vector.extract_strided_slice %12 {offsets = [0, 256], sizes = [8, 128], strides = [1, 1]} : vector<8x384xf32> to vector<8x128xf32>
    %33 = vector.extract_strided_slice %15 {offsets = [0, 256], sizes = [8, 128], strides = [1, 1]} : vector<8x384xf32> to vector<8x128xf32>
    %34 = arith.mulf %23, %33 : vector<8x128xf32>
    %35 = arith.addf %32, %34 : vector<8x128xf32>
    %36 = math.tanh %35 : vector<8x128xf32>
    %cst_17 = arith.constant 1.000000e+00 : f32
    %37 = vector.broadcast %cst_17 : f32 to vector<8x128xf32>
    %38 = arith.subf %37, %31 : vector<8x128xf32>
    %39 = arith.mulf %38, %36 : vector<8x128xf32>
    %40 = arith.mulf %31, %11 : vector<8x128xf32>
    %41 = arith.addf %39, %40 : vector<8x128xf32>
    %c8 = arith.constant 8 : index
    %c0_18 = arith.constant 0 : index
    %42 = vector.load %arg12[%c8, %c0_18] : memref<64x384xf32, #tpu.memory_space<vmem>>, vector<8x384xf32>
    %43 = arith.truncf %41 : vector<8x128xf32> to vector<8x128xbf16>
    %cst_19 = arith.constant dense<0.000000e+00> : vector<8x384xf32>
    %44 = tpu.matmul %43, %7, %cst_19 {dimension_numbers = #tpu.dot_dimension_numbers<[1], [0], [0], [1], [0, 0, 1, 1], [], []>} : vector<8x128xbf16>, vector<128x384xbf16>, vector<8x384xf32> -> vector<8x384xf32>
    %45 = arith.addf %44, %10 : vector<8x384xf32>
    %46 = vector.extract_strided_slice %42 {offsets = [0, 0], sizes = [8, 128], strides = [1, 1]} : vector<8x384xf32> to vector<8x128xf32>
    %47 = vector.extract_strided_slice %45 {offsets = [0, 0], sizes = [8, 128], strides = [1, 1]} : vector<8x384xf32> to vector<8x128xf32>
    %48 = arith.addf %46, %47 : vector<8x128xf32>
    %49 = arith.negf %48 : vector<8x128xf32>
    %50 = math.exp %49 : vector<8x128xf32>
    %cst_20 = arith.constant 1.000000e+00 : f32
    %51 = vector.broadcast %cst_20 : f32 to vector<8x128xf32>
    %52 = arith.addf %51, %50 : vector<8x128xf32>
    %53 = arith.divf %51, %52 : vector<8x128xf32>
    %54 = vector.extract_strided_slice %42 {offsets = [0, 128], sizes = [8, 128], strides = [1, 1]} : vector<8x384xf32> to vector<8x128xf32>
    %55 = vector.extract_strided_slice %45 {offsets = [0, 128], sizes = [8, 128], strides = [1, 1]} : vector<8x384xf32> to vector<8x128xf32>
    %56 = arith.addf %54, %55 : vector<8x128xf32>
    %57 = arith.negf %56 : vector<8x128xf32>
    %58 = math.exp %57 : vector<8x128xf32>
    %cst_21 = arith.constant 1.000000e+00 : f32
    %59 = vector.broadcast %cst_21 : f32 to vector<8x128xf32>
    %60 = arith.addf %59, %58 : vector<8x128xf32>
    %61 = arith.divf %59, %60 : vector<8x128xf32>
    %62 = vector.extract_strided_slice %42 {offsets = [0, 256], sizes = [8, 128], strides = [1, 1]} : vector<8x384xf32> to vector<8x128xf32>
    %63 = vector.extract_strided_slice %45 {offsets = [0, 256], sizes = [8, 128], strides = [1, 1]} : vector<8x384xf32> to vector<8x128xf32>
    %64 = arith.mulf %53, %63 : vector<8x128xf32>
    %65 = arith.addf %62, %64 : vector<8x128xf32>
    %66 = math.tanh %65 : vector<8x128xf32>
    %cst_22 = arith.constant 1.000000e+00 : f32
    %67 = vector.broadcast %cst_22 : f32 to vector<8x128xf32>
    %68 = arith.subf %67, %61 : vector<8x128xf32>
    %69 = arith.mulf %68, %66 : vector<8x128xf32>
    %70 = arith.mulf %61, %41 : vector<8x128xf32>
    %71 = arith.addf %69, %70 : vector<8x128xf32>
    %c16 = arith.constant 16 : index
    %c0_23 = arith.constant 0 : index
    %72 = vector.load %arg12[%c16, %c0_23] : memref<64x384xf32, #tpu.memory_space<vmem>>, vector<8x384xf32>
    %73 = arith.truncf %71 : vector<8x128xf32> to vector<8x128xbf16>
    %cst_24 = arith.constant dense<0.000000e+00> : vector<8x384xf32>
    %74 = tpu.matmul %73, %7, %cst_24 {dimension_numbers = #tpu.dot_dimension_numbers<[1], [0], [0], [1], [0, 0, 1, 1], [], []>} : vector<8x128xbf16>, vector<128x384xbf16>, vector<8x384xf32> -> vector<8x384xf32>
    %75 = arith.addf %74, %10 : vector<8x384xf32>
    %76 = vector.extract_strided_slice %72 {offsets = [0, 0], sizes = [8, 128], strides = [1, 1]} : vector<8x384xf32> to vector<8x128xf32>
    %77 = vector.extract_strided_slice %75 {offsets = [0, 0], sizes = [8, 128], strides = [1, 1]} : vector<8x384xf32> to vector<8x128xf32>
    %78 = arith.addf %76, %77 : vector<8x128xf32>
    %79 = arith.negf %78 : vector<8x128xf32>
    %80 = math.exp %79 : vector<8x128xf32>
    %cst_25 = arith.constant 1.000000e+00 : f32
    %81 = vector.broadcast %cst_25 : f32 to vector<8x128xf32>
    %82 = arith.addf %81, %80 : vector<8x128xf32>
    %83 = arith.divf %81, %82 : vector<8x128xf32>
    %84 = vector.extract_strided_slice %72 {offsets = [0, 128], sizes = [8, 128], strides = [1, 1]} : vector<8x384xf32> to vector<8x128xf32>
    %85 = vector.extract_strided_slice %75 {offsets = [0, 128], sizes = [8, 128], strides = [1, 1]} : vector<8x384xf32> to vector<8x128xf32>
    %86 = arith.addf %84, %85 : vector<8x128xf32>
    %87 = arith.negf %86 : vector<8x128xf32>
    %88 = math.exp %87 : vector<8x128xf32>
    %cst_26 = arith.constant 1.000000e+00 : f32
    %89 = vector.broadcast %cst_26 : f32 to vector<8x128xf32>
    %90 = arith.addf %89, %88 : vector<8x128xf32>
    %91 = arith.divf %89, %90 : vector<8x128xf32>
    %92 = vector.extract_strided_slice %72 {offsets = [0, 256], sizes = [8, 128], strides = [1, 1]} : vector<8x384xf32> to vector<8x128xf32>
    %93 = vector.extract_strided_slice %75 {offsets = [0, 256], sizes = [8, 128], strides = [1, 1]} : vector<8x384xf32> to vector<8x128xf32>
    %94 = arith.mulf %83, %93 : vector<8x128xf32>
    %95 = arith.addf %92, %94 : vector<8x128xf32>
    %96 = math.tanh %95 : vector<8x128xf32>
    %cst_27 = arith.constant 1.000000e+00 : f32
    %97 = vector.broadcast %cst_27 : f32 to vector<8x128xf32>
    %98 = arith.subf %97, %91 : vector<8x128xf32>
    %99 = arith.mulf %98, %96 : vector<8x128xf32>
    %100 = arith.mulf %91, %71 : vector<8x128xf32>
    %101 = arith.addf %99, %100 : vector<8x128xf32>
    %c24 = arith.constant 24 : index
    %c0_28 = arith.constant 0 : index
    %102 = vector.load %arg12[%c24, %c0_28] : memref<64x384xf32, #tpu.memory_space<vmem>>, vector<8x384xf32>
    %103 = arith.truncf %101 : vector<8x128xf32> to vector<8x128xbf16>
    %cst_29 = arith.constant dense<0.000000e+00> : vector<8x384xf32>
    %104 = tpu.matmul %103, %7, %cst_29 {dimension_numbers = #tpu.dot_dimension_numbers<[1], [0], [0], [1], [0, 0, 1, 1], [], []>} : vector<8x128xbf16>, vector<128x384xbf16>, vector<8x384xf32> -> vector<8x384xf32>
    %105 = arith.addf %104, %10 : vector<8x384xf32>
    %106 = vector.extract_strided_slice %102 {offsets = [0, 0], sizes = [8, 128], strides = [1, 1]} : vector<8x384xf32> to vector<8x128xf32>
    %107 = vector.extract_strided_slice %105 {offsets = [0, 0], sizes = [8, 128], strides = [1, 1]} : vector<8x384xf32> to vector<8x128xf32>
    %108 = arith.addf %106, %107 : vector<8x128xf32>
    %109 = arith.negf %108 : vector<8x128xf32>
    %110 = math.exp %109 : vector<8x128xf32>
    %cst_30 = arith.constant 1.000000e+00 : f32
    %111 = vector.broadcast %cst_30 : f32 to vector<8x128xf32>
    %112 = arith.addf %111, %110 : vector<8x128xf32>
    %113 = arith.divf %111, %112 : vector<8x128xf32>
    %114 = vector.extract_strided_slice %102 {offsets = [0, 128], sizes = [8, 128], strides = [1, 1]} : vector<8x384xf32> to vector<8x128xf32>
    %115 = vector.extract_strided_slice %105 {offsets = [0, 128], sizes = [8, 128], strides = [1, 1]} : vector<8x384xf32> to vector<8x128xf32>
    %116 = arith.addf %114, %115 : vector<8x128xf32>
    %117 = arith.negf %116 : vector<8x128xf32>
    %118 = math.exp %117 : vector<8x128xf32>
    %cst_31 = arith.constant 1.000000e+00 : f32
    %119 = vector.broadcast %cst_31 : f32 to vector<8x128xf32>
    %120 = arith.addf %119, %118 : vector<8x128xf32>
    %121 = arith.divf %119, %120 : vector<8x128xf32>
    %122 = vector.extract_strided_slice %102 {offsets = [0, 256], sizes = [8, 128], strides = [1, 1]} : vector<8x384xf32> to vector<8x128xf32>
    %123 = vector.extract_strided_slice %105 {offsets = [0, 256], sizes = [8, 128], strides = [1, 1]} : vector<8x384xf32> to vector<8x128xf32>
    %124 = arith.mulf %113, %123 : vector<8x128xf32>
    %125 = arith.addf %122, %124 : vector<8x128xf32>
    %126 = math.tanh %125 : vector<8x128xf32>
    %cst_32 = arith.constant 1.000000e+00 : f32
    %127 = vector.broadcast %cst_32 : f32 to vector<8x128xf32>
    %128 = arith.subf %127, %121 : vector<8x128xf32>
    %129 = arith.mulf %128, %126 : vector<8x128xf32>
    %130 = arith.mulf %121, %101 : vector<8x128xf32>
    %131 = arith.addf %129, %130 : vector<8x128xf32>
    %c32 = arith.constant 32 : index
    %c0_33 = arith.constant 0 : index
    %132 = vector.load %arg12[%c32, %c0_33] : memref<64x384xf32, #tpu.memory_space<vmem>>, vector<8x384xf32>
    %133 = arith.truncf %131 : vector<8x128xf32> to vector<8x128xbf16>
    %cst_34 = arith.constant dense<0.000000e+00> : vector<8x384xf32>
    %134 = tpu.matmul %133, %7, %cst_34 {dimension_numbers = #tpu.dot_dimension_numbers<[1], [0], [0], [1], [0, 0, 1, 1], [], []>} : vector<8x128xbf16>, vector<128x384xbf16>, vector<8x384xf32> -> vector<8x384xf32>
    %135 = arith.addf %134, %10 : vector<8x384xf32>
    %136 = vector.extract_strided_slice %132 {offsets = [0, 0], sizes = [8, 128], strides = [1, 1]} : vector<8x384xf32> to vector<8x128xf32>
    %137 = vector.extract_strided_slice %135 {offsets = [0, 0], sizes = [8, 128], strides = [1, 1]} : vector<8x384xf32> to vector<8x128xf32>
    %138 = arith.addf %136, %137 : vector<8x128xf32>
    %139 = arith.negf %138 : vector<8x128xf32>
    %140 = math.exp %139 : vector<8x128xf32>
    %cst_35 = arith.constant 1.000000e+00 : f32
    %141 = vector.broadcast %cst_35 : f32 to vector<8x128xf32>
    %142 = arith.addf %141, %140 : vector<8x128xf32>
    %143 = arith.divf %141, %142 : vector<8x128xf32>
    %144 = vector.extract_strided_slice %132 {offsets = [0, 128], sizes = [8, 128], strides = [1, 1]} : vector<8x384xf32> to vector<8x128xf32>
    %145 = vector.extract_strided_slice %135 {offsets = [0, 128], sizes = [8, 128], strides = [1, 1]} : vector<8x384xf32> to vector<8x128xf32>
    %146 = arith.addf %144, %145 : vector<8x128xf32>
    %147 = arith.negf %146 : vector<8x128xf32>
    %148 = math.exp %147 : vector<8x128xf32>
    %cst_36 = arith.constant 1.000000e+00 : f32
    %149 = vector.broadcast %cst_36 : f32 to vector<8x128xf32>
    %150 = arith.addf %149, %148 : vector<8x128xf32>
    %151 = arith.divf %149, %150 : vector<8x128xf32>
    %152 = vector.extract_strided_slice %132 {offsets = [0, 256], sizes = [8, 128], strides = [1, 1]} : vector<8x384xf32> to vector<8x128xf32>
    %153 = vector.extract_strided_slice %135 {offsets = [0, 256], sizes = [8, 128], strides = [1, 1]} : vector<8x384xf32> to vector<8x128xf32>
    %154 = arith.mulf %143, %153 : vector<8x128xf32>
    %155 = arith.addf %152, %154 : vector<8x128xf32>
    %156 = math.tanh %155 : vector<8x128xf32>
    %cst_37 = arith.constant 1.000000e+00 : f32
    %157 = vector.broadcast %cst_37 : f32 to vector<8x128xf32>
    %158 = arith.subf %157, %151 : vector<8x128xf32>
    %159 = arith.mulf %158, %156 : vector<8x128xf32>
    %160 = arith.mulf %151, %131 : vector<8x128xf32>
    %161 = arith.addf %159, %160 : vector<8x128xf32>
    %c40 = arith.constant 40 : index
    %c0_38 = arith.constant 0 : index
    %162 = vector.load %arg12[%c40, %c0_38] : memref<64x384xf32, #tpu.memory_space<vmem>>, vector<8x384xf32>
    %163 = arith.truncf %161 : vector<8x128xf32> to vector<8x128xbf16>
    %cst_39 = arith.constant dense<0.000000e+00> : vector<8x384xf32>
    %164 = tpu.matmul %163, %7, %cst_39 {dimension_numbers = #tpu.dot_dimension_numbers<[1], [0], [0], [1], [0, 0, 1, 1], [], []>} : vector<8x128xbf16>, vector<128x384xbf16>, vector<8x384xf32> -> vector<8x384xf32>
    %165 = arith.addf %164, %10 : vector<8x384xf32>
    %166 = vector.extract_strided_slice %162 {offsets = [0, 0], sizes = [8, 128], strides = [1, 1]} : vector<8x384xf32> to vector<8x128xf32>
    %167 = vector.extract_strided_slice %165 {offsets = [0, 0], sizes = [8, 128], strides = [1, 1]} : vector<8x384xf32> to vector<8x128xf32>
    %168 = arith.addf %166, %167 : vector<8x128xf32>
    %169 = arith.negf %168 : vector<8x128xf32>
    %170 = math.exp %169 : vector<8x128xf32>
    %cst_40 = arith.constant 1.000000e+00 : f32
    %171 = vector.broadcast %cst_40 : f32 to vector<8x128xf32>
    %172 = arith.addf %171, %170 : vector<8x128xf32>
    %173 = arith.divf %171, %172 : vector<8x128xf32>
    %174 = vector.extract_strided_slice %162 {offsets = [0, 128], sizes = [8, 128], strides = [1, 1]} : vector<8x384xf32> to vector<8x128xf32>
    %175 = vector.extract_strided_slice %165 {offsets = [0, 128], sizes = [8, 128], strides = [1, 1]} : vector<8x384xf32> to vector<8x128xf32>
    %176 = arith.addf %174, %175 : vector<8x128xf32>
    %177 = arith.negf %176 : vector<8x128xf32>
    %178 = math.exp %177 : vector<8x128xf32>
    %cst_41 = arith.constant 1.000000e+00 : f32
    %179 = vector.broadcast %cst_41 : f32 to vector<8x128xf32>
    %180 = arith.addf %179, %178 : vector<8x128xf32>
    %181 = arith.divf %179, %180 : vector<8x128xf32>
    %182 = vector.extract_strided_slice %162 {offsets = [0, 256], sizes = [8, 128], strides = [1, 1]} : vector<8x384xf32> to vector<8x128xf32>
    %183 = vector.extract_strided_slice %165 {offsets = [0, 256], sizes = [8, 128], strides = [1, 1]} : vector<8x384xf32> to vector<8x128xf32>
    %184 = arith.mulf %173, %183 : vector<8x128xf32>
    %185 = arith.addf %182, %184 : vector<8x128xf32>
    %186 = math.tanh %185 : vector<8x128xf32>
    %cst_42 = arith.constant 1.000000e+00 : f32
    %187 = vector.broadcast %cst_42 : f32 to vector<8x128xf32>
    %188 = arith.subf %187, %181 : vector<8x128xf32>
    %189 = arith.mulf %188, %186 : vector<8x128xf32>
    %190 = arith.mulf %181, %161 : vector<8x128xf32>
    %191 = arith.addf %189, %190 : vector<8x128xf32>
    %c48 = arith.constant 48 : index
    %c0_43 = arith.constant 0 : index
    %192 = vector.load %arg12[%c48, %c0_43] : memref<64x384xf32, #tpu.memory_space<vmem>>, vector<8x384xf32>
    %193 = arith.truncf %191 : vector<8x128xf32> to vector<8x128xbf16>
    %cst_44 = arith.constant dense<0.000000e+00> : vector<8x384xf32>
    %194 = tpu.matmul %193, %7, %cst_44 {dimension_numbers = #tpu.dot_dimension_numbers<[1], [0], [0], [1], [0, 0, 1, 1], [], []>} : vector<8x128xbf16>, vector<128x384xbf16>, vector<8x384xf32> -> vector<8x384xf32>
    %195 = arith.addf %194, %10 : vector<8x384xf32>
    %196 = vector.extract_strided_slice %192 {offsets = [0, 0], sizes = [8, 128], strides = [1, 1]} : vector<8x384xf32> to vector<8x128xf32>
    %197 = vector.extract_strided_slice %195 {offsets = [0, 0], sizes = [8, 128], strides = [1, 1]} : vector<8x384xf32> to vector<8x128xf32>
    %198 = arith.addf %196, %197 : vector<8x128xf32>
    %199 = arith.negf %198 : vector<8x128xf32>
    %200 = math.exp %199 : vector<8x128xf32>
    %cst_45 = arith.constant 1.000000e+00 : f32
    %201 = vector.broadcast %cst_45 : f32 to vector<8x128xf32>
    %202 = arith.addf %201, %200 : vector<8x128xf32>
    %203 = arith.divf %201, %202 : vector<8x128xf32>
    %204 = vector.extract_strided_slice %192 {offsets = [0, 128], sizes = [8, 128], strides = [1, 1]} : vector<8x384xf32> to vector<8x128xf32>
    %205 = vector.extract_strided_slice %195 {offsets = [0, 128], sizes = [8, 128], strides = [1, 1]} : vector<8x384xf32> to vector<8x128xf32>
    %206 = arith.addf %204, %205 : vector<8x128xf32>
    %207 = arith.negf %206 : vector<8x128xf32>
    %208 = math.exp %207 : vector<8x128xf32>
    %cst_46 = arith.constant 1.000000e+00 : f32
    %209 = vector.broadcast %cst_46 : f32 to vector<8x128xf32>
    %210 = arith.addf %209, %208 : vector<8x128xf32>
    %211 = arith.divf %209, %210 : vector<8x128xf32>
    %212 = vector.extract_strided_slice %192 {offsets = [0, 256], sizes = [8, 128], strides = [1, 1]} : vector<8x384xf32> to vector<8x128xf32>
    %213 = vector.extract_strided_slice %195 {offsets = [0, 256], sizes = [8, 128], strides = [1, 1]} : vector<8x384xf32> to vector<8x128xf32>
    %214 = arith.mulf %203, %213 : vector<8x128xf32>
    %215 = arith.addf %212, %214 : vector<8x128xf32>
    %216 = math.tanh %215 : vector<8x128xf32>
    %cst_47 = arith.constant 1.000000e+00 : f32
    %217 = vector.broadcast %cst_47 : f32 to vector<8x128xf32>
    %218 = arith.subf %217, %211 : vector<8x128xf32>
    %219 = arith.mulf %218, %216 : vector<8x128xf32>
    %220 = arith.mulf %211, %191 : vector<8x128xf32>
    %221 = arith.addf %219, %220 : vector<8x128xf32>
    %c56 = arith.constant 56 : index
    %c0_48 = arith.constant 0 : index
    %222 = vector.load %arg12[%c56, %c0_48] : memref<64x384xf32, #tpu.memory_space<vmem>>, vector<8x384xf32>
    %223 = arith.truncf %221 : vector<8x128xf32> to vector<8x128xbf16>
    %cst_49 = arith.constant dense<0.000000e+00> : vector<8x384xf32>
    %224 = tpu.matmul %223, %7, %cst_49 {dimension_numbers = #tpu.dot_dimension_numbers<[1], [0], [0], [1], [0, 0, 1, 1], [], []>} : vector<8x128xbf16>, vector<128x384xbf16>, vector<8x384xf32> -> vector<8x384xf32>
    %225 = arith.addf %224, %10 : vector<8x384xf32>
    %226 = vector.extract_strided_slice %222 {offsets = [0, 0], sizes = [8, 128], strides = [1, 1]} : vector<8x384xf32> to vector<8x128xf32>
    %227 = vector.extract_strided_slice %225 {offsets = [0, 0], sizes = [8, 128], strides = [1, 1]} : vector<8x384xf32> to vector<8x128xf32>
    %228 = arith.addf %226, %227 : vector<8x128xf32>
    %229 = arith.negf %228 : vector<8x128xf32>
    %230 = math.exp %229 : vector<8x128xf32>
    %cst_50 = arith.constant 1.000000e+00 : f32
    %231 = vector.broadcast %cst_50 : f32 to vector<8x128xf32>
    %232 = arith.addf %231, %230 : vector<8x128xf32>
    %233 = arith.divf %231, %232 : vector<8x128xf32>
    %234 = vector.extract_strided_slice %222 {offsets = [0, 128], sizes = [8, 128], strides = [1, 1]} : vector<8x384xf32> to vector<8x128xf32>
    %235 = vector.extract_strided_slice %225 {offsets = [0, 128], sizes = [8, 128], strides = [1, 1]} : vector<8x384xf32> to vector<8x128xf32>
    %236 = arith.addf %234, %235 : vector<8x128xf32>
    %237 = arith.negf %236 : vector<8x128xf32>
    %238 = math.exp %237 : vector<8x128xf32>
    %cst_51 = arith.constant 1.000000e+00 : f32
    %239 = vector.broadcast %cst_51 : f32 to vector<8x128xf32>
    %240 = arith.addf %239, %238 : vector<8x128xf32>
    %241 = arith.divf %239, %240 : vector<8x128xf32>
    %242 = vector.extract_strided_slice %222 {offsets = [0, 256], sizes = [8, 128], strides = [1, 1]} : vector<8x384xf32> to vector<8x128xf32>
    %243 = vector.extract_strided_slice %225 {offsets = [0, 256], sizes = [8, 128], strides = [1, 1]} : vector<8x384xf32> to vector<8x128xf32>
    %244 = arith.mulf %233, %243 : vector<8x128xf32>
    %245 = arith.addf %242, %244 : vector<8x128xf32>
    %246 = math.tanh %245 : vector<8x128xf32>
    %cst_52 = arith.constant 1.000000e+00 : f32
    %247 = vector.broadcast %cst_52 : f32 to vector<8x128xf32>
    %248 = arith.subf %247, %241 : vector<8x128xf32>
    %249 = arith.mulf %248, %246 : vector<8x128xf32>
    %250 = arith.mulf %241, %221 : vector<8x128xf32>
    %251 = arith.addf %249, %250 : vector<8x128xf32>
    %252 = tpu.concatenate %251, %251 in 1 : vector<8x128xf32>, vector<8x128xf32> -> vector<8x256xf32>
    %253 = arith.truncf %252 : vector<8x256xf32> to vector<8x256xbf16>
    %c0_53 = arith.constant 0 : index
    %c0_54 = arith.constant 0 : index
    %c0_55 = arith.constant 0 : index
    %254 = vector.load %arg5[%c0_53, %c0_54, %c0_55] : memref<2x256x256xbf16, #tpu.memory_space<vmem>>, vector<1x256x256xbf16>
    %255 = vector.shape_cast %254 : vector<1x256x256xbf16> to vector<256x256xbf16>
    %cst_56 = arith.constant dense<0.000000e+00> : vector<8x256xf32>
    %256 = tpu.matmul %253, %255, %cst_56 {dimension_numbers = #tpu.dot_dimension_numbers<[1], [0], [0], [1], [0, 0, 1, 1], [], []>} : vector<8x256xbf16>, vector<256x256xbf16>, vector<8x256xf32> -> vector<8x256xf32>
    %c0_57 = arith.constant 0 : index
    %c0_58 = arith.constant 0 : index
    %c0_59 = arith.constant 0 : index
    %257 = vector.load %arg6[%c0_57, %c0_58, %c0_59] : memref<2x1x256xf32, #tpu.memory_space<vmem>>, vector<1x1x256xf32>
    %258 = vector.shape_cast %257 : vector<1x1x256xf32> to vector<1x256xf32>
    %259 = vector.broadcast %258 : vector<1x256xf32> to vector<8x256xf32>
    %260 = arith.addf %256, %259 : vector<8x256xf32>
    %cst_60 = arith.constant 0.000000e+00 : f32
    %261 = vector.broadcast %cst_60 : f32 to vector<8x256xf32>
    %262 = arith.maximumf %260, %261 : vector<8x256xf32>
    %263 = arith.truncf %262 : vector<8x256xf32> to vector<8x256xbf16>
    %c0_61 = arith.constant 0 : index
    %c0_62 = arith.constant 0 : index
    %c0_63 = arith.constant 0 : index
    %264 = vector.load %arg7[%c0_61, %c0_62, %c0_63] : memref<2x256x256xbf16, #tpu.memory_space<vmem>>, vector<1x256x256xbf16>
    %265 = vector.shape_cast %264 : vector<1x256x256xbf16> to vector<256x256xbf16>
    %cst_64 = arith.constant dense<0.000000e+00> : vector<8x256xf32>
    %266 = tpu.matmul %263, %265, %cst_64 {dimension_numbers = #tpu.dot_dimension_numbers<[1], [0], [0], [1], [0, 0, 1, 1], [], []>} : vector<8x256xbf16>, vector<256x256xbf16>, vector<8x256xf32> -> vector<8x256xf32>
    %c0_65 = arith.constant 0 : index
    %c0_66 = arith.constant 0 : index
    %c0_67 = arith.constant 0 : index
    %267 = vector.load %arg8[%c0_65, %c0_66, %c0_67] : memref<2x1x256xf32, #tpu.memory_space<vmem>>, vector<1x1x256xf32>
    %268 = vector.shape_cast %267 : vector<1x1x256xf32> to vector<1x256xf32>
    %269 = vector.broadcast %268 : vector<1x256xf32> to vector<8x256xf32>
    %270 = arith.addf %266, %269 : vector<8x256xf32>
    %cst_68 = arith.constant 0.000000e+00 : f32
    %271 = vector.broadcast %cst_68 : f32 to vector<8x256xf32>
    %272 = arith.maximumf %270, %271 : vector<8x256xf32>
    %273 = arith.addf %272, %252 : vector<8x256xf32>
    %274 = arith.truncf %273 : vector<8x256xf32> to vector<8x256xbf16>
    %c1 = arith.constant 1 : index
    %c0_69 = arith.constant 0 : index
    %c0_70 = arith.constant 0 : index
    %275 = vector.load %arg5[%c1, %c0_69, %c0_70] : memref<2x256x256xbf16, #tpu.memory_space<vmem>>, vector<1x256x256xbf16>
    %276 = vector.shape_cast %275 : vector<1x256x256xbf16> to vector<256x256xbf16>
    %cst_71 = arith.constant dense<0.000000e+00> : vector<8x256xf32>
    %277 = tpu.matmul %274, %276, %cst_71 {dimension_numbers = #tpu.dot_dimension_numbers<[1], [0], [0], [1], [0, 0, 1, 1], [], []>} : vector<8x256xbf16>, vector<256x256xbf16>, vector<8x256xf32> -> vector<8x256xf32>
    %c1_72 = arith.constant 1 : index
    %c0_73 = arith.constant 0 : index
    %c0_74 = arith.constant 0 : index
    %278 = vector.load %arg6[%c1_72, %c0_73, %c0_74] : memref<2x1x256xf32, #tpu.memory_space<vmem>>, vector<1x1x256xf32>
    %279 = vector.shape_cast %278 : vector<1x1x256xf32> to vector<1x256xf32>
    %280 = vector.broadcast %279 : vector<1x256xf32> to vector<8x256xf32>
    %281 = arith.addf %277, %280 : vector<8x256xf32>
    %cst_75 = arith.constant 0.000000e+00 : f32
    %282 = vector.broadcast %cst_75 : f32 to vector<8x256xf32>
    %283 = arith.maximumf %281, %282 : vector<8x256xf32>
    %284 = arith.truncf %283 : vector<8x256xf32> to vector<8x256xbf16>
    %c1_76 = arith.constant 1 : index
    %c0_77 = arith.constant 0 : index
    %c0_78 = arith.constant 0 : index
    %285 = vector.load %arg7[%c1_76, %c0_77, %c0_78] : memref<2x256x256xbf16, #tpu.memory_space<vmem>>, vector<1x256x256xbf16>
    %286 = vector.shape_cast %285 : vector<1x256x256xbf16> to vector<256x256xbf16>
    %cst_79 = arith.constant dense<0.000000e+00> : vector<8x256xf32>
    %287 = tpu.matmul %284, %286, %cst_79 {dimension_numbers = #tpu.dot_dimension_numbers<[1], [0], [0], [1], [0, 0, 1, 1], [], []>} : vector<8x256xbf16>, vector<256x256xbf16>, vector<8x256xf32> -> vector<8x256xf32>
    %c1_80 = arith.constant 1 : index
    %c0_81 = arith.constant 0 : index
    %c0_82 = arith.constant 0 : index
    %288 = vector.load %arg8[%c1_80, %c0_81, %c0_82] : memref<2x1x256xf32, #tpu.memory_space<vmem>>, vector<1x1x256xf32>
    %289 = vector.shape_cast %288 : vector<1x1x256xf32> to vector<1x256xf32>
    %290 = vector.broadcast %289 : vector<1x256xf32> to vector<8x256xf32>
    %291 = arith.addf %287, %290 : vector<8x256xf32>
    %cst_83 = arith.constant 0.000000e+00 : f32
    %292 = vector.broadcast %cst_83 : f32 to vector<8x256xf32>
    %293 = arith.maximumf %291, %292 : vector<8x256xf32>
    %294 = arith.addf %293, %273 : vector<8x256xf32>
    %295 = arith.truncf %294 : vector<8x256xf32> to vector<8x256xbf16>
    %c0_84 = arith.constant 0 : index
    %c0_85 = arith.constant 0 : index
    %296 = vector.load %arg9[%c0_84, %c0_85] : memref<256x128xbf16, #tpu.memory_space<vmem>>, vector<256x128xbf16>
    %cst_86 = arith.constant dense<0.000000e+00> : vector<8x128xf32>
    %297 = tpu.matmul %295, %296, %cst_86 {dimension_numbers = #tpu.dot_dimension_numbers<[1], [0], [0], [1], [0, 0, 1, 1], [], []>} : vector<8x256xbf16>, vector<256x128xbf16>, vector<8x128xf32> -> vector<8x128xf32>
    %c0_87 = arith.constant 0 : index
    %c0_88 = arith.constant 0 : index
    %298 = vector.load %arg10[%c0_87, %c0_88] : memref<1x128xf32, #tpu.memory_space<vmem>>, vector<1x128xf32>
    %299 = vector.broadcast %298 : vector<1x128xf32> to vector<8x128xf32>
    %300 = arith.addf %297, %299 : vector<8x128xf32>
    %c0_89 = arith.constant 0 : index
    %c0_90 = arith.constant 0 : index
    %301 = vector.load %arg11[%c0_89, %c0_90] : memref<8x128xf32, #tpu.memory_space<vmem>>, vector<8x128xf32>
    tpu.vector_store %arg11[%c0_89, %c0_90], %300 {strides = array<i32>} : memref<8x128xf32, #tpu.memory_space<vmem>>, vector<8x128xf32>,
    return
  }
}

</mosaic_0001>

<llo_original>
// kernel: tpu_custom_call.1
$region0: #{tpu_custom_call.1}
  #allocation0 [shape = 'u32[]', space=smem, size = 0x4, offset = 0x4, fixed_abs, tag = 'smem constant byte address 0x4 - core index']
  #allocation1 [shape = 'u32[144,128]{1,0:T(1,128)}', space=vmem, size = 0x12000, scoped, tag = 'internal scratch']
  #allocation2 [shape = 'f32[64,384]{1,0:T(8,128)}', space=vmem, size = 0x18000, scoped, tag = 'scratch operand']
  %s0 = inlined_call_operand.hbm [shape: bf16[64,512], index: 0, kind: input, shape index: {}]
  %s1 = inlined_call_operand.hbm [shape: bf16[512,384], index: 1, kind: input, shape index: {}]
  %s2 = inlined_call_operand.hbm [shape: bf16[128,384], index: 2, kind: input, shape index: {}]
  %s3 = inlined_call_operand.vmem [shape: f32[1,384], index: 3, kind: input, shape index: {}]
  %s4 = inlined_call_operand.vmem [shape: f32[1,384], index: 4, kind: input, shape index: {}]
  %s5 = inlined_call_operand.hbm [shape: bf16[2,256,256], index: 5, kind: input, shape index: {}]
  %s6 = inlined_call_operand.vmem [shape: f32[2,1,256], index: 6, kind: input, shape index: {}]
  %s7 = inlined_call_operand.hbm [shape: bf16[2,256,256], index: 7, kind: input, shape index: {}]
  %s8 = inlined_call_operand.vmem [shape: f32[2,1,256], index: 8, kind: input, shape index: {}]
  %s9 = inlined_call_operand.hbm [shape: bf16[256,128], index: 9, kind: input, shape index: {}]
  %s10 = inlined_call_operand.vmem [shape: f32[1,128], index: 10, kind: input, shape index: {}]
  %s11 = inlined_call_operand.hbm [shape: f32[8,128], index: 11, kind: output, shape index: {}]
  %s12 = sld [smem:[#allocation0]]
  $region78: #{tpu_custom_call.1} parent=0
    _
  %s14 = ssub.s32 1, %s12
  %s15 = scalar_select 0, %s14, %s12
  $region1: #{tpu_custom_call.1} parent=0
    #allocation3 [shape = 'u8[65536]{0}', space=vmem, size = 0x10000, scoped, tag = 'input window, operand 0, single buffered']
    #allocation4 [shape = 's32[1]{0}', space=sflag, size = 0x4, scoped, tag = 'scoped memory for tpu_custom_call.1']
    #allocation5 [shape = 's32[1]{0}', space=sflag, size = 0x4, scoped, tag = 'scoped memory for tpu_custom_call.1']
    #allocation6 [shape = 'u8[393216]{0}', space=vmem, size = 0x60000, scoped, tag = 'input window, operand 1, single buffered']
    #allocation7 [shape = 's32[1]{0}', space=sflag, size = 0x4, scoped, tag = 'scoped memory for tpu_custom_call.1']
    #allocation8 [shape = 'u8[98304]{0}', space=vmem, size = 0x18000, scoped, tag = 'input window, operand 2, single buffered']
    #allocation9 [shape = 'u8[262144]{0}', space=vmem, size = 0x40000, scoped, tag = 'input window, operand 5, single buffered']
    #allocation10 [shape = 's32[1]{0}', space=sflag, size = 0x4, scoped, tag = 'scoped memory for tpu_custom_call.1']
    #allocation11 [shape = 'u8[262144]{0}', space=vmem, size = 0x40000, scoped, tag = 'input window, operand 7, single buffered']
    #allocation12 [shape = 'u8[65536]{0}', space=vmem, size = 0x10000, scoped, tag = 'input window, operand 9, single buffered']
    #allocation13 [shape = 's32[1]{0}', space=sflag, size = 0x4, scoped, tag = 'scoped memory for tpu_custom_call.1']
    #allocation14 [shape = 'u8[4096]{0}', space=vmem, size = 0x1000, scoped, tag = 'output window, operand 0, single buffered']
    %16 = vsyncpa [#allocation4], 0
    %17 = vsyncpa [#allocation7], 0
    %18 = vsyncpa [#allocation10], 0
    %19 = vsyncpa [#allocation13], 0
    %20 = vsyncpa [#allocation5], 0
    // Predicated region
    $region2: #{tpu_custom_call.1} parent=1 // pred_check
      _
    $region3: #{tpu_custom_call.1} parent=1 // pred_check_branch
      %22 = sbr.rel (0) target = $region5
    $region4: #{tpu_custom_call.1} parent=1 // pred_region
      %s24 = ssub.s32 2048, 2048
      %25 = vsyncadd [#allocation4], %s24
      %s26 = sshll.u32 [#allocation3], 4
      %s27 = int_to_ptr.vmem [resolvable:$true] %s26
      %32 = dma.hbm_to_vmem [thread:$0]  %s0, 2048, %s27, [#allocation4], 256, 256, 16
    $region5: #{tpu_custom_call.1} parent=1 // pred_fallthru
      _
    // Predicated region
    $region6: #{tpu_custom_call.1} parent=1 // pred_check
      _
    $region7: #{tpu_custom_call.1} parent=1 // pred_check_branch
      %34 = sbr.rel (0) target = $region9
    $region8: #{tpu_custom_call.1} parent=1 // pred_region
      %s36 = ssub.s32 12288, 12288
      %37 = vsyncadd [#allocation7], %s36
      %s38 = sshll.u32 [#allocation6], 4
      %s39 = int_to_ptr.vmem [resolvable:$true] %s38
      %44 = dma.hbm_to_vmem [thread:$0]  %s1, 12288, %s39, [#allocation7], 192, 192, 12
    $region9: #{tpu_custom_call.1} parent=1 // pred_fallthru
      _
    // Predicated region
    $region10: #{tpu_custom_call.1} parent=1 // pred_check
      _
    $region11: #{tpu_custom_call.1} parent=1 // pred_check_branch
      %46 = sbr.rel (0) target = $region13
    $region12: #{tpu_custom_call.1} parent=1 // pred_region
      %s48 = ssub.s32 3072, 3072
      %49 = vsyncadd [#allocation7], %s48
      %s50 = sshll.u32 [#allocation8], 4
      %s51 = int_to_ptr.vmem [resolvable:$true] %s50
      %56 = dma.hbm_to_vmem [thread:$0]  %s2, 3072, %s51, [#allocation7], 192, 192, 12
    $region13: #{tpu_custom_call.1} parent=1 // pred_fallthru
      _
    // Predicated region
    $region14: #{tpu_custom_call.1} parent=1 // pred_check
      _
    $region15: #{tpu_custom_call.1} parent=1 // pred_check_branch
      %58 = sbr.rel (0) target = $region17
    $region16: #{tpu_custom_call.1} parent=1 // pred_region
      _
    $region17: #{tpu_custom_call.1} parent=1 // pred_fallthru
      _
    // Predicated region
    $region18: #{tpu_custom_call.1} parent=1 // pred_check
      _
    $region19: #{tpu_custom_call.1} parent=1 // pred_check_branch
      %60 = sbr.rel (0) target = $region21
    $region20: #{tpu_custom_call.1} parent=1 // pred_region
      _
    $region21: #{tpu_custom_call.1} parent=1 // pred_fallthru
      _
    // Predicated region
    $region22: #{tpu_custom_call.1} parent=1 // pred_check
      _
    $region23: #{tpu_custom_call.1} parent=1 // pred_check_branch
      %62 = sbr.rel (0) target = $region25
    $region24: #{tpu_custom_call.1} parent=1 // pred_region
      %s64 = ssub.s32 8192, 8192
      %65 = vsyncadd [#allocation10], %s64
      %s66 = sshll.u32 [#allocation9], 4
      %s67 = int_to_ptr.vmem [resolvable:$true] %s66
      %72 = dma.hbm_to_vmem [thread:$0]  %s5, 8192, %s67, [#allocation10], 128, 128, 8
    $region25: #{tpu_custom_call.1} parent=1 // pred_fallthru
      _
    // Predicated region
    $region26: #{tpu_custom_call.1} parent=1 // pred_check
      _
    $region27: #{tpu_custom_call.1} parent=1 // pred_check_branch
      %74 = sbr.rel (0) target = $region29
    $region28: #{tpu_custom_call.1} parent=1 // pred_region
      _
    $region29: #{tpu_custom_call.1} parent=1 // pred_fallthru
      _
    // Predicated region
    $region30: #{tpu_custom_call.1} parent=1 // pred_check
      _
    $region31: #{tpu_custom_call.1} parent=1 // pred_check_branch
      %76 = sbr.rel (0) target = $region33
    $region32: #{tpu_custom_call.1} parent=1 // pred_region
      %s78 = ssub.s32 8192, 8192
      %79 = vsyncadd [#allocation10], %s78
      %s80 = sshll.u32 [#allocation11], 4
      %s81 = int_to_ptr.vmem [resolvable:$true] %s80
      %86 = dma.hbm_to_vmem [thread:$0]  %s7, 8192, %s81, [#allocation10], 128, 128, 8
    $region33: #{tpu_custom_call.1} parent=1 // pred_fallthru
      _
    // Predicated region
    $region34: #{tpu_custom_call.1} parent=1 // pred_check
      _
    $region35: #{tpu_custom_call.1} parent=1 // pred_check_branch
      %88 = sbr.rel (0) target = $region37
    $region36: #{tpu_custom_call.1} parent=1 // pred_region
      _
    $region37: #{tpu_custom_call.1} parent=1 // pred_fallthru
      _
    // Predicated region
    $region38: #{tpu_custom_call.1} parent=1 // pred_check
      _
    $region39: #{tpu_custom_call.1} parent=1 // pred_check_branch
      %90 = sbr.rel (0) target = $region41
    $region40: #{tpu_custom_call.1} parent=1 // pred_region
      %s92 = ssub.s32 2048, 2048
      %93 = vsyncadd [#allocation13], %s92
      %s94 = sshll.u32 [#allocation12], 4
      %s95 = int_to_ptr.vmem [resolvable:$true] %s94
      %100 = dma.hbm_to_vmem [thread:$0]  %s9, 2048, %s95, [#allocation13], 64, 64, 4
    $region41: #{tpu_custom_call.1} parent=1 // pred_fallthru
      _
    // Predicated region
    $region42: #{tpu_custom_call.1} parent=1 // pred_check
      _
    $region43: #{tpu_custom_call.1} parent=1 // pred_check_branch
      %102 = sbr.rel (0) target = $region45
    $region44: #{tpu_custom_call.1} parent=1 // pred_region
      _
    $region45: #{tpu_custom_call.1} parent=1 // pred_fallthru
      _
    // Predicated region
    $region46: #{tpu_custom_call.1} parent=1 // pred_check
      _
    $region47: #{tpu_custom_call.1} parent=1 // pred_check_branch
      %104 = sbr.rel (0) target = $region49
    $region48: #{tpu_custom_call.1} parent=1 // pred_region
      %105 = dma.done [#allocation4], 2048
    $region49: #{tpu_custom_call.1} parent=1 // pred_fallthru
      _
    // Predicated region
    $region50: #{tpu_custom_call.1} parent=1 // pred_check
      _
    $region51: #{tpu_custom_call.1} parent=1 // pred_check_branch
      %107 = sbr.rel (0) target = $region53
    $region52: #{tpu_custom_call.1} parent=1 // pred_region
      %108 = dma.done [#allocation7], 12288
    $region53: #{tpu_custom_call.1} parent=1 // pred_fallthru
      _
    // Predicated region
    $region54: #{tpu_custom_call.1} parent=1 // pred_check
      _
    $region55: #{tpu_custom_call.1} parent=1 // pred_check_branch
      %110 = sbr.rel (0) target = $region57
    $region56: #{tpu_custom_call.1} parent=1 // pred_region
      %111 = dma.done [#allocation7], 3072
    $region57: #{tpu_custom_call.1} parent=1 // pred_fallthru
      _
    // Predicated region
    $region58: #{tpu_custom_call.1} parent=1 // pred_check
      _
    $region59: #{tpu_custom_call.1} parent=1 // pred_check_branch
      %113 = sbr.rel (0) target = $region61
    $region60: #{tpu_custom_call.1} parent=1 // pred_region
      %114 = dma.done [#allocation10], 8192
    $region61: #{tpu_custom_call.1} parent=1 // pred_fallthru
      _
    // Predicated region
    $region62: #{tpu_custom_call.1} parent=1 // pred_check
      _
    $region63: #{tpu_custom_call.1} parent=1 // pred_check_branch
      %116 = sbr.rel (0) target = $region65
    $region64: #{tpu_custom_call.1} parent=1 // pred_region
      %117 = dma.done [#allocation10], 8192
    $region65: #{tpu_custom_call.1} parent=1 // pred_fallthru
      _
    // Predicated region
    $region66: #{tpu_custom_call.1} parent=1 // pred_check
      _
    $region67: #{tpu_custom_call.1} parent=1 // pred_check_branch
      %119 = sbr.rel (0) target = $region69
    $region68: #{tpu_custom_call.1} parent=1 // pred_region
      %120 = dma.done [#allocation13], 2048
    $region69: #{tpu_custom_call.1} parent=1 // pred_fallthru
      _
    %v122 = vld [vmem:[#allocation3] sm:$0xff]
    %v123 = vld [vmem:[#allocation3 + $0x8] sm:$0xff]
    %v124 = vld [vmem:[#allocation3 + $0x10] sm:$0xff]
    %v125 = vld [vmem:[#allocation3 + $0x18] sm:$0xff]
    %v126 = vld [vmem:[#allocation3 + $0x20] sm:$0xff]
    %v127 = vld [vmem:[#allocation3 + $0x28] sm:$0xff]
    %v128 = vld [vmem:[#allocation3 + $0x30] sm:$0xff]
    %v129 = vld [vmem:[#allocation3 + $0x38] sm:$0xff]
    %v130 = vld [vmem:[#allocation3 + $0x40] sm:$0xff]
    %v131 = vld [vmem:[#allocation3 + $0x48] sm:$0xff]
    %v132 = vld [vmem:[#allocation3 + $0x50] sm:$0xff]
    %v133 = vld [vmem:[#allocation3 + $0x58] sm:$0xff]
    %v134 = vld [vmem:[#allocation3 + $0x60] sm:$0xff]
    %v135 = vld [vmem:[#allocation3 + $0x68] sm:$0xff]
    %v136 = vld [vmem:[#allocation3 + $0x70] sm:$0xff]
    %v137 = vld [vmem:[#allocation3 + $0x78] sm:$0xff]
    %v138 = vld [vmem:[#allocation6] sm:$0xff]
    %v139 = vld [vmem:[#allocation6 + $0x8] sm:$0xf]
    %v140 = vld [vmem:[#allocation6 + $0xc] sm:$0xff]
    %v141 = vld [vmem:[#allocation6 + $0x14] sm:$0xf]
    %v142 = vld [vmem:[#allocation6 + $0x18] sm:$0xff]
    %v143 = vld [vmem:[#allocation6 + $0x20] sm:$0xf]
    %v144 = vld [vmem:[#allocation6 + $0x24] sm:$0xff]
    %v145 = vld [vmem:[#allocation6 + $0x2c] sm:$0xf]
    %v146 = vld [vmem:[#allocation6 + $0x30] sm:$0xff]
    %v147 = vld [vmem:[#allocation6 + $0x38] sm:$0xf]
    %v148 = vld [vmem:[#allocation6 + $0x3c] sm:$0xff]
    %v149 = vld [vmem:[#allocation6 + $0x44] sm:$0xf]
    %v150 = vld [vmem:[#allocation6 + $0x48] sm:$0xff]
    %v151 = vld [vmem:[#allocation6 + $0x50] sm:$0xf]
    %v152 = vld [vmem:[#allocation6 + $0x54] sm:$0xff]
    %v153 = vld [vmem:[#allocation6 + $0x5c] sm:$0xf]
    %v154 = vld [vmem:[#allocation6 + $0x60] sm:$0xff]
    %v155 = vld [vmem:[#allocation6 + $0x68] sm:$0xf]
    %v156 = vld [vmem:[#allocation6 + $0x6c] sm:$0xff]
    %v157 = vld [vmem:[#allocation6 + $0x74] sm:$0xf]
    %v158 = vld [vmem:[#allocation6 + $0x78] sm:$0xff]
    %v159 = vld [vmem:[#allocation6 + $0x80] sm:$0xf]
    %v160 = vld [vmem:[#allocation6 + $0x84] sm:$0xff]
    %v161 = vld [vmem:[#allocation6 + $0x8c] sm:$0xf]
    %v162 = vld [vmem:[#allocation6 + $0x90] sm:$0xff]
    %v163 = vld [vmem:[#allocation6 + $0x98] sm:$0xf]
    %v164 = vld [vmem:[#allocation6 + $0x9c] sm:$0xff]
    %v165 = vld [vmem:[#allocation6 + $0xa4] sm:$0xf]
    %v166 = vld [vmem:[#allocation6 + $0xa8] sm:$0xff]
    %v167 = vld [vmem:[#allocation6 + $0xb0] sm:$0xf]
    %v168 = vld [vmem:[#allocation6 + $0xb4] sm:$0xff]
    %v169 = vld [vmem:[#allocation6 + $0xbc] sm:$0xf]
    %v170 = vld [vmem:[#allocation6 + $0xc0] sm:$0xff]
    %v171 = vld [vmem:[#allocation6 + $0xc8] sm:$0xf]
    %v172 = vld [vmem:[#allocation6 + $0xcc] sm:$0xff]
    %v173 = vld [vmem:[#allocation6 + $0xd4] sm:$0xf]
    %v174 = vld [vmem:[#allocation6 + $0xd8] sm:$0xff]
    %v175 = vld [vmem:[#allocation6 + $0xe0] sm:$0xf]
    %v176 = vld [vmem:[#allocation6 + $0xe4] sm:$0xff]
    %v177 = vld [vmem:[#allocation6 + $0xec] sm:$0xf]
    %v178 = vld [vmem:[#allocation6 + $0xf0] sm:$0xff]
    %v179 = vld [vmem:[#allocation6 + $0xf8] sm:$0xf]
    %v180 = vld [vmem:[#allocation6 + $0xfc] sm:$0xff]
    %v181 = vld [vmem:[#allocation6 + $0x104] sm:$0xf]
    %v182 = vld [vmem:[#allocation6 + $0x108] sm:$0xff]
    %v183 = vld [vmem:[#allocation6 + $0x110] sm:$0xf]
    %v184 = vld [vmem:[#allocation6 + $0x114] sm:$0xff]
    %v185 = vld [vmem:[#allocation6 + $0x11c] sm:$0xf]
    %v186 = vld [vmem:[#allocation6 + $0x120] sm:$0xff]
    %v187 = vld [vmem:[#allocation6 + $0x128] sm:$0xf]
    %v188 = vld [vmem:[#allocation6 + $0x12c] sm:$0xff]
    %v189 = vld [vmem:[#allocation6 + $0x134] sm:$0xf]
    %v190 = vld [vmem:[#allocation6 + $0x138] sm:$0xff]
    %v191 = vld [vmem:[#allocation6 + $0x140] sm:$0xf]
    %v192 = vld [vmem:[#allocation6 + $0x144] sm:$0xff]
    %v193 = vld [vmem:[#allocation6 + $0x14c] sm:$0xf]
    %v194 = vld [vmem:[#allocation6 + $0x150] sm:$0xff]
    %v195 = vld [vmem:[#allocation6 + $0x158] sm:$0xf]
    %v196 = vld [vmem:[#allocation6 + $0x15c] sm:$0xff]
    %v197 = vld [vmem:[#allocation6 + $0x164] sm:$0xf]
    %v198 = vld [vmem:[#allocation6 + $0x168] sm:$0xff]
    %v199 = vld [vmem:[#allocation6 + $0x170] sm:$0xf]
    %v200 = vld [vmem:[#allocation6 + $0x174] sm:$0xff]
    %v201 = vld [vmem:[#allocation6 + $0x17c] sm:$0xf]
    %v202 = vld [vmem:[#allocation6 + $0x180] sm:$0xff]
    %v203 = vld [vmem:[#allocation6 + $0x188] sm:$0xf]
    %v204 = vld [vmem:[#allocation6 + $0x18c] sm:$0xff]
    %v205 = vld [vmem:[#allocation6 + $0x194] sm:$0xf]
    %v206 = vld [vmem:[#allocation6 + $0x198] sm:$0xff]
    %v207 = vld [vmem:[#allocation6 + $0x1a0] sm:$0xf]
    %v208 = vld [vmem:[#allocation6 + $0x1a4] sm:$0xff]
    %v209 = vld [vmem:[#allocation6 + $0x1ac] sm:$0xf]
    %v210 = vld [vmem:[#allocation6 + $0x1b0] sm:$0xff]
    %v211 = vld [vmem:[#allocation6 + $0x1b8] sm:$0xf]
    %v212 = vld [vmem:[#allocation6 + $0x1bc] sm:$0xff]
    %v213 = vld [vmem:[#allocation6 + $0x1c4] sm:$0xf]
    %v214 = vld [vmem:[#allocation6 + $0x1c8] sm:$0xff]
    %v215 = vld [vmem:[#allocation6 + $0x1d0] sm:$0xf]
    %v216 = vld [vmem:[#allocation6 + $0x1d4] sm:$0xff]
    %v217 = vld [vmem:[#allocation6 + $0x1dc] sm:$0xf]
    %v218 = vld [vmem:[#allocation6 + $0x1e0] sm:$0xff]
    %v219 = vld [vmem:[#allocation6 + $0x1e8] sm:$0xf]
    %v220 = vld [vmem:[#allocation6 + $0x1ec] sm:$0xff]
    %v221 = vld [vmem:[#allocation6 + $0x1f4] sm:$0xf]
    %v222 = vld [vmem:[#allocation6 + $0x1f8] sm:$0xff]
    %v223 = vld [vmem:[#allocation6 + $0x200] sm:$0xf]
    %v224 = vld [vmem:[#allocation6 + $0x204] sm:$0xff]
    %v225 = vld [vmem:[#allocation6 + $0x20c] sm:$0xf]
    %v226 = vld [vmem:[#allocation6 + $0x210] sm:$0xff]
    %v227 = vld [vmem:[#allocation6 + $0x218] sm:$0xf]
    %v228 = vld [vmem:[#allocation6 + $0x21c] sm:$0xff]
    %v229 = vld [vmem:[#allocation6 + $0x224] sm:$0xf]
    %v230 = vld [vmem:[#allocation6 + $0x228] sm:$0xff]
    %v231 = vld [vmem:[#allocation6 + $0x230] sm:$0xf]
    %v232 = vld [vmem:[#allocation6 + $0x234] sm:$0xff]
    %v233 = vld [vmem:[#allocation6 + $0x23c] sm:$0xf]
    %v234 = vld [vmem:[#allocation6 + $0x240] sm:$0xff]
    %v235 = vld [vmem:[#allocation6 + $0x248] sm:$0xf]
    %v236 = vld [vmem:[#allocation6 + $0x24c] sm:$0xff]
    %v237 = vld [vmem:[#allocation6 + $0x254] sm:$0xf]
    %v238 = vld [vmem:[#allocation6 + $0x258] sm:$0xff]
    %v239 = vld [vmem:[#allocation6 + $0x260] sm:$0xf]
    %v240 = vld [vmem:[#allocation6 + $0x264] sm:$0xff]
    %v241 = vld [vmem:[#allocation6 + $0x26c] sm:$0xf]
    %v242 = vld [vmem:[#allocation6 + $0x270] sm:$0xff]
    %v243 = vld [vmem:[#allocation6 + $0x278] sm:$0xf]
    %v244 = vld [vmem:[#allocation6 + $0x27c] sm:$0xff]
    %v245 = vld [vmem:[#allocation6 + $0x284] sm:$0xf]
    %v246 = vld [vmem:[#allocation6 + $0x288] sm:$0xff]
    %v247 = vld [vmem:[#allocation6 + $0x290] sm:$0xf]
    %v248 = vld [vmem:[#allocation6 + $0x294] sm:$0xff]
    %v249 = vld [vmem:[#allocation6 + $0x29c] sm:$0xf]
    %v250 = vld [vmem:[#allocation6 + $0x2a0] sm:$0xff]
    %v251 = vld [vmem:[#allocation6 + $0x2a8] sm:$0xf]
    %v252 = vld [vmem:[#allocation6 + $0x2ac] sm:$0xff]
    %v253 = vld [vmem:[#allocation6 + $0x2b4] sm:$0xf]
    %v254 = vld [vmem:[#allocation6 + $0x2b8] sm:$0xff]
    %v255 = vld [vmem:[#allocation6 + $0x2c0] sm:$0xf]
    %v256 = vld [vmem:[#allocation6 + $0x2c4] sm:$0xff]
    %v257 = vld [vmem:[#allocation6 + $0x2cc] sm:$0xf]
    %v258 = vld [vmem:[#allocation6 + $0x2d0] sm:$0xff]
    %v259 = vld [vmem:[#allocation6 + $0x2d8] sm:$0xf]
    %v260 = vld [vmem:[#allocation6 + $0x2dc] sm:$0xff]
    %v261 = vld [vmem:[#allocation6 + $0x2e4] sm:$0xf]
    %v262 = vld [vmem:[#allocation6 + $0x2e8] sm:$0xff]
    %v263 = vld [vmem:[#allocation6 + $0x2f0] sm:$0xf]
    %v264 = vld [vmem:[#allocation6 + $0x2f4] sm:$0xff]
    %v265 = vld [vmem:[#allocation6 + $0x2fc] sm:$0xf]
    %v266 = vld [vmem:[%s3] sm:$0x7]
    %v268 = vlaneseq
    %v269 = vshrl.u32 %v268, 7
    %v270 = vsub.s32 0, %v269
    %v271 = vrot.slane %v266, %v270
    %v272 = vlaneseq
    %v273 = vshrl.u32 %v272, 7
    %v274 = vsub.s32 1, %v273
    %v275 = vrot.slane %v266, %v274
    %v276 = vlaneseq
    %v277 = vshrl.u32 %v276, 7
    %v278 = vsub.s32 2, %v277
    %v279 = vrot.slane %v266, %v278
    %v299 = vunpack.c.l.b16 %v122
    %v300 = vunpack.c.h.b16 %v122
    %v301 = vunpack.c.l.b16 %v123
    %v302 = vunpack.c.h.b16 %v123
    %v303 = vunpack.c.l.b16 %v124
    %v304 = vunpack.c.h.b16 %v124
    %v305 = vunpack.c.l.b16 %v125
    %v306 = vunpack.c.h.b16 %v125
    %v307 = vunpack.c.l.b16 %v126
    %v308 = vunpack.c.h.b16 %v126
    %v309 = vunpack.c.l.b16 %v127
    %v310 = vunpack.c.h.b16 %v127
    %v311 = vunpack.c.l.b16 %v128
    %v312 = vunpack.c.h.b16 %v128
    %v313 = vunpack.c.l.b16 %v129
    %v314 = vunpack.c.h.b16 %v129
    %v315 = vunpack.c.l.b16 %v130
    %v316 = vunpack.c.h.b16 %v130
    %v317 = vunpack.c.l.b16 %v131
    %v318 = vunpack.c.h.b16 %v131
    %v319 = vunpack.c.l.b16 %v132
    %v320 = vunpack.c.h.b16 %v132
    %v321 = vunpack.c.l.b16 %v133
    %v322 = vunpack.c.h.b16 %v133
    %v323 = vunpack.c.l.b16 %v134
    %v324 = vunpack.c.h.b16 %v134
    %v325 = vunpack.c.l.b16 %v135
    %v326 = vunpack.c.h.b16 %v135
    %v327 = vunpack.c.l.b16 %v136
    %v328 = vunpack.c.h.b16 %v136
    %v329 = vunpack.c.l.b16 %v137
    %v330 = vunpack.c.h.b16 %v137
    %v331 = vpack.c.b16 %v303, %v299
    %v332 = vpack.c.b16 %v304, %v300
    %v333 = vpack.c.b16 %v305, %v301
    %v334 = vpack.c.b16 %v306, %v302
    %v335 = vpack.c.b16 %v311, %v307
    %v336 = vpack.c.b16 %v312, %v308
    %v337 = vpack.c.b16 %v313, %v309
    %v338 = vpack.c.b16 %v314, %v310
    %v339 = vpack.c.b16 %v319, %v315
    %v340 = vpack.c.b16 %v320, %v316
    %v341 = vpack.c.b16 %v321, %v317
    %v342 = vpack.c.b16 %v322, %v318
    %v343 = vpack.c.b16 %v327, %v323
    %v344 = vpack.c.b16 %v328, %v324
    %v345 = vpack.c.b16 %v329, %v325
    %v346 = vpack.c.b16 %v330, %v326
    %v491 = vunpack.c.l.b16 %v138
    %v492 = vunpack.c.h.b16 %v138
    %v493 = vunpack.c.l.b16 %v139
    %v494 = vunpack.c.l.b16 %v140
    %v495 = vunpack.c.h.b16 %v140
    %v496 = vunpack.c.l.b16 %v141
    %v497 = vunpack.c.l.b16 %v142
    %v498 = vunpack.c.h.b16 %v142
    %v499 = vunpack.c.l.b16 %v143
    %v500 = vunpack.c.l.b16 %v144
    %v501 = vunpack.c.h.b16 %v144
    %v502 = vunpack.c.l.b16 %v145
    %v503 = vunpack.c.l.b16 %v146
    %v504 = vunpack.c.h.b16 %v146
    %v505 = vunpack.c.l.b16 %v147
    %v506 = vunpack.c.l.b16 %v148
    %v507 = vunpack.c.h.b16 %v148
    %v508 = vunpack.c.l.b16 %v149
    %v509 = vunpack.c.l.b16 %v150
    %v510 = vunpack.c.h.b16 %v150
    %v511 = vunpack.c.l.b16 %v151
    %v512 = vunpack.c.l.b16 %v152
    %v513 = vunpack.c.h.b16 %v152
    %v514 = vunpack.c.l.b16 %v153
    %v515 = vunpack.c.l.b16 %v154
    %v516 = vunpack.c.h.b16 %v154
    %v517 = vunpack.c.l.b16 %v155
    %v518 = vunpack.c.l.b16 %v156
    %v519 = vunpack.c.h.b16 %v156
    %v520 = vunpack.c.l.b16 %v157
    %v521 = vunpack.c.l.b16 %v158
    %v522 = vunpack.c.h.b16 %v158
    %v523 = vunpack.c.l.b16 %v159
    %v524 = vunpack.c.l.b16 %v160
    %v525 = vunpack.c.h.b16 %v160
    %v526 = vunpack.c.l.b16 %v161
    %v527 = vunpack.c.l.b16 %v162
    %v528 = vunpack.c.h.b16 %v162
    %v529 = vunpack.c.l.b16 %v163
    %v530 = vunpack.c.l.b16 %v164
    %v531 = vunpack.c.h.b16 %v164
    %v532 = vunpack.c.l.b16 %v165
    %v533 = vunpack.c.l.b16 %v166
    %v534 = vunpack.c.h.b16 %v166
    %v535 = vunpack.c.l.b16 %v167
    %v536 = vunpack.c.l.b16 %v168
    %v537 = vunpack.c.h.b16 %v168
    %v538 = vunpack.c.l.b16 %v169
    %v539 = vunpack.c.l.b16 %v170
    %v540 = vunpack.c.h.b16 %v170
    %v541 = vunpack.c.l.b16 %v171
    %v542 = vunpack.c.l.b16 %v172
    %v543 = vunpack.c.h.b16 %v172
    %v544 = vunpack.c.l.b16 %v173
    %v545 = vunpack.c.l.b16 %v174
    %v546 = vunpack.c.h.b16 %v174
    %v547 = vunpack.c.l.b16 %v175
    %v548 = vunpack.c.l.b16 %v176
    %v549 = vunpack.c.h.b16 %v176
    %v550 = vunpack.c.l.b16 %v177
    %v551 = vunpack.c.l.b16 %v178
    %v552 = vunpack.c.h.b16 %v178
    %v553 = vunpack.c.l.b16 %v179
    %v554 = vunpack.c.l.b16 %v180
    %v555 = vunpack.c.h.b16 %v180
    %v556 = vunpack.c.l.b16 %v181
    %v557 = vunpack.c.l.b16 %v182
    %v558 = vunpack.c.h.b16 %v182
    %v559 = vunpack.c.l.b16 %v183
    %v560 = vunpack.c.l.b16 %v184
    %v561 = vunpack.c.h.b16 %v184
    %v562 = vunpack.c.l.b16 %v185
    %v563 = vunpack.c.l.b16 %v186
    %v564 = vunpack.c.h.b16 %v186
    %v565 = vunpack.c.l.b16 %v187
    %v566 = vunpack.c.l.b16 %v188
    %v567 = vunpack.c.h.b16 %v188
    %v568 = vunpack.c.l.b16 %v189
    %v569 = vunpack.c.l.b16 %v190
    %v570 = vunpack.c.h.b16 %v190
    %v571 = vunpack.c.l.b16 %v191
    %v572 = vunpack.c.l.b16 %v192
    %v573 = vunpack.c.h.b16 %v192
    %v574 = vunpack.c.l.b16 %v193
    %v575 = vunpack.c.l.b16 %v194
    %v576 = vunpack.c.h.b16 %v194
    %v577 = vunpack.c.l.b16 %v195
    %v578 = vunpack.c.l.b16 %v196
    %v579 = vunpack.c.h.b16 %v196
    %v580 = vunpack.c.l.b16 %v197
    %v581 = vunpack.c.l.b16 %v198
    %v582 = vunpack.c.h.b16 %v198
    %v583 = vunpack.c.l.b16 %v199
    %v584 = vunpack.c.l.b16 %v200
    %v585 = vunpack.c.h.b16 %v200
    %v586 = vunpack.c.l.b16 %v201
    %v587 = vunpack.c.l.b16 %v202
    %v588 = vunpack.c.h.b16 %v202
    %v589 = vunpack.c.l.b16 %v203
    %v590 = vunpack.c.l.b16 %v204
    %v591 = vunpack.c.h.b16 %v204
    %v592 = vunpack.c.l.b16 %v205
    %v593 = vunpack.c.l.b16 %v206
    %v594 = vunpack.c.h.b16 %v206
    %v595 = vunpack.c.l.b16 %v207
    %v596 = vunpack.c.l.b16 %v208
    %v597 = vunpack.c.h.b16 %v208
    %v598 = vunpack.c.l.b16 %v209
    %v599 = vunpack.c.l.b16 %v210
    %v600 = vunpack.c.h.b16 %v210
    %v601 = vunpack.c.l.b16 %v211
    %v602 = vunpack.c.l.b16 %v212
    %v603 = vunpack.c.h.b16 %v212
    %v604 = vunpack.c.l.b16 %v213
    %v605 = vunpack.c.l.b16 %v214
    %v606 = vunpack.c.h.b16 %v214
    %v607 = vunpack.c.l.b16 %v215
    %v608 = vunpack.c.l.b16 %v216
    %v609 = vunpack.c.h.b16 %v216
    %v610 = vunpack.c.l.b16 %v217
    %v611 = vunpack.c.l.b16 %v218
    %v612 = vunpack.c.h.b16 %v218
    %v613 = vunpack.c.l.b16 %v219
    %v614 = vunpack.c.l.b16 %v220
    %v615 = vunpack.c.h.b16 %v220
    %v616 = vunpack.c.l.b16 %v221
    %v617 = vunpack.c.l.b16 %v222
    %v618 = vunpack.c.h.b16 %v222
    %v619 = vunpack.c.l.b16 %v223
    %v620 = vunpack.c.l.b16 %v224
    %v621 = vunpack.c.h.b16 %v224
    %v622 = vunpack.c.l.b16 %v225
    %v623 = vunpack.c.l.b16 %v226
    %v624 = vunpack.c.h.b16 %v226
    %v625 = vunpack.c.l.b16 %v227
    %v626 = vunpack.c.l.b16 %v228
    %v627 = vunpack.c.h.b16 %v228
    %v628 = vunpack.c.l.b16 %v229
    %v629 = vunpack.c.l.b16 %v230
    %v630 = vunpack.c.h.b16 %v230
    %v631 = vunpack.c.l.b16 %v231
    %v632 = vunpack.c.l.b16 %v232
    %v633 = vunpack.c.h.b16 %v232
    %v634 = vunpack.c.l.b16 %v233
    %v635 = vunpack.c.l.b16 %v234
    %v636 = vunpack.c.h.b16 %v234
    %v637 = vunpack.c.l.b16 %v235
    %v638 = vunpack.c.l.b16 %v236
    %v639 = vunpack.c.h.b16 %v236
    %v640 = vunpack.c.l.b16 %v237
    %v641 = vunpack.c.l.b16 %v238
    %v642 = vunpack.c.h.b16 %v238
    %v643 = vunpack.c.l.b16 %v239
    %v644 = vunpack.c.l.b16 %v240
    %v645 = vunpack.c.h.b16 %v240
    %v646 = vunpack.c.l.b16 %v241
    %v647 = vunpack.c.l.b16 %v242
    %v648 = vunpack.c.h.b16 %v242
    %v649 = vunpack.c.l.b16 %v243
    %v650 = vunpack.c.l.b16 %v244
    %v651 = vunpack.c.h.b16 %v244
    %v652 = vunpack.c.l.b16 %v245
    %v653 = vunpack.c.l.b16 %v246
    %v654 = vunpack.c.h.b16 %v246
    %v655 = vunpack.c.l.b16 %v247
    %v656 = vunpack.c.l.b16 %v248
    %v657 = vunpack.c.h.b16 %v248
    %v658 = vunpack.c.l.b16 %v249
    %v659 = vunpack.c.l.b16 %v250
    %v660 = vunpack.c.h.b16 %v250
    %v661 = vunpack.c.l.b16 %v251
    %v662 = vunpack.c.l.b16 %v252
    %v663 = vunpack.c.h.b16 %v252
    %v664 = vunpack.c.l.b16 %v253
    %v665 = vunpack.c.l.b16 %v254
    %v666 = vunpack.c.h.b16 %v254
    %v667 = vunpack.c.l.b16 %v255
    %v668 = vunpack.c.l.b16 %v256
    %v669 = vunpack.c.h.b16 %v256
    %v670 = vunpack.c.l.b16 %v257
    %v671 = vunpack.c.l.b16 %v258
    %v672 = vunpack.c.h.b16 %v258
    %v673 = vunpack.c.l.b16 %v259
    %v674 = vunpack.c.l.b16 %v260
    %v675 = vunpack.c.h.b16 %v260
    %v676 = vunpack.c.l.b16 %v261
    %v677 = vunpack.c.l.b16 %v262
    %v678 = vunpack.c.h.b16 %v262
    %v679 = vunpack.c.l.b16 %v263
    %v680 = vunpack.c.l.b16 %v264
    %v681 = vunpack.c.h.b16 %v264
    %v682 = vunpack.c.l.b16 %v265
    %v683 = vpack.c.b16 %v494, %v491
    %v684 = vpack.c.b16 %v495, %v492
    %v685 = vpack.c.b16 %v496, %v493
    %v686 = vpack.c.b16 %v500, %v497
    %v687 = vpack.c.b16 %v501, %v498
    %v688 = vpack.c.b16 %v502, %v499
    %v689 = vpack.c.b16 %v506, %v503
    %v690 = vpack.c.b16 %v507, %v504
    %v691 = vpack.c.b16 %v508, %v505
    %v692 = vpack.c.b16 %v512, %v509
    %v693 = vpack.c.b16 %v513, %v510
    %v694 = vpack.c.b16 %v514, %v511
    %v695 = vpack.c.b16 %v518, %v515
    %v696 = vpack.c.b16 %v519, %v516
    %v697 = vpack.c.b16 %v520, %v517
    %v698 = vpack.c.b16 %v524, %v521
    %v699 = vpack.c.b16 %v525, %v522
    %v700 = vpack.c.b16 %v526, %v523
    %v701 = vpack.c.b16 %v530, %v527
    %v702 = vpack.c.b16 %v531, %v528
    %v703 = vpack.c.b16 %v532, %v529
    %v704 = vpack.c.b16 %v536, %v533
    %v705 = vpack.c.b16 %v537, %v534
    %v706 = vpack.c.b16 %v538, %v535
    %v707 = vpack.c.b16 %v542, %v539
    %v708 = vpack.c.b16 %v543, %v540
    %v709 = vpack.c.b16 %v544, %v541
    %v710 = vpack.c.b16 %v548, %v545
    %v711 = vpack.c.b16 %v549, %v546
    %v712 = vpack.c.b16 %v550, %v547
    %v713 = vpack.c.b16 %v554, %v551
    %v714 = vpack.c.b16 %v555, %v552
    %v715 = vpack.c.b16 %v556, %v553
    %v716 = vpack.c.b16 %v560, %v557
    %v717 = vpack.c.b16 %v561, %v558
    %v718 = vpack.c.b16 %v562, %v559
    %v719 = vpack.c.b16 %v566, %v563
    %v720 = vpack.c.b16 %v567, %v564
    %v721 = vpack.c.b16 %v568, %v565
    %v722 = vpack.c.b16 %v572, %v569
    %v723 = vpack.c.b16 %v573, %v570
    %v724 = vpack.c.b16 %v574, %v571
    %v725 = vpack.c.b16 %v578, %v575
    %v726 = vpack.c.b16 %v579, %v576
    %v727 = vpack.c.b16 %v580, %v577
    %v728 = vpack.c.b16 %v584, %v581
    %v729 = vpack.c.b16 %v585, %v582
    %v730 = vpack.c.b16 %v586, %v583
    %v731 = vpack.c.b16 %v590, %v587
    %v732 = vpack.c.b16 %v591, %v588
    %v733 = vpack.c.b16 %v592, %v589
    %v734 = vpack.c.b16 %v596, %v593
    %v735 = vpack.c.b16 %v597, %v594
    %v736 = vpack.c.b16 %v598, %v595
    %v737 = vpack.c.b16 %v602, %v599
    %v738 = vpack.c.b16 %v603, %v600
    %v739 = vpack.c.b16 %v604, %v601
    %v740 = vpack.c.b16 %v608, %v605
    %v741 = vpack.c.b16 %v609, %v606
    %v742 = vpack.c.b16 %v610, %v607
    %v743 = vpack.c.b16 %v614, %v611
    %v744 = vpack.c.b16 %v615, %v612
    %v745 = vpack.c.b16 %v616, %v613
    %v746 = vpack.c.b16 %v620, %v617
    %v747 = vpack.c.b16 %v621, %v618
    %v748 = vpack.c.b16 %v622, %v619
    %v749 = vpack.c.b16 %v626, %v623
    %v750 = vpack.c.b16 %v627, %v624
    %v751 = vpack.c.b16 %v628, %v625
    %v752 = vpack.c.b16 %v632, %v629
    %v753 = vpack.c.b16 %v633, %v630
    %v754 = vpack.c.b16 %v634, %v631
    %v755 = vpack.c.b16 %v638, %v635
    %v756 = vpack.c.b16 %v639, %v636
    %v757 = vpack.c.b16 %v640, %v637
    %v758 = vpack.c.b16 %v644, %v641
    %v759 = vpack.c.b16 %v645, %v642
    %v760 = vpack.c.b16 %v646, %v643
    %v761 = vpack.c.b16 %v650, %v647
    %v762 = vpack.c.b16 %v651, %v648
    %v763 = vpack.c.b16 %v652, %v649
    %v764 = vpack.c.b16 %v656, %v653
    %v765 = vpack.c.b16 %v657, %v654
    %v766 = vpack.c.b16 %v658, %v655
    %v767 = vpack.c.b16 %v662, %v659
    %v768 = vpack.c.b16 %v663, %v660
    %v769 = vpack.c.b16 %v664, %v661
    %v770 = vpack.c.b16 %v668, %v665
    %v771 = vpack.c.b16 %v669, %v666
    %v772 = vpack.c.b16 %v670, %v667
    %v773 = vpack.c.b16 %v674, %v671
    %v774 = vpack.c.b16 %v675, %v672
    %v775 = vpack.c.b16 %v676, %v673
    %v776 = vpack.c.b16 %v680, %v677
    %v777 = vpack.c.b16 %v681, %v678
    %v778 = vpack.c.b16 %v682, %v679
    %875 = vmatprep.subr.bf16.mxu0 %v684
    %876 = vmatpush1.bf16.msra.mxu0 %v683
    %877 = vmatprep.subr.bf16.mxu0 %v687
    %878 = vmatpush1.bf16.msra.mxu0 %v686
    %879 = vmatprep.subr.bf16.mxu0 %v690
    %880 = vmatpush1.bf16.msra.mxu0 %v689
    %881 = vmatprep.subr.bf16.mxu0 %v693
    %882 = vmatpush1.bf16.msra.mxu0 %v692
    %883 = vmatprep.subr.bf16.mxu0 %v696
    %884 = vmatpush1.bf16.msra.mxu0 %v695
    %885 = vmatprep.subr.bf16.mxu0 %v699
    %886 = vmatpush1.bf16.msra.mxu0 %v698
    %887 = vmatprep.subr.bf16.mxu0 %v702
    %888 = vmatpush1.bf16.msra.mxu0 %v701
    %889 = vmatprep.subr.bf16.mxu0 %v705
    %890 = vmatpush1.bf16.msra.mxu0 %v704
    %891 = vmatprep.subr.bf16.mxu0 %v708
    %892 = vmatpush1.bf16.msra.mxu0 %v707
    %893 = vmatprep.subr.bf16.mxu0 %v711
    %894 = vmatpush1.bf16.msra.mxu0 %v710
    %895 = vmatprep.subr.bf16.mxu0 %v714
    %896 = vmatpush1.bf16.msra.mxu0 %v713
    %897 = vmatprep.subr.bf16.mxu0 %v717
    %898 = vmatpush1.bf16.msra.mxu0 %v716
    %899 = vmatprep.subr.bf16.mxu0 %v720
    %900 = vmatpush1.bf16.msra.mxu0 %v719
    %901 = vmatprep.subr.bf16.mxu0 %v723
    %902 = vmatpush1.bf16.msra.mxu0 %v722
    %903 = vmatprep.subr.bf16.mxu0 %v726
    %904 = vmatpush1.bf16.msra.mxu0 %v725
    %905 = vmatprep.subr.bf16.mxu0 %v729
    %906 = vmatpush1.bf16.msra.mxu0 %v728
    %907 = vmatprep.mubr.bf16.mxu0 %v332
    %908 = vmatmul.mubr.bf16.gmra.mrb[0].mxu0 %v331
    %v909 = vpop.f32.mrb[0].mxu0
    %v910 = vadd.f32 %v271, %v909
    %v911 = vpop.f32.mrb[0].mxu0
    %v912 = vadd.f32 %v275, %v911
    %v913 = vpop.f32.mrb[0].mxu0
    %v914 = vadd.f32 %v271, %v913
    %v915 = vpop.f32.mrb[0].mxu0
    %v916 = vadd.f32 %v275, %v915
    %917 = vmatprep.mubr.bf16.mxu0 %v336
    %918 = vmatmul.mubr.bf16.gmra.mrb[0].mxu0 %v335
    %v919 = vpop.f32.mrb[0].mxu0
    %v920 = vadd.f32 %v271, %v919
    %v921 = vpop.f32.mrb[0].mxu0
    %v922 = vadd.f32 %v275, %v921
    %v923 = vpop.f32.mrb[0].mxu0
    %v924 = vadd.f32 %v271, %v923
    %v925 = vpop.f32.mrb[0].mxu0
    %v926 = vadd.f32 %v275, %v925
    %927 = vmatprep.mubr.bf16.mxu0 %v340
    %928 = vmatmul.mubr.bf16.gmra.mrb[0].mxu0 %v339
    %v929 = vpop.f32.mrb[0].mxu0
    %v930 = vadd.f32 %v271, %v929
    %v931 = vpop.f32.mrb[0].mxu0
    %v932 = vadd.f32 %v275, %v931
    %v933 = vpop.f32.mrb[0].mxu0
    %v934 = vadd.f32 %v271, %v933
    %v935 = vpop.f32.mrb[0].mxu0
    %v936 = vadd.f32 %v275, %v935
    %937 = vmatprep.mubr.bf16.mxu0 %v344
    %938 = vmatmul.mubr.bf16.gmra.mrb[0].mxu0 %v343
    %v939 = vpop.f32.mrb[0].mxu0
    %v940 = vadd.f32 %v271, %v939
    %v941 = vpop.f32.mrb[0].mxu0
    %v942 = vadd.f32 %v275, %v941
    %v943 = vpop.f32.mrb[0].mxu0
    %v944 = vadd.f32 %v271, %v943
    %v945 = vpop.f32.mrb[0].mxu0
    %v946 = vadd.f32 %v275, %v945
    %947 = vdwg.mxu0
    %948 = vmatprep.subr.bf16.mxu0 %v732
    %949 = vmatpush1.bf16.msra.mxu0 %v731
    %950 = vmatprep.subr.bf16.mxu0 %v735
    %951 = vmatpush1.bf16.msra.mxu0 %v734
    %952 = vmatprep.subr.bf16.mxu0 %v738
    %953 = vmatpush1.bf16.msra.mxu0 %v737
    %954 = vmatprep.subr.bf16.mxu0 %v741
    %955 = vmatpush1.bf16.msra.mxu0 %v740
    %956 = vmatprep.subr.bf16.mxu0 %v744
    %957 = vmatpush1.bf16.msra.mxu0 %v743
    %958 = vmatprep.subr.bf16.mxu0 %v747
    %959 = vmatpush1.bf16.msra.mxu0 %v746
    %960 = vmatprep.subr.bf16.mxu0 %v750
    %961 = vmatpush1.bf16.msra.mxu0 %v749
    %962 = vmatprep.subr.bf16.mxu0 %v753
    %963 = vmatpush1.bf16.msra.mxu0 %v752
    %964 = vmatprep.subr.bf16.mxu0 %v756
    %965 = vmatpush1.bf16.msra.mxu0 %v755
    %966 = vmatprep.subr.bf16.mxu0 %v759
    %967 = vmatpush1.bf16.msra.mxu0 %v758
    %968 = vmatprep.subr.bf16.mxu0 %v762
    %969 = vmatpush1.bf16.msra.mxu0 %v761
    %970 = vmatprep.subr.bf16.mxu0 %v765
    %971 = vmatpush1.bf16.msra.mxu0 %v764
    %972 = vmatprep.subr.bf16.mxu0 %v768
    %973 = vmatpush1.bf16.msra.mxu0 %v767
    %974 = vmatprep.subr.bf16.mxu0 %v771
    %975 = vmatpush1.bf16.msra.mxu0 %v770
    %976 = vmatprep.subr.bf16.mxu0 %v774
    %977 = vmatpush1.bf16.msra.mxu0 %v773
    %978 = vmatprep.subr.bf16.mxu0 %v777
    %979 = vmatpush1.bf16.msra.mxu0 %v776
    %980 = vmatprep.mubr.bf16.mxu0 %v334
    %981 = vmatmul.mubr.bf16.gmra.mrb[0].mxu0 %v333
    %v982 = vpop.f32.mrb[0].mxu0
    %v983 = vadd.f32 %v910, %v982
    %v984 = vpop.f32.mrb[0].mxu0
    %v985 = vadd.f32 %v912, %v984
    %v986 = vpop.f32.mrb[0].mxu0
    %v987 = vadd.f32 %v914, %v986
    %v988 = vpop.f32.mrb[0].mxu0
    %v989 = vadd.f32 %v916, %v988
    %990 = vmatprep.mubr.bf16.mxu0 %v338
    %991 = vmatmul.mubr.bf16.gmra.mrb[0].mxu0 %v337
    %v992 = vpop.f32.mrb[0].mxu0
    %v993 = vadd.f32 %v920, %v992
    %v994 = vpop.f32.mrb[0].mxu0
    %v995 = vadd.f32 %v922, %v994
    %v996 = vpop.f32.mrb[0].mxu0
    %v997 = vadd.f32 %v924, %v996
    %v998 = vpop.f32.mrb[0].mxu0
    %v999 = vadd.f32 %v926, %v998
    %1000 = vmatprep.mubr.bf16.mxu0 %v342
    %1001 = vmatmul.mubr.bf16.gmra.mrb[0].mxu0 %v341
    %v1002 = vpop.f32.mrb[0].mxu0
    %v1003 = vadd.f32 %v930, %v1002
    %v1004 = vpop.f32.mrb[0].mxu0
    %v1005 = vadd.f32 %v932, %v1004
    %v1006 = vpop.f32.mrb[0].mxu0
    %v1007 = vadd.f32 %v934, %v1006
    %v1008 = vpop.f32.mrb[0].mxu0
    %v1009 = vadd.f32 %v936, %v1008
    %1010 = vmatprep.mubr.bf16.mxu0 %v346
    %1011 = vmatmul.mubr.bf16.gmra.mrb[0].mxu0 %v345
    %v1012 = vpop.f32.mrb[0].mxu0
    %v1013 = vadd.f32 %v940, %v1012
    %v1014 = vpop.f32.mrb[0].mxu0
    %v1015 = vadd.f32 %v942, %v1014
    %v1016 = vpop.f32.mrb[0].mxu0
    %v1017 = vadd.f32 %v944, %v1016
    %v1018 = vpop.f32.mrb[0].mxu0
    %v1019 = vadd.f32 %v946, %v1018
    %1020 = vdwg.mxu0
    %1021 = vmatprep.subr.bf16.mxu0 0
    %1022 = vmatpush1.bf16.msra.mxu0 %v685
    %1023 = vmatprep.subr.bf16.mxu0 0
    %1024 = vmatpush1.bf16.msra.mxu0 %v688
    %1025 = vmatprep.subr.bf16.mxu0 0
    %1026 = vmatpush1.bf16.msra.mxu0 %v691
    %1027 = vmatprep.subr.bf16.mxu0 0
    %1028 = vmatpush1.bf16.msra.mxu0 %v694
    %1029 = vmatprep.subr.bf16.mxu0 0
    %1030 = vmatpush1.bf16.msra.mxu0 %v697
    %1031 = vmatprep.subr.bf16.mxu0 0
    %1032 = vmatpush1.bf16.msra.mxu0 %v700
    %1033 = vmatprep.subr.bf16.mxu0 0
    %1034 = vmatpush1.bf16.msra.mxu0 %v703
    %1035 = vmatprep.subr.bf16.mxu0 0
    %1036 = vmatpush1.bf16.msra.mxu0 %v706
    %1037 = vmatprep.subr.bf16.mxu0 0
    %1038 = vmatpush1.bf16.msra.mxu0 %v709
    %1039 = vmatprep.subr.bf16.mxu0 0
    %1040 = vmatpush1.bf16.msra.mxu0 %v712
    %1041 = vmatprep.subr.bf16.mxu0 0
    %1042 = vmatpush1.bf16.msra.mxu0 %v715
    %1043 = vmatprep.subr.bf16.mxu0 0
    %1044 = vmatpush1.bf16.msra.mxu0 %v718
    %1045 = vmatprep.subr.bf16.mxu0 0
    %1046 = vmatpush1.bf16.msra.mxu0 %v721
    %1047 = vmatprep.subr.bf16.mxu0 0
    %1048 = vmatpush1.bf16.msra.mxu0 %v724
    %1049 = vmatprep.subr.bf16.mxu0 0
    %1050 = vmatpush1.bf16.msra.mxu0 %v727
    %1051 = vmatprep.subr.bf16.mxu0 0
    %1052 = vmatpush1.bf16.msra.mxu0 %v730
    %1053 = vmatprep.mubr.bf16.mxu0 %v332
    %1054 = vmatmul.mubr.bf16.gmra.mrb[0].mxu0 %v331
    %v1055 = vpop.f32.mrb[0].mxu0
    %v1056 = vadd.f32 %v279, %v1055
    %v1057 = vpop.f32.mrb[0].mxu0
    %v1058 = vpop.f32.mrb[0].mxu0
    %v1059 = vadd.f32 %v279, %v1058
    %v1060 = vpop.f32.mrb[0].mxu0
    %1061 = vmatprep.mubr.bf16.mxu0 %v336
    %1062 = vmatmul.mubr.bf16.gmra.mrb[0].mxu0 %v335
    %v1063 = vpop.f32.mrb[0].mxu0
    %v1064 = vadd.f32 %v279, %v1063
    %v1065 = vpop.f32.mrb[0].mxu0
    %v1066 = vpop.f32.mrb[0].mxu0
    %v1067 = vadd.f32 %v279, %v1066
    %v1068 = vpop.f32.mrb[0].mxu0
    %1069 = vmatprep.mubr.bf16.mxu0 %v340
    %1070 = vmatmul.mubr.bf16.gmra.mrb[0].mxu0 %v339
    %v1071 = vpop.f32.mrb[0].mxu0
    %v1072 = vadd.f32 %v279, %v1071
    %v1073 = vpop.f32.mrb[0].mxu0
    %v1074 = vpop.f32.mrb[0].mxu0
    %v1075 = vadd.f32 %v279, %v1074
    %v1076 = vpop.f32.mrb[0].mxu0
    %1077 = vmatprep.mubr.bf16.mxu0 %v344
    %1078 = vmatmul.mubr.bf16.gmra.mrb[0].mxu0 %v343
    %v1079 = vpop.f32.mrb[0].mxu0
    %v1080 = vadd.f32 %v279, %v1079
    %v1081 = vpop.f32.mrb[0].mxu0
    %v1082 = vpop.f32.mrb[0].mxu0
    %v1083 = vadd.f32 %v279, %v1082
    %v1084 = vpop.f32.mrb[0].mxu0
    %1085 = vdwg.mxu0
    %1086 = vmatprep.subr.bf16.mxu0 0
    %1087 = vmatpush1.bf16.msra.mxu0 %v733
    %1088 = vmatprep.subr.bf16.mxu0 0
    %1089 = vmatpush1.bf16.msra.mxu0 %v736
    %1090 = vmatprep.subr.bf16.mxu0 0
    %1091 = vmatpush1.bf16.msra.mxu0 %v739
    %1092 = vmatprep.subr.bf16.mxu0 0
    %1093 = vmatpush1.bf16.msra.mxu0 %v742
    %1094 = vmatprep.subr.bf16.mxu0 0
    %1095 = vmatpush1.bf16.msra.mxu0 %v745
    %1096 = vmatprep.subr.bf16.mxu0 0
    %1097 = vmatpush1.bf16.msra.mxu0 %v748
    %1098 = vmatprep.subr.bf16.mxu0 0
    %1099 = vmatpush1.bf16.msra.mxu0 %v751
    %1100 = vmatprep.subr.bf16.mxu0 0
    %1101 = vmatpush1.bf16.msra.mxu0 %v754
    %1102 = vmatprep.subr.bf16.mxu0 0
    %1103 = vmatpush1.bf16.msra.mxu0 %v757
    %1104 = vmatprep.subr.bf16.mxu0 0
    %1105 = vmatpush1.bf16.msra.mxu0 %v760
    %1106 = vmatprep.subr.bf16.mxu0 0
    %1107 = vmatpush1.bf16.msra.mxu0 %v763
    %1108 = vmatprep.subr.bf16.mxu0 0
    %1109 = vmatpush1.bf16.msra.mxu0 %v766
    %1110 = vmatprep.subr.bf16.mxu0 0
    %1111 = vmatpush1.bf16.msra.mxu0 %v769
    %1112 = vmatprep.subr.bf16.mxu0 0
    %1113 = vmatpush1.bf16.msra.mxu0 %v772
    %1114 = vmatprep.subr.bf16.mxu0 0
    %1115 = vmatpush1.bf16.msra.mxu0 %v775
    %1116 = vmatprep.subr.bf16.mxu0 0
    %1117 = vmatpush1.bf16.msra.mxu0 %v778
    %1118 = vmatprep.mubr.bf16.mxu0 %v334
    %1119 = vmatmul.mubr.bf16.gmra.mrb[0].mxu0 %v333
    %v1120 = vpop.f32.mrb[0].mxu0
    %v1121 = vadd.f32 %v1056, %v1120
    %v1122 = vpop.f32.mrb[0].mxu0
    %v1123 = vpop.f32.mrb[0].mxu0
    %v1124 = vadd.f32 %v1059, %v1123
    %v1125 = vpop.f32.mrb[0].mxu0
    %1126 = vmatprep.mubr.bf16.mxu0 %v338
    %1127 = vmatmul.mubr.bf16.gmra.mrb[0].mxu0 %v337
    %v1128 = vpop.f32.mrb[0].mxu0
    %v1129 = vadd.f32 %v1064, %v1128
    %v1130 = vpop.f32.mrb[0].mxu0
    %v1131 = vpop.f32.mrb[0].mxu0
    %v1132 = vadd.f32 %v1067, %v1131
    %v1133 = vpop.f32.mrb[0].mxu0
    %1134 = vmatprep.mubr.bf16.mxu0 %v342
    %1135 = vmatmul.mubr.bf16.gmra.mrb[0].mxu0 %v341
    %v1136 = vpop.f32.mrb[0].mxu0
    %v1137 = vadd.f32 %v1072, %v1136
    %v1138 = vpop.f32.mrb[0].mxu0
    %v1139 = vpop.f32.mrb[0].mxu0
    %v1140 = vadd.f32 %v1075, %v1139
    %v1141 = vpop.f32.mrb[0].mxu0
    %1142 = vmatprep.mubr.bf16.mxu0 %v346
    %1143 = vmatmul.mubr.bf16.gmra.mrb[0].mxu0 %v345
    %v1144 = vpop.f32.mrb[0].mxu0
    %v1145 = vadd.f32 %v1080, %v1144
    %v1146 = vpop.f32.mrb[0].mxu0
    %v1147 = vpop.f32.mrb[0].mxu0
    %v1148 = vadd.f32 %v1083, %v1147
    %v1149 = vpop.f32.mrb[0].mxu0
    %1150 = vdwg.mxu0
    %1151 = vst [vmem:[#allocation2] sm:$0xff] %v983
    %1152 = vst [vmem:[#allocation2 + $0x8] sm:$0xff] %v985
    %1153 = vst [vmem:[#allocation2 + $0x10] sm:$0xff] %v1121
    %1154 = vst [vmem:[#allocation2 + $0x18] sm:$0xff] %v987
    %1155 = vst [vmem:[#allocation2 + $0x20] sm:$0xff] %v989
    %1156 = vst [vmem:[#allocation2 + $0x28] sm:$0xff] %v1124
    %1157 = vst [vmem:[#allocation2 + $0x30] sm:$0xff] %v993
    %1158 = vst [vmem:[#allocation2 + $0x38] sm:$0xff] %v995
    %1159 = vst [vmem:[#allocation2 + $0x40] sm:$0xff] %v1129
    %1160 = vst [vmem:[#allocation2 + $0x48] sm:$0xff] %v997
    %1161 = vst [vmem:[#allocation2 + $0x50] sm:$0xff] %v999
    %1162 = vst [vmem:[#allocation2 + $0x58] sm:$0xff] %v1132
    %1163 = vst [vmem:[#allocation2 + $0x60] sm:$0xff] %v1003
    %1164 = vst [vmem:[#allocation2 + $0x68] sm:$0xff] %v1005
    %1165 = vst [vmem:[#allocation2 + $0x70] sm:$0xff] %v1137
    %1166 = vst [vmem:[#allocation2 + $0x78] sm:$0xff] %v1007
    %1167 = vst [vmem:[#allocation2 + $0x80] sm:$0xff] %v1009
    %1168 = vst [vmem:[#allocation2 + $0x88] sm:$0xff] %v1140
    %1169 = vst [vmem:[#allocation2 + $0x90] sm:$0xff] %v1013
    %1170 = vst [vmem:[#allocation2 + $0x98] sm:$0xff] %v1015
    %1171 = vst [vmem:[#allocation2 + $0xa0] sm:$0xff] %v1145
    %1172 = vst [vmem:[#allocation2 + $0xa8] sm:$0xff] %v1017
    %1173 = vst [vmem:[#allocation2 + $0xb0] sm:$0xff] %v1019
    %1174 = vst [vmem:[#allocation2 + $0xb8] sm:$0xff] %v1148
    %v1175 = vld [vmem:[#allocation8] sm:$0xff]
    %v1176 = vld [vmem:[#allocation8 + $0x8] sm:$0xf]
    %v1177 = vld [vmem:[#allocation8 + $0xc] sm:$0xff]
    %v1178 = vld [vmem:[#allocation8 + $0x14] sm:$0xf]
    %v1179 = vld [vmem:[#allocation8 + $0x18] sm:$0xff]
    %v1180 = vld [vmem:[#allocation8 + $0x20] sm:$0xf]
    %v1181 = vld [vmem:[#allocation8 + $0x24] sm:$0xff]
    %v1182 = vld [vmem:[#allocation8 + $0x2c] sm:$0xf]
    %v1183 = vld [vmem:[#allocation8 + $0x30] sm:$0xff]
    %v1184 = vld [vmem:[#allocation8 + $0x38] sm:$0xf]
    %v1185 = vld [vmem:[#allocation8 + $0x3c] sm:$0xff]
    %v1186 = vld [vmem:[#allocation8 + $0x44] sm:$0xf]
    %v1187 = vld [vmem:[#allocation8 + $0x48] sm:$0xff]
    %v1188 = vld [vmem:[#allocation8 + $0x50] sm:$0xf]
    %v1189 = vld [vmem:[#allocation8 + $0x54] sm:$0xff]
    %v1190 = vld [vmem:[#allocation8 + $0x5c] sm:$0xf]
    %v1191 = vld [vmem:[#allocation8 + $0x60] sm:$0xff]
    %v1192 = vld [vmem:[#allocation8 + $0x68] sm:$0xf]
    %v1193 = vld [vmem:[#allocation8 + $0x6c] sm:$0xff]
    %v1194 = vld [vmem:[#allocation8 + $0x74] sm:$0xf]
    %v1195 = vld [vmem:[#allocation8 + $0x78] sm:$0xff]
    %v1196 = vld [vmem:[#allocation8 + $0x80] sm:$0xf]
    %v1197 = vld [vmem:[#allocation8 + $0x84] sm:$0xff]
    %v1198 = vld [vmem:[#allocation8 + $0x8c] sm:$0xf]
    %v1199 = vld [vmem:[#allocation8 + $0x90] sm:$0xff]
    %v1200 = vld [vmem:[#allocation8 + $0x98] sm:$0xf]
    %v1201 = vld [vmem:[#allocation8 + $0x9c] sm:$0xff]
    %v1202 = vld [vmem:[#allocation8 + $0xa4] sm:$0xf]
    %v1203 = vld [vmem:[#allocation8 + $0xa8] sm:$0xff]
    %v1204 = vld [vmem:[#allocation8 + $0xb0] sm:$0xf]
    %v1205 = vld [vmem:[#allocation8 + $0xb4] sm:$0xff]
    %v1206 = vld [vmem:[#allocation8 + $0xbc] sm:$0xf]
    %v1207 = vld [vmem:[%s4] sm:$0x7]
    %v1209 = vlaneseq
    %v1210 = vshrl.u32 %v1209, 7
    %v1211 = vsub.s32 0, %v1210
    %v1212 = vrot.slane %v1207, %v1211
    %v1213 = vlaneseq
    %v1214 = vshrl.u32 %v1213, 7
    %v1215 = vsub.s32 1, %v1214
    %v1216 = vrot.slane %v1207, %v1215
    %v1217 = vlaneseq
    %v1218 = vshrl.u32 %v1217, 7
    %v1219 = vsub.s32 2, %v1218
    %v1220 = vrot.slane %v1207, %v1219
    %v1224 = vld [vmem:[#allocation2] sm:$0xff]
    %v1225 = vld [vmem:[#allocation2 + $0x8] sm:$0xff]
    %v1226 = vld [vmem:[#allocation2 + $0x10] sm:$0xff]
    %v1259 = vunpack.c.l.b16 %v1175
    %v1260 = vunpack.c.h.b16 %v1175
    %v1261 = vunpack.c.l.b16 %v1176
    %v1262 = vunpack.c.l.b16 %v1177
    %v1263 = vunpack.c.h.b16 %v1177
    %v1264 = vunpack.c.l.b16 %v1178
    %v1265 = vunpack.c.l.b16 %v1179
    %v1266 = vunpack.c.h.b16 %v1179
    %v1267 = vunpack.c.l.b16 %v1180
    %v1268 = vunpack.c.l.b16 %v1181
    %v1269 = vunpack.c.h.b16 %v1181
    %v1270 = vunpack.c.l.b16 %v1182
    %v1271 = vunpack.c.l.b16 %v1183
    %v1272 = vunpack.c.h.b16 %v1183
    %v1273 = vunpack.c.l.b16 %v1184
    %v1274 = vunpack.c.l.b16 %v1185
    %v1275 = vunpack.c.h.b16 %v1185
    %v1276 = vunpack.c.l.b16 %v1186
    %v1277 = vunpack.c.l.b16 %v1187
    %v1278 = vunpack.c.h.b16 %v1187
    %v1279 = vunpack.c.l.b16 %v1188
    %v1280 = vunpack.c.l.b16 %v1189
    %v1281 = vunpack.c.h.b16 %v1189
    %v1282 = vunpack.c.l.b16 %v1190
    %v1283 = vunpack.c.l.b16 %v1191
    %v1284 = vunpack.c.h.b16 %v1191
    %v1285 = vunpack.c.l.b16 %v1192
    %v1286 = vunpack.c.l.b16 %v1193
    %v1287 = vunpack.c.h.b16 %v1193
    %v1288 = vunpack.c.l.b16 %v1194
    %v1289 = vunpack.c.l.b16 %v1195
    %v1290 = vunpack.c.h.b16 %v1195
    %v1291 = vunpack.c.l.b16 %v1196
    %v1292 = vunpack.c.l.b16 %v1197
    %v1293 = vunpack.c.h.b16 %v1197
    %v1294 = vunpack.c.l.b16 %v1198
    %v1295 = vunpack.c.l.b16 %v1199
    %v1296 = vunpack.c.h.b16 %v1199
    %v1297 = vunpack.c.l.b16 %v1200
    %v1298 = vunpack.c.l.b16 %v1201
    %v1299 = vunpack.c.h.b16 %v1201
    %v1300 = vunpack.c.l.b16 %v1202
    %v1301 = vunpack.c.l.b16 %v1203
    %v1302 = vunpack.c.h.b16 %v1203
    %v1303 = vunpack.c.l.b16 %v1204
    %v1304 = vunpack.c.l.b16 %v1205
    %v1305 = vunpack.c.h.b16 %v1205
    %v1306 = vunpack.c.l.b16 %v1206
    %v1307 = vpack.c.b16 %v1262, %v1259
    %v1308 = vpack.c.b16 %v1263, %v1260
    %v1309 = vpack.c.b16 %v1264, %v1261
    %v1310 = vpack.c.b16 %v1268, %v1265
    %v1311 = vpack.c.b16 %v1269, %v1266
    %v1312 = vpack.c.b16 %v1270, %v1267
    %v1313 = vpack.c.b16 %v1274, %v1271
    %v1314 = vpack.c.b16 %v1275, %v1272
    %v1315 = vpack.c.b16 %v1276, %v1273
    %v1316 = vpack.c.b16 %v1280, %v1277
    %v1317 = vpack.c.b16 %v1281, %v1278
    %v1318 = vpack.c.b16 %v1282, %v1279
    %v1319 = vpack.c.b16 %v1286, %v1283
    %v1320 = vpack.c.b16 %v1287, %v1284
    %v1321 = vpack.c.b16 %v1288, %v1285
    %v1322 = vpack.c.b16 %v1292, %v1289
    %v1323 = vpack.c.b16 %v1293, %v1290
    %v1324 = vpack.c.b16 %v1294, %v1291
    %v1325 = vpack.c.b16 %v1298, %v1295
    %v1326 = vpack.c.b16 %v1299, %v1296
    %v1327 = vpack.c.b16 %v1300, %v1297
    %v1328 = vpack.c.b16 %v1304, %v1301
    %v1329 = vpack.c.b16 %v1305, %v1302
    %v1330 = vpack.c.b16 %v1306, %v1303
    %1355 = vmatprep.subr.bf16.mxu0 %v1308
    %1356 = vmatpush1.bf16.msra.mxu0 %v1307
    %1357 = vmatprep.subr.bf16.mxu0 %v1311
    %1358 = vmatpush1.bf16.msra.mxu0 %v1310
    %1359 = vmatprep.subr.bf16.mxu0 %v1314
    %1360 = vmatpush1.bf16.msra.mxu0 %v1313
    %1361 = vmatprep.subr.bf16.mxu0 %v1317
    %1362 = vmatpush1.bf16.msra.mxu0 %v1316
    %1363 = vmatprep.subr.bf16.mxu0 %v1320
    %1364 = vmatpush1.bf16.msra.mxu0 %v1319
    %1365 = vmatprep.subr.bf16.mxu0 %v1323
    %1366 = vmatpush1.bf16.msra.mxu0 %v1322
    %1367 = vmatprep.subr.bf16.mxu0 %v1326
    %1368 = vmatpush1.bf16.msra.mxu0 %v1325
    %1369 = vmatprep.subr.bf16.mxu0 %v1329
    %1370 = vmatpush1.bf16.msra.mxu0 %v1328
    %1371 = vmatprep.subr.bf16.mxu0 0
    %1372 = vmatpush1.bf16.msra.mxu0 0
    %1373 = vmatprep.subr.bf16.mxu0 0
    %1374 = vmatpush1.bf16.msra.mxu0 0
    %1375 = vmatprep.subr.bf16.mxu0 0
    %1376 = vmatpush1.bf16.msra.mxu0 0
    %1377 = vmatprep.subr.bf16.mxu0 0
    %1378 = vmatpush1.bf16.msra.mxu0 0
    %1379 = vmatprep.subr.bf16.mxu0 0
    %1380 = vmatpush1.bf16.msra.mxu0 0
    %1381 = vmatprep.subr.bf16.mxu0 0
    %1382 = vmatpush1.bf16.msra.mxu0 0
    %1383 = vmatprep.subr.bf16.mxu0 0
    %1384 = vmatpush1.bf16.msra.mxu0 0
    %1385 = vmatprep.subr.bf16.mxu0 0
    %1386 = vmatpush1.bf16.msra.mxu0 0
    %1387 = vmatprep.mubr.bf16.mxu0 0
    %1388 = vmatmul.mubr.bf16.gmra.mrb[0].mxu0 0
    %v1389 = vpop.f32.mrb[0].mxu0
    %v1390 = vadd.f32 %v1212, %v1389
    %v1391 = vpop.f32.mrb[0].mxu0
    %v1392 = vadd.f32 %v1216, %v1391
    %v1393 = vpop.f32.mrb[0].mxu0
    %v1394 = vpop.f32.mrb[0].mxu0
    %1395 = vdwg.mxu0
    %1396 = vmatprep.subr.bf16.mxu0 0
    %1397 = vmatpush1.bf16.msra.mxu0 %v1309
    %1398 = vmatprep.subr.bf16.mxu0 0
    %1399 = vmatpush1.bf16.msra.mxu0 %v1312
    %1400 = vmatprep.subr.bf16.mxu0 0
    %1401 = vmatpush1.bf16.msra.mxu0 %v1315
    %1402 = vmatprep.subr.bf16.mxu0 0
    %1403 = vmatpush1.bf16.msra.mxu0 %v1318
    %1404 = vmatprep.subr.bf16.mxu0 0
    %1405 = vmatpush1.bf16.msra.mxu0 %v1321
    %1406 = vmatprep.subr.bf16.mxu0 0
    %1407 = vmatpush1.bf16.msra.mxu0 %v1324
    %1408 = vmatprep.subr.bf16.mxu0 0
    %1409 = vmatpush1.bf16.msra.mxu0 %v1327
    %1410 = vmatprep.subr.bf16.mxu0 0
    %1411 = vmatpush1.bf16.msra.mxu0 %v1330
    %1412 = vmatprep.subr.bf16.mxu0 0
    %1413 = vmatpush1.bf16.msra.mxu0 0
    %1414 = vmatprep.subr.bf16.mxu0 0
    %1415 = vmatpush1.bf16.msra.mxu0 0
    %1416 = vmatprep.subr.bf16.mxu0 0
    %1417 = vmatpush1.bf16.msra.mxu0 0
    %1418 = vmatprep.subr.bf16.mxu0 0
    %1419 = vmatpush1.bf16.msra.mxu0 0
    %1420 = vmatprep.subr.bf16.mxu0 0
    %1421 = vmatpush1.bf16.msra.mxu0 0
    %1422 = vmatprep.subr.bf16.mxu0 0
    %1423 = vmatpush1.bf16.msra.mxu0 0
    %1424 = vmatprep.subr.bf16.mxu0 0
    %1425 = vmatpush1.bf16.msra.mxu0 0
    %1426 = vmatprep.subr.bf16.mxu0 0
    %1427 = vmatpush1.bf16.msra.mxu0 0
    %1428 = vmatprep.mubr.bf16.mxu0 0
    %1429 = vmatmul.mubr.bf16.gmra.mrb[0].mxu0 0
    %v1430 = vpop.f32.mrb[0].mxu0
    %v1431 = vadd.f32 %v1220, %v1430
    %v1432 = vpop.f32.mrb[0].mxu0
    %v1433 = vpop.f32.mrb[0].mxu0
    %v1434 = vpop.f32.mrb[0].mxu0
    %1435 = vdwg.mxu0
    %v1436 = vadd.f32 %v1224, %v1390
    %v1437 = vxor.u32 %v1436, 2147483648
    %v1438 = vmul.f32 %v1437, 1.442695
    %v1439 = vpow.pop %v1438
    %v1440 = vadd.f32 %v1439, 1.0
    %v1441 = vrcp.pop %v1440
    %v1442 = vmul.f32 1.0, %v1441
    %v1443 = vadd.f32 %v1225, %v1392
    %v1444 = vxor.u32 %v1443, 2147483648
    %v1445 = vmul.f32 %v1444, 1.442695
    %v1446 = vpow.pop %v1445
    %v1447 = vadd.f32 %v1446, 1.0
    %v1448 = vrcp.pop %v1447
    %v1449 = vmul.f32 1.0, %v1448
    %v1450 = vmul.f32 %v1442, %v1431
    %v1451 = vadd.f32 %v1226, %v1450
    %v1452 = vtanh.pop %v1451
    %v1453 = vsub.f32 1.0, %v1449
    %v1454 = vmul.f32 %v1453, %v1452
    %v1455 = vmul.f32 %v1449, 0.0
    %v1456 = vadd.f32 %v1454, %v1455
    %v1457 = vld [vmem:[#allocation2 + $0x18] sm:$0xff]
    %v1458 = vld [vmem:[#allocation2 + $0x20] sm:$0xff]
    %v1459 = vld [vmem:[#allocation2 + $0x28] sm:$0xff]
    %v1460 = vpack.c.bf16 %v1456, %v1456
    %1461 = vmatprep.subr.bf16.mxu0 %v1308
    %1462 = vmatpush1.bf16.msra.mxu0 %v1307
    %1463 = vmatprep.subr.bf16.mxu0 %v1311
    %1464 = vmatpush1.bf16.msra.mxu0 %v1310
    %1465 = vmatprep.subr.bf16.mxu0 %v1314
    %1466 = vmatpush1.bf16.msra.mxu0 %v1313
    %1467 = vmatprep.subr.bf16.mxu0 %v1317
    %1468 = vmatpush1.bf16.msra.mxu0 %v1316
    %1469 = vmatprep.subr.bf16.mxu0 %v1320
    %1470 = vmatpush1.bf16.msra.mxu0 %v1319
    %1471 = vmatprep.subr.bf16.mxu0 %v1323
    %1472 = vmatpush1.bf16.msra.mxu0 %v1322
    %1473 = vmatprep.subr.bf16.mxu0 %v1326
    %1474 = vmatpush1.bf16.msra.mxu0 %v1325
    %1475 = vmatprep.subr.bf16.mxu0 %v1329
    %1476 = vmatpush1.bf16.msra.mxu0 %v1328
    %1477 = vmatprep.subr.bf16.mxu0 0
    %1478 = vmatpush1.bf16.msra.mxu0 0
    %1479 = vmatprep.subr.bf16.mxu0 0
    %1480 = vmatpush1.bf16.msra.mxu0 0
    %1481 = vmatprep.subr.bf16.mxu0 0
    %1482 = vmatpush1.bf16.msra.mxu0 0
    %1483 = vmatprep.subr.bf16.mxu0 0
    %1484 = vmatpush1.bf16.msra.mxu0 0
    %1485 = vmatprep.subr.bf16.mxu0 0
    %1486 = vmatpush1.bf16.msra.mxu0 0
    %1487 = vmatprep.subr.bf16.mxu0 0
    %1488 = vmatpush1.bf16.msra.mxu0 0
    %1489 = vmatprep.subr.bf16.mxu0 0
    %1490 = vmatpush1.bf16.msra.mxu0 0
    %1491 = vmatprep.subr.bf16.mxu0 0
    %1492 = vmatpush1.bf16.msra.mxu0 0
    %1493 = vmatprep.mubr.bf16.mxu0 0
    %1494 = vmatmul.mubr.bf16.gmra.mrb[0].mxu0 %v1460
    %v1495 = vpop.f32.mrb[0].mxu0
    %v1496 = vadd.f32 %v1212, %v1495
    %v1497 = vpop.f32.mrb[0].mxu0
    %v1498 = vadd.f32 %v1216, %v1497
    %v1499 = vpop.f32.mrb[0].mxu0
    %v1500 = vpop.f32.mrb[0].mxu0
    %1501 = vdwg.mxu0
    %1502 = vmatprep.subr.bf16.mxu0 0
    %1503 = vmatpush1.bf16.msra.mxu0 %v1309
    %1504 = vmatprep.subr.bf16.mxu0 0
    %1505 = vmatpush1.bf16.msra.mxu0 %v1312
    %1506 = vmatprep.subr.bf16.mxu0 0
    %1507 = vmatpush1.bf16.msra.mxu0 %v1315
    %1508 = vmatprep.subr.bf16.mxu0 0
    %1509 = vmatpush1.bf16.msra.mxu0 %v1318
    %1510 = vmatprep.subr.bf16.mxu0 0
    %1511 = vmatpush1.bf16.msra.mxu0 %v1321
    %1512 = vmatprep.subr.bf16.mxu0 0
    %1513 = vmatpush1.bf16.msra.mxu0 %v1324
    %1514 = vmatprep.subr.bf16.mxu0 0
    %1515 = vmatpush1.bf16.msra.mxu0 %v1327
    %1516 = vmatprep.subr.bf16.mxu0 0
    %1517 = vmatpush1.bf16.msra.mxu0 %v1330
    %1518 = vmatprep.subr.bf16.mxu0 0
    %1519 = vmatpush1.bf16.msra.mxu0 0
    %1520 = vmatprep.subr.bf16.mxu0 0
    %1521 = vmatpush1.bf16.msra.mxu0 0
    %1522 = vmatprep.subr.bf16.mxu0 0
    %1523 = vmatpush1.bf16.msra.mxu0 0
    %1524 = vmatprep.subr.bf16.mxu0 0
    %1525 = vmatpush1.bf16.msra.mxu0 0
    %1526 = vmatprep.subr.bf16.mxu0 0
    %1527 = vmatpush1.bf16.msra.mxu0 0
    %1528 = vmatprep.subr.bf16.mxu0 0
    %1529 = vmatpush1.bf16.msra.mxu0 0
    %1530 = vmatprep.subr.bf16.mxu0 0
    %1531 = vmatpush1.bf16.msra.mxu0 0
    %1532 = vmatprep.subr.bf16.mxu0 0
    %1533 = vmatpush1.bf16.msra.mxu0 0
    %1534 = vmatprep.mubr.bf16.mxu0 0
    %1535 = vmatmul.mubr.bf16.gmra.mrb[0].mxu0 %v1460
    %v1536 = vpop.f32.mrb[0].mxu0
    %v1537 = vadd.f32 %v1220, %v1536
    %v1538 = vpop.f32.mrb[0].mxu0
    %v1539 = vpop.f32.mrb[0].mxu0
    %v1540 = vpop.f32.mrb[0].mxu0
    %1541 = vdwg.mxu0
    %v1542 = vadd.f32 %v1457, %v1496
    %v1543 = vxor.u32 %v1542, 2147483648
    %v1544 = vmul.f32 %v1543, 1.442695
    %v1545 = vpow.pop %v1544
    %v1546 = vadd.f32 %v1545, 1.0
    %v1547 = vrcp.pop %v1546
    %v1548 = vmul.f32 1.0, %v1547
    %v1549 = vadd.f32 %v1458, %v1498
    %v1550 = vxor.u32 %v1549, 2147483648
    %v1551 = vmul.f32 %v1550, 1.442695
    %v1552 = vpow.pop %v1551
    %v1553 = vadd.f32 %v1552, 1.0
    %v1554 = vrcp.pop %v1553
    %v1555 = vmul.f32 1.0, %v1554
    %v1556 = vmul.f32 %v1548, %v1537
    %v1557 = vadd.f32 %v1459, %v1556
    %v1558 = vtanh.pop %v1557
    %v1559 = vsub.f32 1.0, %v1555
    %v1560 = vmul.f32 %v1559, %v1558
    %v1561 = vmul.f32 %v1555, %v1456
    %v1562 = vadd.f32 %v1560, %v1561
    %v1563 = vld [vmem:[#allocation2 + $0x30] sm:$0xff]
    %v1564 = vld [vmem:[#allocation2 + $0x38] sm:$0xff]
    %v1565 = vld [vmem:[#allocation2 + $0x40] sm:$0xff]
    %v1566 = vpack.c.bf16 %v1562, %v1562
    %1567 = vmatprep.subr.bf16.mxu0 %v1308
    %1568 = vmatpush1.bf16.msra.mxu0 %v1307
    %1569 = vmatprep.subr.bf16.mxu0 %v1311
    %1570 = vmatpush1.bf16.msra.mxu0 %v1310
    %1571 = vmatprep.subr.bf16.mxu0 %v1314
    %1572 = vmatpush1.bf16.msra.mxu0 %v1313
    %1573 = vmatprep.subr.bf16.mxu0 %v1317
    %1574 = vmatpush1.bf16.msra.mxu0 %v1316
    %1575 = vmatprep.subr.bf16.mxu0 %v1320
    %1576 = vmatpush1.bf16.msra.mxu0 %v1319
    %1577 = vmatprep.subr.bf16.mxu0 %v1323
    %1578 = vmatpush1.bf16.msra.mxu0 %v1322
    %1579 = vmatprep.subr.bf16.mxu0 %v1326
    %1580 = vmatpush1.bf16.msra.mxu0 %v1325
    %1581 = vmatprep.subr.bf16.mxu0 %v1329
    %1582 = vmatpush1.bf16.msra.mxu0 %v1328
    %1583 = vmatprep.subr.bf16.mxu0 0
    %1584 = vmatpush1.bf16.msra.mxu0 0
    %1585 = vmatprep.subr.bf16.mxu0 0
    %1586 = vmatpush1.bf16.msra.mxu0 0
    %1587 = vmatprep.subr.bf16.mxu0 0
    %1588 = vmatpush1.bf16.msra.mxu0 0
    %1589 = vmatprep.subr.bf16.mxu0 0
    %1590 = vmatpush1.bf16.msra.mxu0 0
    %1591 = vmatprep.subr.bf16.mxu0 0
    %1592 = vmatpush1.bf16.msra.mxu0 0
    %1593 = vmatprep.subr.bf16.mxu0 0
    %1594 = vmatpush1.bf16.msra.mxu0 0
    %1595 = vmatprep.subr.bf16.mxu0 0
    %1596 = vmatpush1.bf16.msra.mxu0 0
    %1597 = vmatprep.subr.bf16.mxu0 0
    %1598 = vmatpush1.bf16.msra.mxu0 0
    %1599 = vmatprep.mubr.bf16.mxu0 0
    %1600 = vmatmul.mubr.bf16.gmra.mrb[0].mxu0 %v1566
    %v1601 = vpop.f32.mrb[0].mxu0
    %v1602 = vadd.f32 %v1212, %v1601
    %v1603 = vpop.f32.mrb[0].mxu0
    %v1604 = vadd.f32 %v1216, %v1603
    %v1605 = vpop.f32.mrb[0].mxu0
    %v1606 = vpop.f32.mrb[0].mxu0
    %1607 = vdwg.mxu0
    %1608 = vmatprep.subr.bf16.mxu0 0
    %1609 = vmatpush1.bf16.msra.mxu0 %v1309
    %1610 = vmatprep.subr.bf16.mxu0 0
    %1611 = vmatpush1.bf16.msra.mxu0 %v1312
    %1612 = vmatprep.subr.bf16.mxu0 0
    %1613 = vmatpush1.bf16.msra.mxu0 %v1315
    %1614 = vmatprep.subr.bf16.mxu0 0
    %1615 = vmatpush1.bf16.msra.mxu0 %v1318
    %1616 = vmatprep.subr.bf16.mxu0 0
    %1617 = vmatpush1.bf16.msra.mxu0 %v1321
    %1618 = vmatprep.subr.bf16.mxu0 0
    %1619 = vmatpush1.bf16.msra.mxu0 %v1324
    %1620 = vmatprep.subr.bf16.mxu0 0
    %1621 = vmatpush1.bf16.msra.mxu0 %v1327
    %1622 = vmatprep.subr.bf16.mxu0 0
    %1623 = vmatpush1.bf16.msra.mxu0 %v1330
    %1624 = vmatprep.subr.bf16.mxu0 0
    %1625 = vmatpush1.bf16.msra.mxu0 0
    %1626 = vmatprep.subr.bf16.mxu0 0
    %1627 = vmatpush1.bf16.msra.mxu0 0
    %1628 = vmatprep.subr.bf16.mxu0 0
    %1629 = vmatpush1.bf16.msra.mxu0 0
    %1630 = vmatprep.subr.bf16.mxu0 0
    %1631 = vmatpush1.bf16.msra.mxu0 0
    %1632 = vmatprep.subr.bf16.mxu0 0
    %1633 = vmatpush1.bf16.msra.mxu0 0
    %1634 = vmatprep.subr.bf16.mxu0 0
    %1635 = vmatpush1.bf16.msra.mxu0 0
    %1636 = vmatprep.subr.bf16.mxu0 0
    %1637 = vmatpush1.bf16.msra.mxu0 0
    %1638 = vmatprep.subr.bf16.mxu0 0
    %1639 = vmatpush1.bf16.msra.mxu0 0
    %1640 = vmatprep.mubr.bf16.mxu0 0
    %1641 = vmatmul.mubr.bf16.gmra.mrb[0].mxu0 %v1566
    %v1642 = vpop.f32.mrb[0].mxu0
    %v1643 = vadd.f32 %v1220, %v1642
    %v1644 = vpop.f32.mrb[0].mxu0
    %v1645 = vpop.f32.mrb[0].mxu0
    %v1646 = vpop.f32.mrb[0].mxu0
    %1647 = vdwg.mxu0
    %v1648 = vadd.f32 %v1563, %v1602
    %v1649 = vxor.u32 %v1648, 2147483648
    %v1650 = vmul.f32 %v1649, 1.442695
    %v1651 = vpow.pop %v1650
    %v1652 = vadd.f32 %v1651, 1.0
    %v1653 = vrcp.pop %v1652
    %v1654 = vmul.f32 1.0, %v1653
    %v1655 = vadd.f32 %v1564, %v1604
    %v1656 = vxor.u32 %v1655, 2147483648
    %v1657 = vmul.f32 %v1656, 1.442695
    %v1658 = vpow.pop %v1657
    %v1659 = vadd.f32 %v1658, 1.0
    %v1660 = vrcp.pop %v1659
    %v1661 = vmul.f32 1.0, %v1660
    %v1662 = vmul.f32 %v1654, %v1643
    %v1663 = vadd.f32 %v1565, %v1662
    %v1664 = vtanh.pop %v1663
    %v1665 = vsub.f32 1.0, %v1661
    %v1666 = vmul.f32 %v1665, %v1664
    %v1667 = vmul.f32 %v1661, %v1562
    %v1668 = vadd.f32 %v1666, %v1667
    %v1669 = vld [vmem:[#allocation2 + $0x48] sm:$0xff]
    %v1670 = vld [vmem:[#allocation2 + $0x50] sm:$0xff]
    %v1671 = vld [vmem:[#allocation2 + $0x58] sm:$0xff]
    %v1672 = vpack.c.bf16 %v1668, %v1668
    %1673 = vmatprep.subr.bf16.mxu0 %v1308
    %1674 = vmatpush1.bf16.msra.mxu0 %v1307
    %1675 = vmatprep.subr.bf16.mxu0 %v1311
    %1676 = vmatpush1.bf16.msra.mxu0 %v1310
    %1677 = vmatprep.subr.bf16.mxu0 %v1314
    %1678 = vmatpush1.bf16.msra.mxu0 %v1313
    %1679 = vmatprep.subr.bf16.mxu0 %v1317
    %1680 = vmatpush1.bf16.msra.mxu0 %v1316
    %1681 = vmatprep.subr.bf16.mxu0 %v1320
    %1682 = vmatpush1.bf16.msra.mxu0 %v1319
    %1683 = vmatprep.subr.bf16.mxu0 %v1323
    %1684 = vmatpush1.bf16.msra.mxu0 %v1322
    %1685 = vmatprep.subr.bf16.mxu0 %v1326
    %1686 = vmatpush1.bf16.msra.mxu0 %v1325
    %1687 = vmatprep.subr.bf16.mxu0 %v1329
    %1688 = vmatpush1.bf16.msra.mxu0 %v1328
    %1689 = vmatprep.subr.bf16.mxu0 0
    %1690 = vmatpush1.bf16.msra.mxu0 0
    %1691 = vmatprep.subr.bf16.mxu0 0
    %1692 = vmatpush1.bf16.msra.mxu0 0
    %1693 = vmatprep.subr.bf16.mxu0 0
    %1694 = vmatpush1.bf16.msra.mxu0 0
    %1695 = vmatprep.subr.bf16.mxu0 0
    %1696 = vmatpush1.bf16.msra.mxu0 0
    %1697 = vmatprep.subr.bf16.mxu0 0
    %1698 = vmatpush1.bf16.msra.mxu0 0
    %1699 = vmatprep.subr.bf16.mxu0 0
    %1700 = vmatpush1.bf16.msra.mxu0 0
    %1701 = vmatprep.subr.bf16.mxu0 0
    %1702 = vmatpush1.bf16.msra.mxu0 0
    %1703 = vmatprep.subr.bf16.mxu0 0
    %1704 = vmatpush1.bf16.msra.mxu0 0
    %1705 = vmatprep.mubr.bf16.mxu0 0
    %1706 = vmatmul.mubr.bf16.gmra.mrb[0].mxu0 %v1672
    %v1707 = vpop.f32.mrb[0].mxu0
    %v1708 = vadd.f32 %v1212, %v1707
    %v1709 = vpop.f32.mrb[0].mxu0
    %v1710 = vadd.f32 %v1216, %v1709
    %v1711 = vpop.f32.mrb[0].mxu0
    %v1712 = vpop.f32.mrb[0].mxu0
    %1713 = vdwg.mxu0
    %1714 = vmatprep.subr.bf16.mxu0 0
    %1715 = vmatpush1.bf16.msra.mxu0 %v1309
    %1716 = vmatprep.subr.bf16.mxu0 0
    %1717 = vmatpush1.bf16.msra.mxu0 %v1312
    %1718 = vmatprep.subr.bf16.mxu0 0
    %1719 = vmatpush1.bf16.msra.mxu0 %v1315
    %1720 = vmatprep.subr.bf16.mxu0 0
    %1721 = vmatpush1.bf16.msra.mxu0 %v1318
    %1722 = vmatprep.subr.bf16.mxu0 0
    %1723 = vmatpush1.bf16.msra.mxu0 %v1321
    %1724 = vmatprep.subr.bf16.mxu0 0
    %1725 = vmatpush1.bf16.msra.mxu0 %v1324
    %1726 = vmatprep.subr.bf16.mxu0 0
    %1727 = vmatpush1.bf16.msra.mxu0 %v1327
    %1728 = vmatprep.subr.bf16.mxu0 0
    %1729 = vmatpush1.bf16.msra.mxu0 %v1330
    %1730 = vmatprep.subr.bf16.mxu0 0
    %1731 = vmatpush1.bf16.msra.mxu0 0
    %1732 = vmatprep.subr.bf16.mxu0 0
    %1733 = vmatpush1.bf16.msra.mxu0 0
    %1734 = vmatprep.subr.bf16.mxu0 0
    %1735 = vmatpush1.bf16.msra.mxu0 0
    %1736 = vmatprep.subr.bf16.mxu0 0
    %1737 = vmatpush1.bf16.msra.mxu0 0
    %1738 = vmatprep.subr.bf16.mxu0 0
    %1739 = vmatpush1.bf16.msra.mxu0 0
    %1740 = vmatprep.subr.bf16.mxu0 0
    %1741 = vmatpush1.bf16.msra.mxu0 0
    %1742 = vmatprep.subr.bf16.mxu0 0
    %1743 = vmatpush1.bf16.msra.mxu0 0
    %1744 = vmatprep.subr.bf16.mxu0 0
    %1745 = vmatpush1.bf16.msra.mxu0 0
    %1746 = vmatprep.mubr.bf16.mxu0 0
    %1747 = vmatmul.mubr.bf16.gmra.mrb[0].mxu0 %v1672
    %v1748 = vpop.f32.mrb[0].mxu0
    %v1749 = vadd.f32 %v1220, %v1748
    %v1750 = vpop.f32.mrb[0].mxu0
    %v1751 = vpop.f32.mrb[0].mxu0
    %v1752 = vpop.f32.mrb[0].mxu0
    %1753 = vdwg.mxu0
    %v1754 = vadd.f32 %v1669, %v1708
    %v1755 = vxor.u32 %v1754, 2147483648
    %v1756 = vmul.f32 %v1755, 1.442695
    %v1757 = vpow.pop %v1756
    %v1758 = vadd.f32 %v1757, 1.0
    %v1759 = vrcp.pop %v1758
    %v1760 = vmul.f32 1.0, %v1759
    %v1761 = vadd.f32 %v1670, %v1710
    %v1762 = vxor.u32 %v1761, 2147483648
    %v1763 = vmul.f32 %v1762, 1.442695
    %v1764 = vpow.pop %v1763
    %v1765 = vadd.f32 %v1764, 1.0
    %v1766 = vrcp.pop %v1765
    %v1767 = vmul.f32 1.0, %v1766
    %v1768 = vmul.f32 %v1760, %v1749
    %v1769 = vadd.f32 %v1671, %v1768
    %v1770 = vtanh.pop %v1769
    %v1771 = vsub.f32 1.0, %v1767
    %v1772 = vmul.f32 %v1771, %v1770
    %v1773 = vmul.f32 %v1767, %v1668
    %v1774 = vadd.f32 %v1772, %v1773
    %v1775 = vld [vmem:[#allocation2 + $0x60] sm:$0xff]
    %v1776 = vld [vmem:[#allocation2 + $0x68] sm:$0xff]
    %v1777 = vld [vmem:[#allocation2 + $0x70] sm:$0xff]
    %v1778 = vpack.c.bf16 %v1774, %v1774
    %1779 = vmatprep.subr.bf16.mxu0 %v1308
    %1780 = vmatpush1.bf16.msra.mxu0 %v1307
    %1781 = vmatprep.subr.bf16.mxu0 %v1311
    %1782 = vmatpush1.bf16.msra.mxu0 %v1310
    %1783 = vmatprep.subr.bf16.mxu0 %v1314
    %1784 = vmatpush1.bf16.msra.mxu0 %v1313
    %1785 = vmatprep.subr.bf16.mxu0 %v1317
    %1786 = vmatpush1.bf16.msra.mxu0 %v1316
    %1787 = vmatprep.subr.bf16.mxu0 %v1320
    %1788 = vmatpush1.bf16.msra.mxu0 %v1319
    %1789 = vmatprep.subr.bf16.mxu0 %v1323
    %1790 = vmatpush1.bf16.msra.mxu0 %v1322
    %1791 = vmatprep.subr.bf16.mxu0 %v1326
    %1792 = vmatpush1.bf16.msra.mxu0 %v1325
    %1793 = vmatprep.subr.bf16.mxu0 %v1329
    %1794 = vmatpush1.bf16.msra.mxu0 %v1328
    %1795 = vmatprep.subr.bf16.mxu0 0
    %1796 = vmatpush1.bf16.msra.mxu0 0
    %1797 = vmatprep.subr.bf16.mxu0 0
    %1798 = vmatpush1.bf16.msra.mxu0 0
    %1799 = vmatprep.subr.bf16.mxu0 0
    %1800 = vmatpush1.bf16.msra.mxu0 0
    %1801 = vmatprep.subr.bf16.mxu0 0
    %1802 = vmatpush1.bf16.msra.mxu0 0
    %1803 = vmatprep.subr.bf16.mxu0 0
    %1804 = vmatpush1.bf16.msra.mxu0 0
    %1805 = vmatprep.subr.bf16.mxu0 0
    %1806 = vmatpush1.bf16.msra.mxu0 0
    %1807 = vmatprep.subr.bf16.mxu0 0
    %1808 = vmatpush1.bf16.msra.mxu0 0
    %1809 = vmatprep.subr.bf16.mxu0 0
    %1810 = vmatpush1.bf16.msra.mxu0 0
    %1811 = vmatprep.mubr.bf16.mxu0 0
    %1812 = vmatmul.mubr.bf16.gmra.mrb[0].mxu0 %v1778
    %v1813 = vpop.f32.mrb[0].mxu0
    %v1814 = vadd.f32 %v1212, %v1813
    %v1815 = vpop.f32.mrb[0].mxu0
    %v1816 = vadd.f32 %v1216, %v1815
    %v1817 = vpop.f32.mrb[0].mxu0
    %v1818 = vpop.f32.mrb[0].mxu0
    %1819 = vdwg.mxu0
    %1820 = vmatprep.subr.bf16.mxu0 0
    %1821 = vmatpush1.bf16.msra.mxu0 %v1309
    %1822 = vmatprep.subr.bf16.mxu0 0
    %1823 = vmatpush1.bf16.msra.mxu0 %v1312
    %1824 = vmatprep.subr.bf16.mxu0 0
    %1825 = vmatpush1.bf16.msra.mxu0 %v1315
    %1826 = vmatprep.subr.bf16.mxu0 0
    %1827 = vmatpush1.bf16.msra.mxu0 %v1318
    %1828 = vmatprep.subr.bf16.mxu0 0
    %1829 = vmatpush1.bf16.msra.mxu0 %v1321
    %1830 = vmatprep.subr.bf16.mxu0 0
    %1831 = vmatpush1.bf16.msra.mxu0 %v1324
    %1832 = vmatprep.subr.bf16.mxu0 0
    %1833 = vmatpush1.bf16.msra.mxu0 %v1327
    %1834 = vmatprep.subr.bf16.mxu0 0
    %1835 = vmatpush1.bf16.msra.mxu0 %v1330
    %1836 = vmatprep.subr.bf16.mxu0 0
    %1837 = vmatpush1.bf16.msra.mxu0 0
    %1838 = vmatprep.subr.bf16.mxu0 0
    %1839 = vmatpush1.bf16.msra.mxu0 0
    %1840 = vmatprep.subr.bf16.mxu0 0
    %1841 = vmatpush1.bf16.msra.mxu0 0
    %1842 = vmatprep.subr.bf16.mxu0 0
    %1843 = vmatpush1.bf16.msra.mxu0 0
    %1844 = vmatprep.subr.bf16.mxu0 0
    %1845 = vmatpush1.bf16.msra.mxu0 0
    %1846 = vmatprep.subr.bf16.mxu0 0
    %1847 = vmatpush1.bf16.msra.mxu0 0
    %1848 = vmatprep.subr.bf16.mxu0 0
    %1849 = vmatpush1.bf16.msra.mxu0 0
    %1850 = vmatprep.subr.bf16.mxu0 0
    %1851 = vmatpush1.bf16.msra.mxu0 0
    %1852 = vmatprep.mubr.bf16.mxu0 0
    %1853 = vmatmul.mubr.bf16.gmra.mrb[0].mxu0 %v1778
    %v1854 = vpop.f32.mrb[0].mxu0
    %v1855 = vadd.f32 %v1220, %v1854
    %v1856 = vpop.f32.mrb[0].mxu0
    %v1857 = vpop.f32.mrb[0].mxu0
    %v1858 = vpop.f32.mrb[0].mxu0
    %1859 = vdwg.mxu0
    %v1860 = vadd.f32 %v1775, %v1814
    %v1861 = vxor.u32 %v1860, 2147483648
    %v1862 = vmul.f32 %v1861, 1.442695
    %v1863 = vpow.pop %v1862
    %v1864 = vadd.f32 %v1863, 1.0
    %v1865 = vrcp.pop %v1864
    %v1866 = vmul.f32 1.0, %v1865
    %v1867 = vadd.f32 %v1776, %v1816
    %v1868 = vxor.u32 %v1867, 2147483648
    %v1869 = vmul.f32 %v1868, 1.442695
    %v1870 = vpow.pop %v1869
    %v1871 = vadd.f32 %v1870, 1.0
    %v1872 = vrcp.pop %v1871
    %v1873 = vmul.f32 1.0, %v1872
    %v1874 = vmul.f32 %v1866, %v1855
    %v1875 = vadd.f32 %v1777, %v1874
    %v1876 = vtanh.pop %v1875
    %v1877 = vsub.f32 1.0, %v1873
    %v1878 = vmul.f32 %v1877, %v1876
    %v1879 = vmul.f32 %v1873, %v1774
    %v1880 = vadd.f32 %v1878, %v1879
    %v1881 = vld [vmem:[#allocation2 + $0x78] sm:$0xff]
    %v1882 = vld [vmem:[#allocation2 + $0x80] sm:$0xff]
    %v1883 = vld [vmem:[#allocation2 + $0x88] sm:$0xff]
    %v1884 = vpack.c.bf16 %v1880, %v1880
    %1885 = vmatprep.subr.bf16.mxu0 %v1308
    %1886 = vmatpush1.bf16.msra.mxu0 %v1307
    %1887 = vmatprep.subr.bf16.mxu0 %v1311
    %1888 = vmatpush1.bf16.msra.mxu0 %v1310
    %1889 = vmatprep.subr.bf16.mxu0 %v1314
    %1890 = vmatpush1.bf16.msra.mxu0 %v1313
    %1891 = vmatprep.subr.bf16.mxu0 %v1317
    %1892 = vmatpush1.bf16.msra.mxu0 %v1316
    %1893 = vmatprep.subr.bf16.mxu0 %v1320
    %1894 = vmatpush1.bf16.msra.mxu0 %v1319
    %1895 = vmatprep.subr.bf16.mxu0 %v1323
    %1896 = vmatpush1.bf16.msra.mxu0 %v1322
    %1897 = vmatprep.subr.bf16.mxu0 %v1326
    %1898 = vmatpush1.bf16.msra.mxu0 %v1325
    %1899 = vmatprep.subr.bf16.mxu0 %v1329
    %1900 = vmatpush1.bf16.msra.mxu0 %v1328
    %1901 = vmatprep.subr.bf16.mxu0 0
    %1902 = vmatpush1.bf16.msra.mxu0 0
    %1903 = vmatprep.subr.bf16.mxu0 0
    %1904 = vmatpush1.bf16.msra.mxu0 0
    %1905 = vmatprep.subr.bf16.mxu0 0
    %1906 = vmatpush1.bf16.msra.mxu0 0
    %1907 = vmatprep.subr.bf16.mxu0 0
    %1908 = vmatpush1.bf16.msra.mxu0 0
    %1909 = vmatprep.subr.bf16.mxu0 0
    %1910 = vmatpush1.bf16.msra.mxu0 0
    %1911 = vmatprep.subr.bf16.mxu0 0
    %1912 = vmatpush1.bf16.msra.mxu0 0
    %1913 = vmatprep.subr.bf16.mxu0 0
    %1914 = vmatpush1.bf16.msra.mxu0 0
    %1915 = vmatprep.subr.bf16.mxu0 0
    %1916 = vmatpush1.bf16.msra.mxu0 0
    %1917 = vmatprep.mubr.bf16.mxu0 0
    %1918 = vmatmul.mubr.bf16.gmra.mrb[0].mxu0 %v1884
    %v1919 = vpop.f32.mrb[0].mxu0
    %v1920 = vadd.f32 %v1212, %v1919
    %v1921 = vpop.f32.mrb[0].mxu0
    %v1922 = vadd.f32 %v1216, %v1921
    %v1923 = vpop.f32.mrb[0].mxu0
    %v1924 = vpop.f32.mrb[0].mxu0
    %1925 = vdwg.mxu0
    %1926 = vmatprep.subr.bf16.mxu0 0
    %1927 = vmatpush1.bf16.msra.mxu0 %v1309
    %1928 = vmatprep.subr.bf16.mxu0 0
    %1929 = vmatpush1.bf16.msra.mxu0 %v1312
    %1930 = vmatprep.subr.bf16.mxu0 0
    %1931 = vmatpush1.bf16.msra.mxu0 %v1315
    %1932 = vmatprep.subr.bf16.mxu0 0
    %1933 = vmatpush1.bf16.msra.mxu0 %v1318
    %1934 = vmatprep.subr.bf16.mxu0 0
    %1935 = vmatpush1.bf16.msra.mxu0 %v1321
    %1936 = vmatprep.subr.bf16.mxu0 0
    %1937 = vmatpush1.bf16.msra.mxu0 %v1324
    %1938 = vmatprep.subr.bf16.mxu0 0
    %1939 = vmatpush1.bf16.msra.mxu0 %v1327
    %1940 = vmatprep.subr.bf16.mxu0 0
    %1941 = vmatpush1.bf16.msra.mxu0 %v1330
    %1942 = vmatprep.subr.bf16.mxu0 0
    %1943 = vmatpush1.bf16.msra.mxu0 0
    %1944 = vmatprep.subr.bf16.mxu0 0
    %1945 = vmatpush1.bf16.msra.mxu0 0
    %1946 = vmatprep.subr.bf16.mxu0 0
    %1947 = vmatpush1.bf16.msra.mxu0 0
    %1948 = vmatprep.subr.bf16.mxu0 0
    %1949 = vmatpush1.bf16.msra.mxu0 0
    %1950 = vmatprep.subr.bf16.mxu0 0
    %1951 = vmatpush1.bf16.msra.mxu0 0
    %1952 = vmatprep.subr.bf16.mxu0 0
    %1953 = vmatpush1.bf16.msra.mxu0 0
    %1954 = vmatprep.subr.bf16.mxu0 0
    %1955 = vmatpush1.bf16.msra.mxu0 0
    %1956 = vmatprep.subr.bf16.mxu0 0
    %1957 = vmatpush1.bf16.msra.mxu0 0
    %1958 = vmatprep.mubr.bf16.mxu0 0
    %1959 = vmatmul.mubr.bf16.gmra.mrb[0].mxu0 %v1884
    %v1960 = vpop.f32.mrb[0].mxu0
    %v1961 = vadd.f32 %v1220, %v1960
    %v1962 = vpop.f32.mrb[0].mxu0
    %v1963 = vpop.f32.mrb[0].mxu0
    %v1964 = vpop.f32.mrb[0].mxu0
    %1965 = vdwg.mxu0
    %v1966 = vadd.f32 %v1881, %v1920
    %v1967 = vxor.u32 %v1966, 2147483648
    %v1968 = vmul.f32 %v1967, 1.442695
    %v1969 = vpow.pop %v1968
    %v1970 = vadd.f32 %v1969, 1.0
    %v1971 = vrcp.pop %v1970
    %v1972 = vmul.f32 1.0, %v1971
    %v1973 = vadd.f32 %v1882, %v1922
    %v1974 = vxor.u32 %v1973, 2147483648
    %v1975 = vmul.f32 %v1974, 1.442695
    %v1976 = vpow.pop %v1975
    %v1977 = vadd.f32 %v1976, 1.0
    %v1978 = vrcp.pop %v1977
    %v1979 = vmul.f32 1.0, %v1978
    %v1980 = vmul.f32 %v1972, %v1961
    %v1981 = vadd.f32 %v1883, %v1980
    %v1982 = vtanh.pop %v1981
    %v1983 = vsub.f32 1.0, %v1979
    %v1984 = vmul.f32 %v1983, %v1982
    %v1985 = vmul.f32 %v1979, %v1880
    %v1986 = vadd.f32 %v1984, %v1985
    %v1987 = vld [vmem:[#allocation2 + $0x90] sm:$0xff]
    %v1988 = vld [vmem:[#allocation2 + $0x98] sm:$0xff]
    %v1989 = vld [vmem:[#allocation2 + $0xa0] sm:$0xff]
    %v1990 = vpack.c.bf16 %v1986, %v1986
    %1991 = vmatprep.subr.bf16.mxu0 %v1308
    %1992 = vmatpush1.bf16.msra.mxu0 %v1307
    %1993 = vmatprep.subr.bf16.mxu0 %v1311
    %1994 = vmatpush1.bf16.msra.mxu0 %v1310
    %1995 = vmatprep.subr.bf16.mxu0 %v1314
    %1996 = vmatpush1.bf16.msra.mxu0 %v1313
    %1997 = vmatprep.subr.bf16.mxu0 %v1317
    %1998 = vmatpush1.bf16.msra.mxu0 %v1316
    %1999 = vmatprep.subr.bf16.mxu0 %v1320
    %2000 = vmatpush1.bf16.msra.mxu0 %v1319
    %2001 = vmatprep.subr.bf16.mxu0 %v1323
    %2002 = vmatpush1.bf16.msra.mxu0 %v1322
    %2003 = vmatprep.subr.bf16.mxu0 %v1326
    %2004 = vmatpush1.bf16.msra.mxu0 %v1325
    %2005 = vmatprep.subr.bf16.mxu0 %v1329
    %2006 = vmatpush1.bf16.msra.mxu0 %v1328
    %2007 = vmatprep.subr.bf16.mxu0 0
    %2008 = vmatpush1.bf16.msra.mxu0 0
    %2009 = vmatprep.subr.bf16.mxu0 0
    %2010 = vmatpush1.bf16.msra.mxu0 0
    %2011 = vmatprep.subr.bf16.mxu0 0
    %2012 = vmatpush1.bf16.msra.mxu0 0
    %2013 = vmatprep.subr.bf16.mxu0 0
    %2014 = vmatpush1.bf16.msra.mxu0 0
    %2015 = vmatprep.subr.bf16.mxu0 0
    %2016 = vmatpush1.bf16.msra.mxu0 0
    %2017 = vmatprep.subr.bf16.mxu0 0
    %2018 = vmatpush1.bf16.msra.mxu0 0
    %2019 = vmatprep.subr.bf16.mxu0 0
    %2020 = vmatpush1.bf16.msra.mxu0 0
    %2021 = vmatprep.subr.bf16.mxu0 0
    %2022 = vmatpush1.bf16.msra.mxu0 0
    %2023 = vmatprep.mubr.bf16.mxu0 0
    %2024 = vmatmul.mubr.bf16.gmra.mrb[0].mxu0 %v1990
    %v2025 = vpop.f32.mrb[0].mxu0
    %v2026 = vadd.f32 %v1212, %v2025
    %v2027 = vpop.f32.mrb[0].mxu0
    %v2028 = vadd.f32 %v1216, %v2027
    %v2029 = vpop.f32.mrb[0].mxu0
    %v2030 = vpop.f32.mrb[0].mxu0
    %2031 = vdwg.mxu0
    %2032 = vmatprep.subr.bf16.mxu0 0
    %2033 = vmatpush1.bf16.msra.mxu0 %v1309
    %2034 = vmatprep.subr.bf16.mxu0 0
    %2035 = vmatpush1.bf16.msra.mxu0 %v1312
    %2036 = vmatprep.subr.bf16.mxu0 0
    %2037 = vmatpush1.bf16.msra.mxu0 %v1315
    %2038 = vmatprep.subr.bf16.mxu0 0
    %2039 = vmatpush1.bf16.msra.mxu0 %v1318
    %2040 = vmatprep.subr.bf16.mxu0 0
    %2041 = vmatpush1.bf16.msra.mxu0 %v1321
    %2042 = vmatprep.subr.bf16.mxu0 0
    %2043 = vmatpush1.bf16.msra.mxu0 %v1324
    %2044 = vmatprep.subr.bf16.mxu0 0
    %2045 = vmatpush1.bf16.msra.mxu0 %v1327
    %2046 = vmatprep.subr.bf16.mxu0 0
    %2047 = vmatpush1.bf16.msra.mxu0 %v1330
    %2048 = vmatprep.subr.bf16.mxu0 0
    %2049 = vmatpush1.bf16.msra.mxu0 0
    %2050 = vmatprep.subr.bf16.mxu0 0
    %2051 = vmatpush1.bf16.msra.mxu0 0
    %2052 = vmatprep.subr.bf16.mxu0 0
    %2053 = vmatpush1.bf16.msra.mxu0 0
    %2054 = vmatprep.subr.bf16.mxu0 0
    %2055 = vmatpush1.bf16.msra.mxu0 0
    %2056 = vmatprep.subr.bf16.mxu0 0
    %2057 = vmatpush1.bf16.msra.mxu0 0
    %2058 = vmatprep.subr.bf16.mxu0 0
    %2059 = vmatpush1.bf16.msra.mxu0 0
    %2060 = vmatprep.subr.bf16.mxu0 0
    %2061 = vmatpush1.bf16.msra.mxu0 0
    %2062 = vmatprep.subr.bf16.mxu0 0
    %2063 = vmatpush1.bf16.msra.mxu0 0
    %2064 = vmatprep.mubr.bf16.mxu0 0
    %2065 = vmatmul.mubr.bf16.gmra.mrb[0].mxu0 %v1990
    %v2066 = vpop.f32.mrb[0].mxu0
    %v2067 = vadd.f32 %v1220, %v2066
    %v2068 = vpop.f32.mrb[0].mxu0
    %v2069 = vpop.f32.mrb[0].mxu0
    %v2070 = vpop.f32.mrb[0].mxu0
    %2071 = vdwg.mxu0
    %v2072 = vadd.f32 %v1987, %v2026
    %v2073 = vxor.u32 %v2072, 2147483648
    %v2074 = vmul.f32 %v2073, 1.442695
    %v2075 = vpow.pop %v2074
    %v2076 = vadd.f32 %v2075, 1.0
    %v2077 = vrcp.pop %v2076
    %v2078 = vmul.f32 1.0, %v2077
    %v2079 = vadd.f32 %v1988, %v2028
    %v2080 = vxor.u32 %v2079, 2147483648
    %v2081 = vmul.f32 %v2080, 1.442695
    %v2082 = vpow.pop %v2081
    %v2083 = vadd.f32 %v2082, 1.0
    %v2084 = vrcp.pop %v2083
    %v2085 = vmul.f32 1.0, %v2084
    %v2086 = vmul.f32 %v2078, %v2067
    %v2087 = vadd.f32 %v1989, %v2086
    %v2088 = vtanh.pop %v2087
    %v2089 = vsub.f32 1.0, %v2085
    %v2090 = vmul.f32 %v2089, %v2088
    %v2091 = vmul.f32 %v2085, %v1986
    %v2092 = vadd.f32 %v2090, %v2091
    %v2093 = vld [vmem:[#allocation2 + $0xa8] sm:$0xff]
    %v2094 = vld [vmem:[#allocation2 + $0xb0] sm:$0xff]
    %v2095 = vld [vmem:[#allocation2 + $0xb8] sm:$0xff]
    %v2096 = vpack.c.bf16 %v2092, %v2092
    %2097 = vmatprep.subr.bf16.mxu0 %v1308
    %2098 = vmatpush1.bf16.msra.mxu0 %v1307
    %2099 = vmatprep.subr.bf16.mxu0 %v1311
    %2100 = vmatpush1.bf16.msra.mxu0 %v1310
    %2101 = vmatprep.subr.bf16.mxu0 %v1314
    %2102 = vmatpush1.bf16.msra.mxu0 %v1313
    %2103 = vmatprep.subr.bf16.mxu0 %v1317
    %2104 = vmatpush1.bf16.msra.mxu0 %v1316
    %2105 = vmatprep.subr.bf16.mxu0 %v1320
    %2106 = vmatpush1.bf16.msra.mxu0 %v1319
    %2107 = vmatprep.subr.bf16.mxu0 %v1323
    %2108 = vmatpush1.bf16.msra.mxu0 %v1322
    %2109 = vmatprep.subr.bf16.mxu0 %v1326
    %2110 = vmatpush1.bf16.msra.mxu0 %v1325
    %2111 = vmatprep.subr.bf16.mxu0 %v1329
    %2112 = vmatpush1.bf16.msra.mxu0 %v1328
    %2113 = vmatprep.subr.bf16.mxu0 0
    %2114 = vmatpush1.bf16.msra.mxu0 0
    %2115 = vmatprep.subr.bf16.mxu0 0
    %2116 = vmatpush1.bf16.msra.mxu0 0
    %2117 = vmatprep.subr.bf16.mxu0 0
    %2118 = vmatpush1.bf16.msra.mxu0 0
    %2119 = vmatprep.subr.bf16.mxu0 0
    %2120 = vmatpush1.bf16.msra.mxu0 0
    %2121 = vmatprep.subr.bf16.mxu0 0
    %2122 = vmatpush1.bf16.msra.mxu0 0
    %2123 = vmatprep.subr.bf16.mxu0 0
    %2124 = vmatpush1.bf16.msra.mxu0 0
    %2125 = vmatprep.subr.bf16.mxu0 0
    %2126 = vmatpush1.bf16.msra.mxu0 0
    %2127 = vmatprep.subr.bf16.mxu0 0
    %2128 = vmatpush1.bf16.msra.mxu0 0
    %2129 = vmatprep.mubr.bf16.mxu0 0
    %2130 = vmatmul.mubr.bf16.gmra.mrb[0].mxu0 %v2096
    %v2131 = vpop.f32.mrb[0].mxu0
    %v2132 = vadd.f32 %v1212, %v2131
    %v2133 = vpop.f32.mrb[0].mxu0
    %v2134 = vadd.f32 %v1216, %v2133
    %v2135 = vpop.f32.mrb[0].mxu0
    %v2136 = vpop.f32.mrb[0].mxu0
    %2137 = vdwg.mxu0
    %2138 = vmatprep.subr.bf16.mxu0 0
    %2139 = vmatpush1.bf16.msra.mxu0 %v1309
    %2140 = vmatprep.subr.bf16.mxu0 0
    %2141 = vmatpush1.bf16.msra.mxu0 %v1312
    %2142 = vmatprep.subr.bf16.mxu0 0
    %2143 = vmatpush1.bf16.msra.mxu0 %v1315
    %2144 = vmatprep.subr.bf16.mxu0 0
    %2145 = vmatpush1.bf16.msra.mxu0 %v1318
    %2146 = vmatprep.subr.bf16.mxu0 0
    %2147 = vmatpush1.bf16.msra.mxu0 %v1321
    %2148 = vmatprep.subr.bf16.mxu0 0
    %2149 = vmatpush1.bf16.msra.mxu0 %v1324
    %2150 = vmatprep.subr.bf16.mxu0 0
    %2151 = vmatpush1.bf16.msra.mxu0 %v1327
    %2152 = vmatprep.subr.bf16.mxu0 0
    %2153 = vmatpush1.bf16.msra.mxu0 %v1330
    %2154 = vmatprep.subr.bf16.mxu0 0
    %2155 = vmatpush1.bf16.msra.mxu0 0
    %2156 = vmatprep.subr.bf16.mxu0 0
    %2157 = vmatpush1.bf16.msra.mxu0 0
    %2158 = vmatprep.subr.bf16.mxu0 0
    %2159 = vmatpush1.bf16.msra.mxu0 0
    %2160 = vmatprep.subr.bf16.mxu0 0
    %2161 = vmatpush1.bf16.msra.mxu0 0
    %2162 = vmatprep.subr.bf16.mxu0 0
    %2163 = vmatpush1.bf16.msra.mxu0 0
    %2164 = vmatprep.subr.bf16.mxu0 0
    %2165 = vmatpush1.bf16.msra.mxu0 0
    %2166 = vmatprep.subr.bf16.mxu0 0
    %2167 = vmatpush1.bf16.msra.mxu0 0
    %2168 = vmatprep.subr.bf16.mxu0 0
    %2169 = vmatpush1.bf16.msra.mxu0 0
    %2170 = vmatprep.mubr.bf16.mxu0 0
    %2171 = vmatmul.mubr.bf16.gmra.mrb[0].mxu0 %v2096
    %v2172 = vpop.f32.mrb[0].mxu0
    %v2173 = vadd.f32 %v1220, %v2172
    %v2174 = vpop.f32.mrb[0].mxu0
    %v2175 = vpop.f32.mrb[0].mxu0
    %v2176 = vpop.f32.mrb[0].mxu0
    %2177 = vdwg.mxu0
    %v2178 = vadd.f32 %v2093, %v2132
    %v2179 = vxor.u32 %v2178, 2147483648
    %v2180 = vmul.f32 %v2179, 1.442695
    %v2181 = vpow.pop %v2180
    %v2182 = vadd.f32 %v2181, 1.0
    %v2183 = vrcp.pop %v2182
    %v2184 = vmul.f32 1.0, %v2183
    %v2185 = vadd.f32 %v2094, %v2134
    %v2186 = vxor.u32 %v2185, 2147483648
    %v2187 = vmul.f32 %v2186, 1.442695
    %v2188 = vpow.pop %v2187
    %v2189 = vadd.f32 %v2188, 1.0
    %v2190 = vrcp.pop %v2189
    %v2191 = vmul.f32 1.0, %v2190
    %v2192 = vmul.f32 %v2184, %v2173
    %v2193 = vadd.f32 %v2095, %v2192
    %v2194 = vtanh.pop %v2193
    %v2195 = vsub.f32 1.0, %v2191
    %v2196 = vmul.f32 %v2195, %v2194
    %v2197 = vmul.f32 %v2191, %v2092
    %v2198 = vadd.f32 %v2196, %v2197
    %v2199 = vpack.c.bf16 %v2198, %v2198
    %v2200 = vld [vmem:[#allocation9] sm:$0xff]
    %v2201 = vld [vmem:[#allocation9 + $0x8] sm:$0xff]
    %v2202 = vld [vmem:[#allocation9 + $0x10] sm:$0xff]
    %v2203 = vld [vmem:[#allocation9 + $0x18] sm:$0xff]
    %v2204 = vld [vmem:[#allocation9 + $0x20] sm:$0xff]
    %v2205 = vld [vmem:[#allocation9 + $0x28] sm:$0xff]
    %v2206 = vld [vmem:[#allocation9 + $0x30] sm:$0xff]
    %v2207 = vld [vmem:[#allocation9 + $0x38] sm:$0xff]
    %v2208 = vld [vmem:[#allocation9 + $0x40] sm:$0xff]
    %v2209 = vld [vmem:[#allocation9 + $0x48] sm:$0xff]
    %v2210 = vld [vmem:[#allocation9 + $0x50] sm:$0xff]
    %v2211 = vld [vmem:[#allocation9 + $0x58] sm:$0xff]
    %v2212 = vld [vmem:[#allocation9 + $0x60] sm:$0xff]
    %v2213 = vld [vmem:[#allocation9 + $0x68] sm:$0xff]
    %v2214 = vld [vmem:[#allocation9 + $0x70] sm:$0xff]
    %v2215 = vld [vmem:[#allocation9 + $0x78] sm:$0xff]
    %v2216 = vld [vmem:[#allocation9 + $0x80] sm:$0xff]
    %v2217 = vld [vmem:[#allocation9 + $0x88] sm:$0xff]
    %v2218 = vld [vmem:[#allocation9 + $0x90] sm:$0xff]
    %v2219 = vld [vmem:[#allocation9 + $0x98] sm:$0xff]
    %v2220 = vld [vmem:[#allocation9 + $0xa0] sm:$0xff]
    %v2221 = vld [vmem:[#allocation9 + $0xa8] sm:$0xff]
    %v2222 = vld [vmem:[#allocation9 + $0xb0] sm:$0xff]
    %v2223 = vld [vmem:[#allocation9 + $0xb8] sm:$0xff]
    %v2224 = vld [vmem:[#allocation9 + $0xc0] sm:$0xff]
    %v2225 = vld [vmem:[#allocation9 + $0xc8] sm:$0xff]
    %v2226 = vld [vmem:[#allocation9 + $0xd0] sm:$0xff]
    %v2227 = vld [vmem:[#allocation9 + $0xd8] sm:$0xff]
    %v2228 = vld [vmem:[#allocation9 + $0xe0] sm:$0xff]
    %v2229 = vld [vmem:[#allocation9 + $0xe8] sm:$0xff]
    %v2230 = vld [vmem:[#allocation9 + $0xf0] sm:$0xff]
    %v2231 = vld [vmem:[#allocation9 + $0xf8] sm:$0xff]
    %v2232 = vld [vmem:[%s6] sm:$0x3]
    %v2234 = vlaneseq
    %v2235 = vshrl.u32 %v2234, 7
    %v2236 = vsub.s32 0, %v2235
    %v2237 = vrot.slane %v2232, %v2236
    %v2238 = vlaneseq
    %v2239 = vshrl.u32 %v2238, 7
    %v2240 = vsub.s32 1, %v2239
    %v2241 = vrot.slane %v2232, %v2240
    %v2276 = vunpack.c.l.b16 %v2200
    %v2277 = vunpack.c.h.b16 %v2200
    %v2278 = vunpack.c.l.b16 %v2201
    %v2279 = vunpack.c.h.b16 %v2201
    %v2280 = vunpack.c.l.b16 %v2202
    %v2281 = vunpack.c.h.b16 %v2202
    %v2282 = vunpack.c.l.b16 %v2203
    %v2283 = vunpack.c.h.b16 %v2203
    %v2284 = vunpack.c.l.b16 %v2204
    %v2285 = vunpack.c.h.b16 %v2204
    %v2286 = vunpack.c.l.b16 %v2205
    %v2287 = vunpack.c.h.b16 %v2205
    %v2288 = vunpack.c.l.b16 %v2206
    %v2289 = vunpack.c.h.b16 %v2206
    %v2290 = vunpack.c.l.b16 %v2207
    %v2291 = vunpack.c.h.b16 %v2207
    %v2292 = vunpack.c.l.b16 %v2208
    %v2293 = vunpack.c.h.b16 %v2208
    %v2294 = vunpack.c.l.b16 %v2209
    %v2295 = vunpack.c.h.b16 %v2209
    %v2296 = vunpack.c.l.b16 %v2210
    %v2297 = vunpack.c.h.b16 %v2210
    %v2298 = vunpack.c.l.b16 %v2211
    %v2299 = vunpack.c.h.b16 %v2211
    %v2300 = vunpack.c.l.b16 %v2212
    %v2301 = vunpack.c.h.b16 %v2212
    %v2302 = vunpack.c.l.b16 %v2213
    %v2303 = vunpack.c.h.b16 %v2213
    %v2304 = vunpack.c.l.b16 %v2214
    %v2305 = vunpack.c.h.b16 %v2214
    %v2306 = vunpack.c.l.b16 %v2215
    %v2307 = vunpack.c.h.b16 %v2215
    %v2308 = vunpack.c.l.b16 %v2216
    %v2309 = vunpack.c.h.b16 %v2216
    %v2310 = vunpack.c.l.b16 %v2217
    %v2311 = vunpack.c.h.b16 %v2217
    %v2312 = vunpack.c.l.b16 %v2218
    %v2313 = vunpack.c.h.b16 %v2218
    %v2314 = vunpack.c.l.b16 %v2219
    %v2315 = vunpack.c.h.b16 %v2219
    %v2316 = vunpack.c.l.b16 %v2220
    %v2317 = vunpack.c.h.b16 %v2220
    %v2318 = vunpack.c.l.b16 %v2221
    %v2319 = vunpack.c.h.b16 %v2221
    %v2320 = vunpack.c.l.b16 %v2222
    %v2321 = vunpack.c.h.b16 %v2222
    %v2322 = vunpack.c.l.b16 %v2223
    %v2323 = vunpack.c.h.b16 %v2223
    %v2324 = vunpack.c.l.b16 %v2224
    %v2325 = vunpack.c.h.b16 %v2224
    %v2326 = vunpack.c.l.b16 %v2225
    %v2327 = vunpack.c.h.b16 %v2225
    %v2328 = vunpack.c.l.b16 %v2226
    %v2329 = vunpack.c.h.b16 %v2226
    %v2330 = vunpack.c.l.b16 %v2227
    %v2331 = vunpack.c.h.b16 %v2227
    %v2332 = vunpack.c.l.b16 %v2228
    %v2333 = vunpack.c.h.b16 %v2228
    %v2334 = vunpack.c.l.b16 %v2229
    %v2335 = vunpack.c.h.b16 %v2229
    %v2336 = vunpack.c.l.b16 %v2230
    %v2337 = vunpack.c.h.b16 %v2230
    %v2338 = vunpack.c.l.b16 %v2231
    %v2339 = vunpack.c.h.b16 %v2231
    %v2340 = vpack.c.b16 %v2278, %v2276
    %v2341 = vpack.c.b16 %v2279, %v2277
    %v2342 = vpack.c.b16 %v2282, %v2280
    %v2343 = vpack.c.b16 %v2283, %v2281
    %v2344 = vpack.c.b16 %v2286, %v2284
    %v2345 = vpack.c.b16 %v2287, %v2285
    %v2346 = vpack.c.b16 %v2290, %v2288
    %v2347 = vpack.c.b16 %v2291, %v2289
    %v2348 = vpack.c.b16 %v2294, %v2292
    %v2349 = vpack.c.b16 %v2295, %v2293
    %v2350 = vpack.c.b16 %v2298, %v2296
    %v2351 = vpack.c.b16 %v2299, %v2297
    %v2352 = vpack.c.b16 %v2302, %v2300
    %v2353 = vpack.c.b16 %v2303, %v2301
    %v2354 = vpack.c.b16 %v2306, %v2304
    %v2355 = vpack.c.b16 %v2307, %v2305
    %v2356 = vpack.c.b16 %v2310, %v2308
    %v2357 = vpack.c.b16 %v2311, %v2309
    %v2358 = vpack.c.b16 %v2314, %v2312
    %v2359 = vpack.c.b16 %v2315, %v2313
    %v2360 = vpack.c.b16 %v2318, %v2316
    %v2361 = vpack.c.b16 %v2319, %v2317
    %v2362 = vpack.c.b16 %v2322, %v2320
    %v2363 = vpack.c.b16 %v2323, %v2321
    %v2364 = vpack.c.b16 %v2326, %v2324
    %v2365 = vpack.c.b16 %v2327, %v2325
    %v2366 = vpack.c.b16 %v2330, %v2328
    %v2367 = vpack.c.b16 %v2331, %v2329
    %v2368 = vpack.c.b16 %v2334, %v2332
    %v2369 = vpack.c.b16 %v2335, %v2333
    %v2370 = vpack.c.b16 %v2338, %v2336
    %v2371 = vpack.c.b16 %v2339, %v2337
    %2404 = vmatprep.subr.bf16.mxu0 %v2341
    %2405 = vmatpush1.bf16.msra.mxu0 %v2340
    %2406 = vmatprep.subr.bf16.mxu0 %v2343
    %2407 = vmatpush1.bf16.msra.mxu0 %v2342
    %2408 = vmatprep.subr.bf16.mxu0 %v2345
    %2409 = vmatpush1.bf16.msra.mxu0 %v2344
    %2410 = vmatprep.subr.bf16.mxu0 %v2347
    %2411 = vmatpush1.bf16.msra.mxu0 %v2346
    %2412 = vmatprep.subr.bf16.mxu0 %v2349
    %2413 = vmatpush1.bf16.msra.mxu0 %v2348
    %2414 = vmatprep.subr.bf16.mxu0 %v2351
    %2415 = vmatpush1.bf16.msra.mxu0 %v2350
    %2416 = vmatprep.subr.bf16.mxu0 %v2353
    %2417 = vmatpush1.bf16.msra.mxu0 %v2352
    %2418 = vmatprep.subr.bf16.mxu0 %v2355
    %2419 = vmatpush1.bf16.msra.mxu0 %v2354
    %2420 = vmatprep.subr.bf16.mxu0 %v2357
    %2421 = vmatpush1.bf16.msra.mxu0 %v2356
    %2422 = vmatprep.subr.bf16.mxu0 %v2359
    %2423 = vmatpush1.bf16.msra.mxu0 %v2358
    %2424 = vmatprep.subr.bf16.mxu0 %v2361
    %2425 = vmatpush1.bf16.msra.mxu0 %v2360
    %2426 = vmatprep.subr.bf16.mxu0 %v2363
    %2427 = vmatpush1.bf16.msra.mxu0 %v2362
    %2428 = vmatprep.subr.bf16.mxu0 %v2365
    %2429 = vmatpush1.bf16.msra.mxu0 %v2364
    %2430 = vmatprep.subr.bf16.mxu0 %v2367
    %2431 = vmatpush1.bf16.msra.mxu0 %v2366
    %2432 = vmatprep.subr.bf16.mxu0 %v2369
    %2433 = vmatpush1.bf16.msra.mxu0 %v2368
    %2434 = vmatprep.subr.bf16.mxu0 %v2371
    %2435 = vmatpush1.bf16.msra.mxu0 %v2370
    %2436 = vmatprep.mubr.bf16.mxu0 %v2199
    %2437 = vmatmul.mubr.bf16.gmra.mrb[0].mxu0 %v2199
    %v2438 = vpop.f32.mrb[0].mxu0
    %v2439 = vadd.f32 %v2237, %v2438
    %v2440 = vpop.f32.mrb[0].mxu0
    %v2441 = vadd.f32 %v2241, %v2440
    %v2442 = vpop.f32.mrb[0].mxu0
    %v2443 = vpop.f32.mrb[0].mxu0
    %2444 = vdwg.mxu0
    %v2445 = vmax.f32 %v2439, 0.0
    %v2446 = vmax.f32 %v2441, 0.0
    %v2447 = vpack.c.bf16 %v2445, %v2445
    %v2448 = vpack.c.bf16 %v2446, %v2446
    %v2449 = vld [vmem:[#allocation11] sm:$0xff]
    %v2450 = vld [vmem:[#allocation11 + $0x8] sm:$0xff]
    %v2451 = vld [vmem:[#allocation11 + $0x10] sm:$0xff]
    %v2452 = vld [vmem:[#allocation11 + $0x18] sm:$0xff]
    %v2453 = vld [vmem:[#allocation11 + $0x20] sm:$0xff]
    %v2454 = vld [vmem:[#allocation11 + $0x28] sm:$0xff]
    %v2455 = vld [vmem:[#allocation11 + $0x30] sm:$0xff]
    %v2456 = vld [vmem:[#allocation11 + $0x38] sm:$0xff]
    %v2457 = vld [vmem:[#allocation11 + $0x40] sm:$0xff]
    %v2458 = vld [vmem:[#allocation11 + $0x48] sm:$0xff]
    %v2459 = vld [vmem:[#allocation11 + $0x50] sm:$0xff]
    %v2460 = vld [vmem:[#allocation11 + $0x58] sm:$0xff]
    %v2461 = vld [vmem:[#allocation11 + $0x60] sm:$0xff]
    %v2462 = vld [vmem:[#allocation11 + $0x68] sm:$0xff]
    %v2463 = vld [vmem:[#allocation11 + $0x70] sm:$0xff]
    %v2464 = vld [vmem:[#allocation11 + $0x78] sm:$0xff]
    %v2465 = vld [vmem:[#allocation11 + $0x80] sm:$0xff]
    %v2466 = vld [vmem:[#allocation11 + $0x88] sm:$0xff]
    %v2467 = vld [vmem:[#allocation11 + $0x90] sm:$0xff]
    %v2468 = vld [vmem:[#allocation11 + $0x98] sm:$0xff]
    %v2469 = vld [vmem:[#allocation11 + $0xa0] sm:$0xff]
    %v2470 = vld [vmem:[#allocation11 + $0xa8] sm:$0xff]
    %v2471 = vld [vmem:[#allocation11 + $0xb0] sm:$0xff]
    %v2472 = vld [vmem:[#allocation11 + $0xb8] sm:$0xff]
    %v2473 = vld [vmem:[#allocation11 + $0xc0] sm:$0xff]
    %v2474 = vld [vmem:[#allocation11 + $0xc8] sm:$0xff]
    %v2475 = vld [vmem:[#allocation11 + $0xd0] sm:$0xff]
    %v2476 = vld [vmem:[#allocation11 + $0xd8] sm:$0xff]
    %v2477 = vld [vmem:[#allocation11 + $0xe0] sm:$0xff]
    %v2478 = vld [vmem:[#allocation11 + $0xe8] sm:$0xff]
    %v2479 = vld [vmem:[#allocation11 + $0xf0] sm:$0xff]
    %v2480 = vld [vmem:[#allocation11 + $0xf8] sm:$0xff]
    %v2481 = vld [vmem:[%s8] sm:$0x3]
    %v2483 = vlaneseq
    %v2484 = vshrl.u32 %v2483, 7
    %v2485 = vsub.s32 0, %v2484
    %v2486 = vrot.slane %v2481, %v2485
    %v2487 = vlaneseq
    %v2488 = vshrl.u32 %v2487, 7
    %v2489 = vsub.s32 1, %v2488
    %v2490 = vrot.slane %v2481, %v2489
    %v2525 = vunpack.c.l.b16 %v2449
    %v2526 = vunpack.c.h.b16 %v2449
    %v2527 = vunpack.c.l.b16 %v2450
    %v2528 = vunpack.c.h.b16 %v2450
    %v2529 = vunpack.c.l.b16 %v2451
    %v2530 = vunpack.c.h.b16 %v2451
    %v2531 = vunpack.c.l.b16 %v2452
    %v2532 = vunpack.c.h.b16 %v2452
    %v2533 = vunpack.c.l.b16 %v2453
    %v2534 = vunpack.c.h.b16 %v2453
    %v2535 = vunpack.c.l.b16 %v2454
    %v2536 = vunpack.c.h.b16 %v2454
    %v2537 = vunpack.c.l.b16 %v2455
    %v2538 = vunpack.c.h.b16 %v2455
    %v2539 = vunpack.c.l.b16 %v2456
    %v2540 = vunpack.c.h.b16 %v2456
    %v2541 = vunpack.c.l.b16 %v2457
    %v2542 = vunpack.c.h.b16 %v2457
    %v2543 = vunpack.c.l.b16 %v2458
    %v2544 = vunpack.c.h.b16 %v2458
    %v2545 = vunpack.c.l.b16 %v2459
    %v2546 = vunpack.c.h.b16 %v2459
    %v2547 = vunpack.c.l.b16 %v2460
    %v2548 = vunpack.c.h.b16 %v2460
    %v2549 = vunpack.c.l.b16 %v2461
    %v2550 = vunpack.c.h.b16 %v2461
    %v2551 = vunpack.c.l.b16 %v2462
    %v2552 = vunpack.c.h.b16 %v2462
    %v2553 = vunpack.c.l.b16 %v2463
    %v2554 = vunpack.c.h.b16 %v2463
    %v2555 = vunpack.c.l.b16 %v2464
    %v2556 = vunpack.c.h.b16 %v2464
    %v2557 = vunpack.c.l.b16 %v2465
    %v2558 = vunpack.c.h.b16 %v2465
    %v2559 = vunpack.c.l.b16 %v2466
    %v2560 = vunpack.c.h.b16 %v2466
    %v2561 = vunpack.c.l.b16 %v2467
    %v2562 = vunpack.c.h.b16 %v2467
    %v2563 = vunpack.c.l.b16 %v2468
    %v2564 = vunpack.c.h.b16 %v2468
    %v2565 = vunpack.c.l.b16 %v2469
    %v2566 = vunpack.c.h.b16 %v2469
    %v2567 = vunpack.c.l.b16 %v2470
    %v2568 = vunpack.c.h.b16 %v2470
    %v2569 = vunpack.c.l.b16 %v2471
    %v2570 = vunpack.c.h.b16 %v2471
    %v2571 = vunpack.c.l.b16 %v2472
    %v2572 = vunpack.c.h.b16 %v2472
    %v2573 = vunpack.c.l.b16 %v2473
    %v2574 = vunpack.c.h.b16 %v2473
    %v2575 = vunpack.c.l.b16 %v2474
    %v2576 = vunpack.c.h.b16 %v2474
    %v2577 = vunpack.c.l.b16 %v2475
    %v2578 = vunpack.c.h.b16 %v2475
    %v2579 = vunpack.c.l.b16 %v2476
    %v2580 = vunpack.c.h.b16 %v2476
    %v2581 = vunpack.c.l.b16 %v2477
    %v2582 = vunpack.c.h.b16 %v2477
    %v2583 = vunpack.c.l.b16 %v2478
    %v2584 = vunpack.c.h.b16 %v2478
    %v2585 = vunpack.c.l.b16 %v2479
    %v2586 = vunpack.c.h.b16 %v2479
    %v2587 = vunpack.c.l.b16 %v2480
    %v2588 = vunpack.c.h.b16 %v2480
    %v2589 = vpack.c.b16 %v2527, %v2525
    %v2590 = vpack.c.b16 %v2528, %v2526
    %v2591 = vpack.c.b16 %v2531, %v2529
    %v2592 = vpack.c.b16 %v2532, %v2530
    %v2593 = vpack.c.b16 %v2535, %v2533
    %v2594 = vpack.c.b16 %v2536, %v2534
    %v2595 = vpack.c.b16 %v2539, %v2537
    %v2596 = vpack.c.b16 %v2540, %v2538
    %v2597 = vpack.c.b16 %v2543, %v2541
    %v2598 = vpack.c.b16 %v2544, %v2542
    %v2599 = vpack.c.b16 %v2547, %v2545
    %v2600 = vpack.c.b16 %v2548, %v2546
    %v2601 = vpack.c.b16 %v2551, %v2549
    %v2602 = vpack.c.b16 %v2552, %v2550
    %v2603 = vpack.c.b16 %v2555, %v2553
    %v2604 = vpack.c.b16 %v2556, %v2554
    %v2605 = vpack.c.b16 %v2559, %v2557
    %v2606 = vpack.c.b16 %v2560, %v2558
    %v2607 = vpack.c.b16 %v2563, %v2561
    %v2608 = vpack.c.b16 %v2564, %v2562
    %v2609 = vpack.c.b16 %v2567, %v2565
    %v2610 = vpack.c.b16 %v2568, %v2566
    %v2611 = vpack.c.b16 %v2571, %v2569
    %v2612 = vpack.c.b16 %v2572, %v2570
    %v2613 = vpack.c.b16 %v2575, %v2573
    %v2614 = vpack.c.b16 %v2576, %v2574
    %v2615 = vpack.c.b16 %v2579, %v2577
    %v2616 = vpack.c.b16 %v2580, %v2578
    %v2617 = vpack.c.b16 %v2583, %v2581
    %v2618 = vpack.c.b16 %v2584, %v2582
    %v2619 = vpack.c.b16 %v2587, %v2585
    %v2620 = vpack.c.b16 %v2588, %v2586
    %2653 = vmatprep.subr.bf16.mxu0 %v2590
    %2654 = vmatpush1.bf16.msra.mxu0 %v2589
    %2655 = vmatprep.subr.bf16.mxu0 %v2592
    %2656 = vmatpush1.bf16.msra.mxu0 %v2591
    %2657 = vmatprep.subr.bf16.mxu0 %v2594
    %2658 = vmatpush1.bf16.msra.mxu0 %v2593
    %2659 = vmatprep.subr.bf16.mxu0 %v2596
    %2660 = vmatpush1.bf16.msra.mxu0 %v2595
    %2661 = vmatprep.subr.bf16.mxu0 %v2598
    %2662 = vmatpush1.bf16.msra.mxu0 %v2597
    %2663 = vmatprep.subr.bf16.mxu0 %v2600
    %2664 = vmatpush1.bf16.msra.mxu0 %v2599
    %2665 = vmatprep.subr.bf16.mxu0 %v2602
    %2666 = vmatpush1.bf16.msra.mxu0 %v2601
    %2667 = vmatprep.subr.bf16.mxu0 %v2604
    %2668 = vmatpush1.bf16.msra.mxu0 %v2603
    %2669 = vmatprep.subr.bf16.mxu0 %v2606
    %2670 = vmatpush1.bf16.msra.mxu0 %v2605
    %2671 = vmatprep.subr.bf16.mxu0 %v2608
    %2672 = vmatpush1.bf16.msra.mxu0 %v2607
    %2673 = vmatprep.subr.bf16.mxu0 %v2610
    %2674 = vmatpush1.bf16.msra.mxu0 %v2609
    %2675 = vmatprep.subr.bf16.mxu0 %v2612
    %2676 = vmatpush1.bf16.msra.mxu0 %v2611
    %2677 = vmatprep.subr.bf16.mxu0 %v2614
    %2678 = vmatpush1.bf16.msra.mxu0 %v2613
    %2679 = vmatprep.subr.bf16.mxu0 %v2616
    %2680 = vmatpush1.bf16.msra.mxu0 %v2615
    %2681 = vmatprep.subr.bf16.mxu0 %v2618
    %2682 = vmatpush1.bf16.msra.mxu0 %v2617
    %2683 = vmatprep.subr.bf16.mxu0 %v2620
    %2684 = vmatpush1.bf16.msra.mxu0 %v2619
    %2685 = vmatprep.mubr.bf16.mxu0 %v2448
    %2686 = vmatmul.mubr.bf16.gmra.mrb[0].mxu0 %v2447
    %v2687 = vpop.f32.mrb[0].mxu0
    %v2688 = vadd.f32 %v2486, %v2687
    %v2689 = vpop.f32.mrb[0].mxu0
    %v2690 = vadd.f32 %v2490, %v2689
    %v2691 = vpop.f32.mrb[0].mxu0
    %v2692 = vpop.f32.mrb[0].mxu0
    %2693 = vdwg.mxu0
    %v2694 = vmax.f32 %v2688, 0.0
    %v2695 = vmax.f32 %v2690, 0.0
    %v2696 = vadd.f32 %v2694, %v2198
    %v2697 = vadd.f32 %v2695, %v2198
    %v2698 = vpack.c.bf16 %v2696, %v2696
    %v2699 = vpack.c.bf16 %v2697, %v2697
    %s2700 = scalar_lea.vmem [#allocation9], 256
    %v2701 = vld [vmem:[%s2700] sm:$0xff]
    %v2702 = vld [vmem:[%s2700 + $0x8] sm:$0xff]
    %v2703 = vld [vmem:[%s2700 + $0x10] sm:$0xff]
    %v2704 = vld [vmem:[%s2700 + $0x18] sm:$0xff]
    %v2705 = vld [vmem:[%s2700 + $0x20] sm:$0xff]
    %v2706 = vld [vmem:[%s2700 + $0x28] sm:$0xff]
    %v2707 = vld [vmem:[%s2700 + $0x30] sm:$0xff]
    %v2708 = vld [vmem:[%s2700 + $0x38] sm:$0xff]
    %v2709 = vld [vmem:[%s2700 + $0x40] sm:$0xff]
    %v2710 = vld [vmem:[%s2700 + $0x48] sm:$0xff]
    %v2711 = vld [vmem:[%s2700 + $0x50] sm:$0xff]
    %v2712 = vld [vmem:[%s2700 + $0x58] sm:$0xff]
    %v2713 = vld [vmem:[%s2700 + $0x60] sm:$0xff]
    %v2714 = vld [vmem:[%s2700 + $0x68] sm:$0xff]
    %v2715 = vld [vmem:[%s2700 + $0x70] sm:$0xff]
    %v2716 = vld [vmem:[%s2700 + $0x78] sm:$0xff]
    %v2717 = vld [vmem:[%s2700 + $0x80] sm:$0xff]
    %v2718 = vld [vmem:[%s2700 + $0x88] sm:$0xff]
    %v2719 = vld [vmem:[%s2700 + $0x90] sm:$0xff]
    %v2720 = vld [vmem:[%s2700 + $0x98] sm:$0xff]
    %v2721 = vld [vmem:[%s2700 + $0xa0] sm:$0xff]
    %v2722 = vld [vmem:[%s2700 + $0xa8] sm:$0xff]
    %v2723 = vld [vmem:[%s2700 + $0xb0] sm:$0xff]
    %v2724 = vld [vmem:[%s2700 + $0xb8] sm:$0xff]
    %v2725 = vld [vmem:[%s2700 + $0xc0] sm:$0xff]
    %v2726 = vld [vmem:[%s2700 + $0xc8] sm:$0xff]
    %v2727 = vld [vmem:[%s2700 + $0xd0] sm:$0xff]
    %v2728 = vld [vmem:[%s2700 + $0xd8] sm:$0xff]
    %v2729 = vld [vmem:[%s2700 + $0xe0] sm:$0xff]
    %v2730 = vld [vmem:[%s2700 + $0xe8] sm:$0xff]
    %v2731 = vld [vmem:[%s2700 + $0xf0] sm:$0xff]
    %v2732 = vld [vmem:[%s2700 + $0xf8] sm:$0xff]
    %s2733 = scalar_lea.vmem %s6, 2
    %v2734 = vld [vmem:[%s2733] sm:$0x3]
    %v2736 = vlaneseq
    %v2737 = vshrl.u32 %v2736, 7
    %v2738 = vsub.s32 0, %v2737
    %v2739 = vrot.slane %v2734, %v2738
    %v2740 = vlaneseq
    %v2741 = vshrl.u32 %v2740, 7
    %v2742 = vsub.s32 1, %v2741
    %v2743 = vrot.slane %v2734, %v2742
    %v2778 = vunpack.c.l.b16 %v2701
    %v2779 = vunpack.c.h.b16 %v2701
    %v2780 = vunpack.c.l.b16 %v2702
    %v2781 = vunpack.c.h.b16 %v2702
    %v2782 = vunpack.c.l.b16 %v2703
    %v2783 = vunpack.c.h.b16 %v2703
    %v2784 = vunpack.c.l.b16 %v2704
    %v2785 = vunpack.c.h.b16 %v2704
    %v2786 = vunpack.c.l.b16 %v2705
    %v2787 = vunpack.c.h.b16 %v2705
    %v2788 = vunpack.c.l.b16 %v2706
    %v2789 = vunpack.c.h.b16 %v2706
    %v2790 = vunpack.c.l.b16 %v2707
    %v2791 = vunpack.c.h.b16 %v2707
    %v2792 = vunpack.c.l.b16 %v2708
    %v2793 = vunpack.c.h.b16 %v2708
    %v2794 = vunpack.c.l.b16 %v2709
    %v2795 = vunpack.c.h.b16 %v2709
    %v2796 = vunpack.c.l.b16 %v2710
    %v2797 = vunpack.c.h.b16 %v2710
    %v2798 = vunpack.c.l.b16 %v2711
    %v2799 = vunpack.c.h.b16 %v2711
    %v2800 = vunpack.c.l.b16 %v2712
    %v2801 = vunpack.c.h.b16 %v2712
    %v2802 = vunpack.c.l.b16 %v2713
    %v2803 = vunpack.c.h.b16 %v2713
    %v2804 = vunpack.c.l.b16 %v2714
    %v2805 = vunpack.c.h.b16 %v2714
    %v2806 = vunpack.c.l.b16 %v2715
    %v2807 = vunpack.c.h.b16 %v2715
    %v2808 = vunpack.c.l.b16 %v2716
    %v2809 = vunpack.c.h.b16 %v2716
    %v2810 = vunpack.c.l.b16 %v2717
    %v2811 = vunpack.c.h.b16 %v2717
    %v2812 = vunpack.c.l.b16 %v2718
    %v2813 = vunpack.c.h.b16 %v2718
    %v2814 = vunpack.c.l.b16 %v2719
    %v2815 = vunpack.c.h.b16 %v2719
    %v2816 = vunpack.c.l.b16 %v2720
    %v2817 = vunpack.c.h.b16 %v2720
    %v2818 = vunpack.c.l.b16 %v2721
    %v2819 = vunpack.c.h.b16 %v2721
    %v2820 = vunpack.c.l.b16 %v2722
    %v2821 = vunpack.c.h.b16 %v2722
    %v2822 = vunpack.c.l.b16 %v2723
    %v2823 = vunpack.c.h.b16 %v2723
    %v2824 = vunpack.c.l.b16 %v2724
    %v2825 = vunpack.c.h.b16 %v2724
    %v2826 = vunpack.c.l.b16 %v2725
    %v2827 = vunpack.c.h.b16 %v2725
    %v2828 = vunpack.c.l.b16 %v2726
    %v2829 = vunpack.c.h.b16 %v2726
    %v2830 = vunpack.c.l.b16 %v2727
    %v2831 = vunpack.c.h.b16 %v2727
    %v2832 = vunpack.c.l.b16 %v2728
    %v2833 = vunpack.c.h.b16 %v2728
    %v2834 = vunpack.c.l.b16 %v2729
    %v2835 = vunpack.c.h.b16 %v2729
    %v2836 = vunpack.c.l.b16 %v2730
    %v2837 = vunpack.c.h.b16 %v2730
    %v2838 = vunpack.c.l.b16 %v2731
    %v2839 = vunpack.c.h.b16 %v2731
    %v2840 = vunpack.c.l.b16 %v2732
    %v2841 = vunpack.c.h.b16 %v2732
    %v2842 = vpack.c.b16 %v2780, %v2778
    %v2843 = vpack.c.b16 %v2781, %v2779
    %v2844 = vpack.c.b16 %v2784, %v2782
    %v2845 = vpack.c.b16 %v2785, %v2783
    %v2846 = vpack.c.b16 %v2788, %v2786
    %v2847 = vpack.c.b16 %v2789, %v2787
    %v2848 = vpack.c.b16 %v2792, %v2790
    %v2849 = vpack.c.b16 %v2793, %v2791
    %v2850 = vpack.c.b16 %v2796, %v2794
    %v2851 = vpack.c.b16 %v2797, %v2795
    %v2852 = vpack.c.b16 %v2800, %v2798
    %v2853 = vpack.c.b16 %v2801, %v2799
    %v2854 = vpack.c.b16 %v2804, %v2802
    %v2855 = vpack.c.b16 %v2805, %v2803
    %v2856 = vpack.c.b16 %v2808, %v2806
    %v2857 = vpack.c.b16 %v2809, %v2807
    %v2858 = vpack.c.b16 %v2812, %v2810
    %v2859 = vpack.c.b16 %v2813, %v2811
    %v2860 = vpack.c.b16 %v2816, %v2814
    %v2861 = vpack.c.b16 %v2817, %v2815
    %v2862 = vpack.c.b16 %v2820, %v2818
    %v2863 = vpack.c.b16 %v2821, %v2819
    %v2864 = vpack.c.b16 %v2824, %v2822
    %v2865 = vpack.c.b16 %v2825, %v2823
    %v2866 = vpack.c.b16 %v2828, %v2826
    %v2867 = vpack.c.b16 %v2829, %v2827
    %v2868 = vpack.c.b16 %v2832, %v2830
    %v2869 = vpack.c.b16 %v2833, %v2831
    %v2870 = vpack.c.b16 %v2836, %v2834
    %v2871 = vpack.c.b16 %v2837, %v2835
    %v2872 = vpack.c.b16 %v2840, %v2838
    %v2873 = vpack.c.b16 %v2841, %v2839
    %2906 = vmatprep.subr.bf16.mxu0 %v2843
    %2907 = vmatpush1.bf16.msra.mxu0 %v2842
    %2908 = vmatprep.subr.bf16.mxu0 %v2845
    %2909 = vmatpush1.bf16.msra.mxu0 %v2844
    %2910 = vmatprep.subr.bf16.mxu0 %v2847
    %2911 = vmatpush1.bf16.msra.mxu0 %v2846
    %2912 = vmatprep.subr.bf16.mxu0 %v2849
    %2913 = vmatpush1.bf16.msra.mxu0 %v2848
    %2914 = vmatprep.subr.bf16.mxu0 %v2851
    %2915 = vmatpush1.bf16.msra.mxu0 %v2850
    %2916 = vmatprep.subr.bf16.mxu0 %v2853
    %2917 = vmatpush1.bf16.msra.mxu0 %v2852
    %2918 = vmatprep.subr.bf16.mxu0 %v2855
    %2919 = vmatpush1.bf16.msra.mxu0 %v2854
    %2920 = vmatprep.subr.bf16.mxu0 %v2857
    %2921 = vmatpush1.bf16.msra.mxu0 %v2856
    %2922 = vmatprep.subr.bf16.mxu0 %v2859
    %2923 = vmatpush1.bf16.msra.mxu0 %v2858
    %2924 = vmatprep.subr.bf16.mxu0 %v2861
    %2925 = vmatpush1.bf16.msra.mxu0 %v2860
    %2926 = vmatprep.subr.bf16.mxu0 %v2863
    %2927 = vmatpush1.bf16.msra.mxu0 %v2862
    %2928 = vmatprep.subr.bf16.mxu0 %v2865
    %2929 = vmatpush1.bf16.msra.mxu0 %v2864
    %2930 = vmatprep.subr.bf16.mxu0 %v2867
    %2931 = vmatpush1.bf16.msra.mxu0 %v2866
    %2932 = vmatprep.subr.bf16.mxu0 %v2869
    %2933 = vmatpush1.bf16.msra.mxu0 %v2868
    %2934 = vmatprep.subr.bf16.mxu0 %v2871
    %2935 = vmatpush1.bf16.msra.mxu0 %v2870
    %2936 = vmatprep.subr.bf16.mxu0 %v2873
    %2937 = vmatpush1.bf16.msra.mxu0 %v2872
    %2938 = vmatprep.mubr.bf16.mxu0 %v2699
    %2939 = vmatmul.mubr.bf16.gmra.mrb[0].mxu0 %v2698
    %v2940 = vpop.f32.mrb[0].mxu0
    %v2941 = vadd.f32 %v2739, %v2940
    %v2942 = vpop.f32.mrb[0].mxu0
    %v2943 = vadd.f32 %v2743, %v2942
    %v2944 = vpop.f32.mrb[0].mxu0
    %v2945 = vpop.f32.mrb[0].mxu0
    %2946 = vdwg.mxu0
    %v2947 = vmax.f32 %v2941, 0.0
    %v2948 = vmax.f32 %v2943, 0.0
    %v2949 = vpack.c.bf16 %v2947, %v2947
    %v2950 = vpack.c.bf16 %v2948, %v2948
    %s2951 = scalar_lea.vmem [#allocation11], 256
    %v2952 = vld [vmem:[%s2951] sm:$0xff]
    %v2953 = vld [vmem:[%s2951 + $0x8] sm:$0xff]
    %v2954 = vld [vmem:[%s2951 + $0x10] sm:$0xff]
    %v2955 = vld [vmem:[%s2951 + $0x18] sm:$0xff]
    %v2956 = vld [vmem:[%s2951 + $0x20] sm:$0xff]
    %v2957 = vld [vmem:[%s2951 + $0x28] sm:$0xff]
    %v2958 = vld [vmem:[%s2951 + $0x30] sm:$0xff]
    %v2959 = vld [vmem:[%s2951 + $0x38] sm:$0xff]
    %v2960 = vld [vmem:[%s2951 + $0x40] sm:$0xff]
    %v2961 = vld [vmem:[%s2951 + $0x48] sm:$0xff]
    %v2962 = vld [vmem:[%s2951 + $0x50] sm:$0xff]
    %v2963 = vld [vmem:[%s2951 + $0x58] sm:$0xff]
    %v2964 = vld [vmem:[%s2951 + $0x60] sm:$0xff]
    %v2965 = vld [vmem:[%s2951 + $0x68] sm:$0xff]
    %v2966 = vld [vmem:[%s2951 + $0x70] sm:$0xff]
    %v2967 = vld [vmem:[%s2951 + $0x78] sm:$0xff]
    %v2968 = vld [vmem:[%s2951 + $0x80] sm:$0xff]
    %v2969 = vld [vmem:[%s2951 + $0x88] sm:$0xff]
    %v2970 = vld [vmem:[%s2951 + $0x90] sm:$0xff]
    %v2971 = vld [vmem:[%s2951 + $0x98] sm:$0xff]
    %v2972 = vld [vmem:[%s2951 + $0xa0] sm:$0xff]
    %v2973 = vld [vmem:[%s2951 + $0xa8] sm:$0xff]
    %v2974 = vld [vmem:[%s2951 + $0xb0] sm:$0xff]
    %v2975 = vld [vmem:[%s2951 + $0xb8] sm:$0xff]
    %v2976 = vld [vmem:[%s2951 + $0xc0] sm:$0xff]
    %v2977 = vld [vmem:[%s2951 + $0xc8] sm:$0xff]
    %v2978 = vld [vmem:[%s2951 + $0xd0] sm:$0xff]
    %v2979 = vld [vmem:[%s2951 + $0xd8] sm:$0xff]
    %v2980 = vld [vmem:[%s2951 + $0xe0] sm:$0xff]
    %v2981 = vld [vmem:[%s2951 + $0xe8] sm:$0xff]
    %v2982 = vld [vmem:[%s2951 + $0xf0] sm:$0xff]
    %v2983 = vld [vmem:[%s2951 + $0xf8] sm:$0xff]
    %s2984 = scalar_lea.vmem %s8, 2
    %v2985 = vld [vmem:[%s2984] sm:$0x3]
    %v2987 = vlaneseq
    %v2988 = vshrl.u32 %v2987, 7
    %v2989 = vsub.s32 0, %v2988
    %v2990 = vrot.slane %v2985, %v2989
    %v2991 = vlaneseq
    %v2992 = vshrl.u32 %v2991, 7
    %v2993 = vsub.s32 1, %v2992
    %v2994 = vrot.slane %v2985, %v2993
    %v3029 = vunpack.c.l.b16 %v2952
    %v3030 = vunpack.c.h.b16 %v2952
    %v3031 = vunpack.c.l.b16 %v2953
    %v3032 = vunpack.c.h.b16 %v2953
    %v3033 = vunpack.c.l.b16 %v2954
    %v3034 = vunpack.c.h.b16 %v2954
    %v3035 = vunpack.c.l.b16 %v2955
    %v3036 = vunpack.c.h.b16 %v2955
    %v3037 = vunpack.c.l.b16 %v2956
    %v3038 = vunpack.c.h.b16 %v2956
    %v3039 = vunpack.c.l.b16 %v2957
    %v3040 = vunpack.c.h.b16 %v2957
    %v3041 = vunpack.c.l.b16 %v2958
    %v3042 = vunpack.c.h.b16 %v2958
    %v3043 = vunpack.c.l.b16 %v2959
    %v3044 = vunpack.c.h.b16 %v2959
    %v3045 = vunpack.c.l.b16 %v2960
    %v3046 = vunpack.c.h.b16 %v2960
    %v3047 = vunpack.c.l.b16 %v2961
    %v3048 = vunpack.c.h.b16 %v2961
    %v3049 = vunpack.c.l.b16 %v2962
    %v3050 = vunpack.c.h.b16 %v2962
    %v3051 = vunpack.c.l.b16 %v2963
    %v3052 = vunpack.c.h.b16 %v2963
    %v3053 = vunpack.c.l.b16 %v2964
    %v3054 = vunpack.c.h.b16 %v2964
    %v3055 = vunpack.c.l.b16 %v2965
    %v3056 = vunpack.c.h.b16 %v2965
    %v3057 = vunpack.c.l.b16 %v2966
    %v3058 = vunpack.c.h.b16 %v2966
    %v3059 = vunpack.c.l.b16 %v2967
    %v3060 = vunpack.c.h.b16 %v2967
    %v3061 = vunpack.c.l.b16 %v2968
    %v3062 = vunpack.c.h.b16 %v2968
    %v3063 = vunpack.c.l.b16 %v2969
    %v3064 = vunpack.c.h.b16 %v2969
    %v3065 = vunpack.c.l.b16 %v2970
    %v3066 = vunpack.c.h.b16 %v2970
    %v3067 = vunpack.c.l.b16 %v2971
    %v3068 = vunpack.c.h.b16 %v2971
    %v3069 = vunpack.c.l.b16 %v2972
    %v3070 = vunpack.c.h.b16 %v2972
    %v3071 = vunpack.c.l.b16 %v2973
    %v3072 = vunpack.c.h.b16 %v2973
    %v3073 = vunpack.c.l.b16 %v2974
    %v3074 = vunpack.c.h.b16 %v2974
    %v3075 = vunpack.c.l.b16 %v2975
    %v3076 = vunpack.c.h.b16 %v2975
    %v3077 = vunpack.c.l.b16 %v2976
    %v3078 = vunpack.c.h.b16 %v2976
    %v3079 = vunpack.c.l.b16 %v2977
    %v3080 = vunpack.c.h.b16 %v2977
    %v3081 = vunpack.c.l.b16 %v2978
    %v3082 = vunpack.c.h.b16 %v2978
    %v3083 = vunpack.c.l.b16 %v2979
    %v3084 = vunpack.c.h.b16 %v2979
    %v3085 = vunpack.c.l.b16 %v2980
    %v3086 = vunpack.c.h.b16 %v2980
    %v3087 = vunpack.c.l.b16 %v2981
    %v3088 = vunpack.c.h.b16 %v2981
    %v3089 = vunpack.c.l.b16 %v2982
    %v3090 = vunpack.c.h.b16 %v2982
    %v3091 = vunpack.c.l.b16 %v2983
    %v3092 = vunpack.c.h.b16 %v2983
    %v3093 = vpack.c.b16 %v3031, %v3029
    %v3094 = vpack.c.b16 %v3032, %v3030
    %v3095 = vpack.c.b16 %v3035, %v3033
    %v3096 = vpack.c.b16 %v3036, %v3034
    %v3097 = vpack.c.b16 %v3039, %v3037
    %v3098 = vpack.c.b16 %v3040, %v3038
    %v3099 = vpack.c.b16 %v3043, %v3041
    %v3100 = vpack.c.b16 %v3044, %v3042
    %v3101 = vpack.c.b16 %v3047, %v3045
    %v3102 = vpack.c.b16 %v3048, %v3046
    %v3103 = vpack.c.b16 %v3051, %v3049
    %v3104 = vpack.c.b16 %v3052, %v3050
    %v3105 = vpack.c.b16 %v3055, %v3053
    %v3106 = vpack.c.b16 %v3056, %v3054
    %v3107 = vpack.c.b16 %v3059, %v3057
    %v3108 = vpack.c.b16 %v3060, %v3058
    %v3109 = vpack.c.b16 %v3063, %v3061
    %v3110 = vpack.c.b16 %v3064, %v3062
    %v3111 = vpack.c.b16 %v3067, %v3065
    %v3112 = vpack.c.b16 %v3068, %v3066
    %v3113 = vpack.c.b16 %v3071, %v3069
    %v3114 = vpack.c.b16 %v3072, %v3070
    %v3115 = vpack.c.b16 %v3075, %v3073
    %v3116 = vpack.c.b16 %v3076, %v3074
    %v3117 = vpack.c.b16 %v3079, %v3077
    %v3118 = vpack.c.b16 %v3080, %v3078
    %v3119 = vpack.c.b16 %v3083, %v3081
    %v3120 = vpack.c.b16 %v3084, %v3082
    %v3121 = vpack.c.b16 %v3087, %v3085
    %v3122 = vpack.c.b16 %v3088, %v3086
    %v3123 = vpack.c.b16 %v3091, %v3089
    %v3124 = vpack.c.b16 %v3092, %v3090
    %3157 = vmatprep.subr.bf16.mxu0 %v3094
    %3158 = vmatpush1.bf16.msra.mxu0 %v3093
    %3159 = vmatprep.subr.bf16.mxu0 %v3096
    %3160 = vmatpush1.bf16.msra.mxu0 %v3095
    %3161 = vmatprep.subr.bf16.mxu0 %v3098
    %3162 = vmatpush1.bf16.msra.mxu0 %v3097
    %3163 = vmatprep.subr.bf16.mxu0 %v3100
    %3164 = vmatpush1.bf16.msra.mxu0 %v3099
    %3165 = vmatprep.subr.bf16.mxu0 %v3102
    %3166 = vmatpush1.bf16.msra.mxu0 %v3101
    %3167 = vmatprep.subr.bf16.mxu0 %v3104
    %3168 = vmatpush1.bf16.msra.mxu0 %v3103
    %3169 = vmatprep.subr.bf16.mxu0 %v3106
    %3170 = vmatpush1.bf16.msra.mxu0 %v3105
    %3171 = vmatprep.subr.bf16.mxu0 %v3108
    %3172 = vmatpush1.bf16.msra.mxu0 %v3107
    %3173 = vmatprep.subr.bf16.mxu0 %v3110
    %3174 = vmatpush1.bf16.msra.mxu0 %v3109
    %3175 = vmatprep.subr.bf16.mxu0 %v3112
    %3176 = vmatpush1.bf16.msra.mxu0 %v3111
    %3177 = vmatprep.subr.bf16.mxu0 %v3114
    %3178 = vmatpush1.bf16.msra.mxu0 %v3113
    %3179 = vmatprep.subr.bf16.mxu0 %v3116
    %3180 = vmatpush1.bf16.msra.mxu0 %v3115
    %3181 = vmatprep.subr.bf16.mxu0 %v3118
    %3182 = vmatpush1.bf16.msra.mxu0 %v3117
    %3183 = vmatprep.subr.bf16.mxu0 %v3120
    %3184 = vmatpush1.bf16.msra.mxu0 %v3119
    %3185 = vmatprep.subr.bf16.mxu0 %v3122
    %3186 = vmatpush1.bf16.msra.mxu0 %v3121
    %3187 = vmatprep.subr.bf16.mxu0 %v3124
    %3188 = vmatpush1.bf16.msra.mxu0 %v3123
    %3189 = vmatprep.mubr.bf16.mxu0 %v2950
    %3190 = vmatmul.mubr.bf16.gmra.mrb[0].mxu0 %v2949
    %v3191 = vpop.f32.mrb[0].mxu0
    %v3192 = vadd.f32 %v2990, %v3191
    %v3193 = vpop.f32.mrb[0].mxu0
    %v3194 = vadd.f32 %v2994, %v3193
    %v3195 = vpop.f32.mrb[0].mxu0
    %v3196 = vpop.f32.mrb[0].mxu0
    %3197 = vdwg.mxu0
    %v3198 = vmax.f32 %v3192, 0.0
    %v3199 = vmax.f32 %v3194, 0.0
    %v3200 = vadd.f32 %v3198, %v2696
    %v3201 = vadd.f32 %v3199, %v2697
    %v3202 = vpack.c.bf16 %v3200, %v3200
    %v3203 = vpack.c.bf16 %v3201, %v3201
    %v3204 = vld [vmem:[#allocation12] sm:$0xf]
    %v3205 = vld [vmem:[#allocation12 + $0x4] sm:$0xf]
    %v3206 = vld [vmem:[#allocation12 + $0x8] sm:$0xf]
    %v3207 = vld [vmem:[#allocation12 + $0xc] sm:$0xf]
    %v3208 = vld [vmem:[#allocation12 + $0x10] sm:$0xf]
    %v3209 = vld [vmem:[#allocation12 + $0x14] sm:$0xf]
    %v3210 = vld [vmem:[#allocation12 + $0x18] sm:$0xf]
    %v3211 = vld [vmem:[#allocation12 + $0x1c] sm:$0xf]
    %v3212 = vld [vmem:[#allocation12 + $0x20] sm:$0xf]
    %v3213 = vld [vmem:[#allocation12 + $0x24] sm:$0xf]
    %v3214 = vld [vmem:[#allocation12 + $0x28] sm:$0xf]
    %v3215 = vld [vmem:[#allocation12 + $0x2c] sm:$0xf]
    %v3216 = vld [vmem:[#allocation12 + $0x30] sm:$0xf]
    %v3217 = vld [vmem:[#allocation12 + $0x34] sm:$0xf]
    %v3218 = vld [vmem:[#allocation12 + $0x38] sm:$0xf]
    %v3219 = vld [vmem:[#allocation12 + $0x3c] sm:$0xf]
    %v3220 = vld [vmem:[#allocation12 + $0x40] sm:$0xf]
    %v3221 = vld [vmem:[#allocation12 + $0x44] sm:$0xf]
    %v3222 = vld [vmem:[#allocation12 + $0x48] sm:$0xf]
    %v3223 = vld [vmem:[#allocation12 + $0x4c] sm:$0xf]
    %v3224 = vld [vmem:[#allocation12 + $0x50] sm:$0xf]
    %v3225 = vld [vmem:[#allocation12 + $0x54] sm:$0xf]
    %v3226 = vld [vmem:[#allocation12 + $0x58] sm:$0xf]
    %v3227 = vld [vmem:[#allocation12 + $0x5c] sm:$0xf]
    %v3228 = vld [vmem:[#allocation12 + $0x60] sm:$0xf]
    %v3229 = vld [vmem:[#allocation12 + $0x64] sm:$0xf]
    %v3230 = vld [vmem:[#allocation12 + $0x68] sm:$0xf]
    %v3231 = vld [vmem:[#allocation12 + $0x6c] sm:$0xf]
    %v3232 = vld [vmem:[#allocation12 + $0x70] sm:$0xf]
    %v3233 = vld [vmem:[#allocation12 + $0x74] sm:$0xf]
    %v3234 = vld [vmem:[#allocation12 + $0x78] sm:$0xf]
    %v3235 = vld [vmem:[#allocation12 + $0x7c] sm:$0xf]
    %v3236 = vld [vmem:[%s10] sm:$0x1]
    %v3238 = vlaneseq
    %v3239 = vshrl.u32 %v3238, 7
    %v3240 = vsub.s32 0, %v3239
    %v3241 = vrot.slane %v3236, %v3240
    %v3275 = vunpack.c.l.b16 %v3204
    %v3276 = vunpack.c.l.b16 %v3205
    %v3277 = vunpack.c.l.b16 %v3206
    %v3278 = vunpack.c.l.b16 %v3207
    %v3279 = vunpack.c.l.b16 %v3208
    %v3280 = vunpack.c.l.b16 %v3209
    %v3281 = vunpack.c.l.b16 %v3210
    %v3282 = vunpack.c.l.b16 %v3211
    %v3283 = vunpack.c.l.b16 %v3212
    %v3284 = vunpack.c.l.b16 %v3213
    %v3285 = vunpack.c.l.b16 %v3214
    %v3286 = vunpack.c.l.b16 %v3215
    %v3287 = vunpack.c.l.b16 %v3216
    %v3288 = vunpack.c.l.b16 %v3217
    %v3289 = vunpack.c.l.b16 %v3218
    %v3290 = vunpack.c.l.b16 %v3219
    %v3291 = vunpack.c.l.b16 %v3220
    %v3292 = vunpack.c.l.b16 %v3221
    %v3293 = vunpack.c.l.b16 %v3222
    %v3294 = vunpack.c.l.b16 %v3223
    %v3295 = vunpack.c.l.b16 %v3224
    %v3296 = vunpack.c.l.b16 %v3225
    %v3297 = vunpack.c.l.b16 %v3226
    %v3298 = vunpack.c.l.b16 %v3227
    %v3299 = vunpack.c.l.b16 %v3228
    %v3300 = vunpack.c.l.b16 %v3229
    %v3301 = vunpack.c.l.b16 %v3230
    %v3302 = vunpack.c.l.b16 %v3231
    %v3303 = vunpack.c.l.b16 %v3232
    %v3304 = vunpack.c.l.b16 %v3233
    %v3305 = vunpack.c.l.b16 %v3234
    %v3306 = vunpack.c.l.b16 %v3235
    %v3307 = vpack.c.b16 %v3276, %v3275
    %v3308 = vpack.c.b16 %v3278, %v3277
    %v3309 = vpack.c.b16 %v3280, %v3279
    %v3310 = vpack.c.b16 %v3282, %v3281
    %v3311 = vpack.c.b16 %v3284, %v3283
    %v3312 = vpack.c.b16 %v3286, %v3285
    %v3313 = vpack.c.b16 %v3288, %v3287
    %v3314 = vpack.c.b16 %v3290, %v3289
    %v3315 = vpack.c.b16 %v3292, %v3291
    %v3316 = vpack.c.b16 %v3294, %v3293
    %v3317 = vpack.c.b16 %v3296, %v3295
    %v3318 = vpack.c.b16 %v3298, %v3297
    %v3319 = vpack.c.b16 %v3300, %v3299
    %v3320 = vpack.c.b16 %v3302, %v3301
    %v3321 = vpack.c.b16 %v3304, %v3303
    %v3322 = vpack.c.b16 %v3306, %v3305
    %3339 = vmatprep.subr.bf16.mxu0 0
    %3340 = vmatpush1.bf16.msra.mxu0 %v3307
    %3341 = vmatprep.subr.bf16.mxu0 0
    %3342 = vmatpush1.bf16.msra.mxu0 %v3308
    %3343 = vmatprep.subr.bf16.mxu0 0
    %3344 = vmatpush1.bf16.msra.mxu0 %v3309
    %3345 = vmatprep.subr.bf16.mxu0 0
    %3346 = vmatpush1.bf16.msra.mxu0 %v3310
    %3347 = vmatprep.subr.bf16.mxu0 0
    %3348 = vmatpush1.bf16.msra.mxu0 %v3311
    %3349 = vmatprep.subr.bf16.mxu0 0
    %3350 = vmatpush1.bf16.msra.mxu0 %v3312
    %3351 = vmatprep.subr.bf16.mxu0 0
    %3352 = vmatpush1.bf16.msra.mxu0 %v3313
    %3353 = vmatprep.subr.bf16.mxu0 0
    %3354 = vmatpush1.bf16.msra.mxu0 %v3314
    %3355 = vmatprep.subr.bf16.mxu0 0
    %3356 = vmatpush1.bf16.msra.mxu0 %v3315
    %3357 = vmatprep.subr.bf16.mxu0 0
    %3358 = vmatpush1.bf16.msra.mxu0 %v3316
    %3359 = vmatprep.subr.bf16.mxu0 0
    %3360 = vmatpush1.bf16.msra.mxu0 %v3317
    %3361 = vmatprep.subr.bf16.mxu0 0
    %3362 = vmatpush1.bf16.msra.mxu0 %v3318
    %3363 = vmatprep.subr.bf16.mxu0 0
    %3364 = vmatpush1.bf16.msra.mxu0 %v3319
    %3365 = vmatprep.subr.bf16.mxu0 0
    %3366 = vmatpush1.bf16.msra.mxu0 %v3320
    %3367 = vmatprep.subr.bf16.mxu0 0
    %3368 = vmatpush1.bf16.msra.mxu0 %v3321
    %3369 = vmatprep.subr.bf16.mxu0 0
    %3370 = vmatpush1.bf16.msra.mxu0 %v3322
    %3371 = vmatprep.mubr.bf16.mxu0 %v3203
    %3372 = vmatmul.mubr.bf16.gmra.mrb[0].mxu0 %v3202
    %v3373 = vpop.f32.mrb[0].mxu0
    %v3374 = vadd.f32 %v3241, %v3373
    %v3375 = vpop.f32.mrb[0].mxu0
    %v3376 = vpop.f32.mrb[0].mxu0
    %v3377 = vpop.f32.mrb[0].mxu0
    %3378 = vdwg.mxu0
    %3379 = vst [vmem:[#allocation14] sm:$0xff] %v3374
    // Predicated region
    $region70: #{tpu_custom_call.1} parent=1 // pred_check
      _
    $region71: #{tpu_custom_call.1} parent=1 // pred_check_branch
      %3381 = sbr.rel (0) target = $region73
    $region72: #{tpu_custom_call.1} parent=1 // pred_region
      %s3383 = ssub.s32 128, 128
      %3384 = vsyncadd [#allocation5], %s3383
      %s3386 = sshll.u32 [#allocation14], 4
      %s3387 = int_to_ptr.vmem [resolvable:$true] %s3386
      %3389 = dma.vmem_to_hbm [thread:$0]  %s3387, 128, %s11, [#allocation5]
    $region73: #{tpu_custom_call.1} parent=1 // pred_fallthru
      _
    // Predicated region
    $region74: #{tpu_custom_call.1} parent=1 // pred_check
      _
    $region75: #{tpu_custom_call.1} parent=1 // pred_check_branch
      %3391 = sbr.rel (0) target = $region77
    $region76: #{tpu_custom_call.1} parent=1 // pred_region
      %3392 = dma.done [#allocation5], 128
    $region77: #{tpu_custom_call.1} parent=1 // pred_fallthru
      _
    %3393 = vsyncpa [#allocation4], 1
    %3394 = vsyncpa [#allocation7], 1
    %3395 = vsyncpa [#allocation10], 1
    %3396 = vsyncpa [#allocation13], 1
    %3397 = vsyncpa [#allocation5], 1

</llo_original>
